<compile_context>
chip_gen: v7x
topology: tpu7x:2x2x1
jax: 0.10.0
libtpu: 0.0.40
codegen_flags: <defaults>
</compile_context>

<pallas_src>
import numpy as np
import jax
import jax.numpy as jnp
from jax import lax
from jax.experimental import pallas as pl
from jax.experimental.pallas import tpu as pltpu

EPS = 1e-5
LANE = 128

_VMEM = pl.BlockSpec(memory_space=pltpu.MemorySpace.VMEM)


# ------------------------------ Pallas kernel ------------------------------

def _bn_relu(acc, gamma, beta):
    # BatchNorm with batch statistics (PyTorch training-mode default) + ReLU.
    mean = jnp.mean(acc, axis=0, keepdims=True)
    var = jnp.mean(jnp.square(acc - mean), axis=0, keepdims=True)
    inv = lax.rsqrt(var + EPS)
    return jnp.maximum((acc - mean) * inv * gamma + beta, 0.0)


def _encoder_kernel(p1_ref, w1_ref, g1_ref, be1_ref,
                    s2_ref, w2_ref, g2_ref, be2_ref,
                    s3_ref, w3_ref, b3_ref, o_ref):
    f32 = jnp.float32
    bf16 = jnp.bfloat16

    # ---- layer 1: conv(3->16, s2, p1) as one (M1,K1p)@(K1p,C1p) MXU matmul.
    # Conv bias omitted: exactly cancelled by the following BN mean subtraction.
    acc1 = jnp.dot(p1_ref[...], w1_ref[...], preferred_element_type=f32)
    act1 = _bn_relu(acc1, g1_ref[...], be1_ref[...]).astype(bf16)        # (M1, 128)

    # ---- layer 2: conv(16->32, s2, p1): 9 taps of (select-rows)@(tap-weight),
    # activation stays in VMEM, no im2col materialization.
    acc2 = None
    for t in range(9):
        pt = jnp.dot(s2_ref[t], act1, preferred_element_type=f32)        # (M2, 128)
        term = jnp.dot(pt.astype(bf16), w2_ref[t], preferred_element_type=f32)
        acc2 = term if acc2 is None else acc2 + term
    act2 = _bn_relu(acc2, g2_ref[...], be2_ref[...]).astype(bf16)        # (M2, 128)

    # ---- layer 3: conv(32->64, s1, valid), bias only.
    acc3 = None
    for t in range(9):
        pt = jnp.dot(s3_ref[t], act2, preferred_element_type=f32)        # (M3, 128)
        term = jnp.dot(pt.astype(bf16), w3_ref[t], preferred_element_type=f32)
        acc3 = term if acc3 is None else acc3 + term
    o_ref[...] = acc3 + b3_ref[...]                                      # lane-dense (M3, 128)


# ------------------------------- host glue ---------------------------------

def _rup(v, m):
    return ((v + m - 1) // m) * m


def _out_hw(h, k, s, p):
    return (h + 2 * p - k) // s + 1


def _im2col(x_nhwc, k, stride, pad):
    """(N,H,W,C) -> (N*OH*OW, k*k*C); row order (n,oh,ow), col order (di,dj,ci)."""
    x = jnp.pad(x_nhwc, ((0, 0), (pad, pad), (pad, pad), (0, 0)))
    n, h, w, c = x.shape
    oh = (h - k) // stride + 1
    ow = (w - k) // stride + 1
    cols = []
    for i in range(k):
        for j in range(k):
            cols.append(x[:, i:i + stride * oh:stride, j:j + stride * ow:stride, :])
    p = jnp.stack(cols, axis=3).reshape(n * oh * ow, k * k * c)
    return p, (oh, ow)


def _conv_selection(n, h_in, w_in, h_out, w_out, stride, pad):
    """S[t, m_out, m_in] = 1 where kernel tap t (= di*3+dj) of output position
    m_out reads input row m_in; all-zero rows realize zero padding."""
    s = np.zeros((9, n * h_out * w_out, n * h_in * w_in), np.float32)
    for di in range(3):
        for dj in range(3):
            t = di * 3 + dj
            for b in range(n):
                for oh in range(h_out):
                    ih = oh * stride - pad + di
                    if ih < 0 or ih >= h_in:
                        continue
                    for ow in range(w_out):
                        iw = ow * stride - pad + dj
                        if iw < 0 or iw >= w_in:
                            continue
                        s[t, (b * h_out + oh) * w_out + ow,
                             (b * h_in + ih) * w_in + iw] = 1.0
    return jnp.asarray(s, jnp.bfloat16)


def _w1_mat(w_oihw, k_pad, c_pad):
    cout, cin, kh, kw = w_oihw.shape
    w = jnp.transpose(w_oihw, (2, 3, 1, 0)).reshape(kh * kw * cin, cout)
    return jnp.pad(w, ((0, k_pad - kh * kw * cin), (0, c_pad - cout))).astype(jnp.bfloat16)


def _tap_weights(w_oihw, cin_pad, cout_pad):
    cout, cin, kh, kw = w_oihw.shape
    w = jnp.transpose(w_oihw, (2, 3, 1, 0)).reshape(kh * kw, cin, cout)
    w = jnp.pad(w, ((0, 0), (0, cin_pad - cin), (0, cout_pad - cout)))
    return w.astype(jnp.bfloat16)


def _row_vec(v, c_pad):
    return jnp.pad(v, (0, c_pad - v.shape[0])).reshape(1, c_pad).astype(jnp.float32)


def init_params(key):
    ks = jax.random.split(key, 6)

    def conv_init(kw_key, kb_key, cout, cin, k):
        fan_in = cin * k * k
        bound = 1.0 / jnp.sqrt(fan_in)
        w = jax.random.uniform(kw_key, (cout, cin, k, k), jnp.float32, -bound, bound)
        b = jax.random.uniform(kb_key, (cout,), jnp.float32, -bound, bound)
        return w, b

    w1, b1 = conv_init(ks[0], ks[1], 16, 3, 3)
    w2, b2 = conv_init(ks[2], ks[3], 32, 16, 3)
    w3, b3 = conv_init(ks[4], ks[5], 64, 32, 3)
    return {
        "w1": w1, "b1": b1, "g1": jnp.ones((16,), jnp.float32), "be1": jnp.zeros((16,), jnp.float32),
        "w2": w2, "b2": b2, "g2": jnp.ones((32,), jnp.float32), "be2": jnp.zeros((32,), jnp.float32),
        "w3": w3, "b3": b3,
    }


def encoder_forward(params, x_nchw):
    n = x_nchw.shape[0]
    c1, c2, c3 = params["w1"].shape[0], params["w2"].shape[0], params["w3"].shape[0]
    c1p, c2p, c3p = _rup(c1, LANE), _rup(c2, LANE), _rup(c3, LANE)

    x = jnp.transpose(x_nchw, (0, 2, 3, 1)).astype(jnp.float32)        # NCHW -> NHWC

    # Layer-1 patches (input has to be read from HBM once anyway); K padded to 128 lanes.
    p1, (oh1, ow1) = _im2col(x, 3, stride=2, pad=1)
    k1p = _rup(p1.shape[1], LANE)
    p1 = jnp.pad(p1, ((0, 0), (0, k1p - p1.shape[1]))).astype(jnp.bfloat16)
    w1 = _w1_mat(params["w1"], k1p, c1p)
    g1, be1 = _row_vec(params["g1"], c1p), _row_vec(params["be1"], c1p)

    oh2, ow2 = _out_hw(oh1, 3, 2, 1), _out_hw(ow1, 3, 2, 1)
    s2 = _conv_selection(n, oh1, ow1, oh2, ow2, stride=2, pad=1)
    w2 = _tap_weights(params["w2"], c1p, c2p)
    g2, be2 = _row_vec(params["g2"], c2p), _row_vec(params["be2"], c2p)

    oh3, ow3 = _out_hw(oh2, 3, 1, 0), _out_hw(ow2, 3, 1, 0)
    s3 = _conv_selection(n, oh2, ow2, oh3, ow3, stride=1, pad=0)
    w3 = _tap_weights(params["w3"], c2p, c3p)
    b3 = _row_vec(params["b3"], c3p)

    m1, m2, m3 = n * oh1 * ow1, n * oh2 * ow2, n * oh3 * ow3
    inputs = (p1, w1, g1, be1, s2, w2, g2, be2, s3, w3, b3)
    flops = 2 * (m1 * k1p * c1p
                 + 9 * (m2 * m1 * c1p + m2 * c1p * c2p)
                 + 9 * (m3 * m2 * c2p + m3 * c2p * c3p))
    bytes_accessed = sum(int(a.size) * a.dtype.itemsize for a in inputs) + m3 * c3p * 4

    # TODO(synk): for large N/H/W, grid over M with BlockSpec pipelining
    # (dimension_semantics=("parallel",)) and a two-pass (sum / sum-of-squares)
    # BN instead of this single-block, whole-batch-in-VMEM reduction.
    out = pl.pallas_call(
        _encoder_kernel,
        out_shape=jax.ShapeDtypeStruct((m3, c3p), jnp.float32),
        in_specs=[_VMEM] * len(inputs),
        out_specs=_VMEM,
        cost_estimate=pl.CostEstimate(flops=int(flops),
                                      transcendentals=int(c1p + c2p),
                                      bytes_accessed=int(bytes_accessed)),
    )(*inputs)

    y = out[:, :c3].reshape(n, oh3, ow3, c3)
    return jnp.transpose(y, (0, 3, 1, 2))                              # NHWC -> NCHW


# ------------------------- pure-JAX f32 reference ---------------------------

def _ref_forward(params, x_nchw):
    def conv(x, w, b, stride, pad):
        y = lax.conv_general_dilated(x, w, (stride, stride),
                                     ((pad, pad), (pad, pad)),
                                     dimension_numbers=("NCHW", "OIHW", "NCHW"))
        return y + b.reshape(1, -1, 1, 1)

    def bn_relu(x, g, be):
        mean = jnp.mean(x, axis=(0, 2, 3), keepdims=True)
        var = jnp.mean(jnp.square(x - mean), axis=(0, 2, 3), keepdims=True)
        y = (x - mean) * lax.rsqrt(var + EPS) * g.reshape(1, -1, 1, 1) + be.reshape(1, -1, 1, 1)
        return jnp.maximum(y, 0.0)

    x = x_nchw.astype(jnp.float32)
    x = bn_relu(conv(x, params["w1"], params["b1"], 2, 1), params["g1"], params["be1"])
    x = bn_relu(conv(x, params["w2"], params["b2"], 2, 1), params["g2"], params["be2"])
    return conv(x, params["w3"], params["b3"], 1, 0)


if __name__ == "__main__":
    key = jax.random.PRNGKey(0)
    k_x, k_p = jax.random.split(key)
    x = jax.random.normal(k_x, (2, 3, 16, 16), jnp.float32)   # NCHW input
    params = init_params(k_p)

    out = jax.jit(encoder_forward)(params, x)
    jax.block_until_ready(out)
    assert out.shape == (2, 64, 2, 2), out.shape

    # Sanity check against the f32 JAX reference (loose: kernel uses bf16 MXU inputs).
    ref = _ref_forward(params, x)
    rel = float(jnp.linalg.norm(out - ref) / (jnp.linalg.norm(ref) + 1e-12))
    assert rel < 0.15, f"relative error too large: {rel}"
    print("KERNEL_OK")
</pallas_src>

<mosaic_0001>
module attributes {stable_mosaic.version = 11 : i64} {
  func.func @_encoder_kernel(%arg0: memref<128x128xbf16, #tpu.memory_space<vmem>>, %arg1: memref<128x128xbf16, #tpu.memory_space<vmem>>, %arg2: memref<1x128xf32, #tpu.memory_space<vmem>>, %arg3: memref<1x128xf32, #tpu.memory_space<vmem>>, %arg4: memref<9x32x128xbf16, #tpu.memory_space<vmem>>, %arg5: memref<9x128x128xbf16, #tpu.memory_space<vmem>>, %arg6: memref<1x128xf32, #tpu.memory_space<vmem>>, %arg7: memref<1x128xf32, #tpu.memory_space<vmem>>, %arg8: memref<9x8x32xbf16, #tpu.memory_space<vmem>>, %arg9: memref<9x128x128xbf16, #tpu.memory_space<vmem>>, %arg10: memref<1x128xf32, #tpu.memory_space<vmem>>, %arg11: memref<8x128xf32, #tpu.memory_space<vmem>>) attributes {dimension_semantics = [], scalar_prefetch = 0 : i64, scratch_operands = 0 : i64, tpu.core_type = #tpu.core_type<tc>} {
    %c0 = arith.constant 0 : index
    %c0_0 = arith.constant 0 : index
    %0 = vector.load %arg0[%c0, %c0_0] : memref<128x128xbf16, #tpu.memory_space<vmem>>, vector<128x128xbf16>
    %c0_1 = arith.constant 0 : index
    %c0_2 = arith.constant 0 : index
    %1 = vector.load %arg1[%c0_1, %c0_2] : memref<128x128xbf16, #tpu.memory_space<vmem>>, vector<128x128xbf16>
    %cst = arith.constant dense<0.000000e+00> : vector<128x128xf32>
    %2 = tpu.matmul %0, %1, %cst {dimension_numbers = #tpu.dot_dimension_numbers<[1], [0], [0], [1], [0, 0, 1, 1], [], []>} : vector<128x128xbf16>, vector<128x128xbf16>, vector<128x128xf32> -> vector<128x128xf32>
    %c0_3 = arith.constant 0 : index
    %c0_4 = arith.constant 0 : index
    %3 = vector.load %arg2[%c0_3, %c0_4] : memref<1x128xf32, #tpu.memory_space<vmem>>, vector<1x128xf32>
    %c0_5 = arith.constant 0 : index
    %c0_6 = arith.constant 0 : index
    %4 = vector.load %arg3[%c0_5, %c0_6] : memref<1x128xf32, #tpu.memory_space<vmem>>, vector<1x128xf32>
    %cst_7 = arith.constant dense<0.000000e+00> : vector<128xf32>
    %5 = vector.multi_reduction <add>, %2, %cst_7 [0] : vector<128x128xf32> to vector<128xf32>
    %6 = vector.shape_cast %5 : vector<128xf32> to vector<1x128xf32>
    %cst_8 = arith.constant 1.280000e+02 : f32
    %7 = vector.broadcast %cst_8 : f32 to vector<1x128xf32>
    %8 = arith.divf %6, %7 : vector<1x128xf32>
    %9 = vector.broadcast %8 : vector<1x128xf32> to vector<128x128xf32>
    %10 = arith.subf %2, %9 : vector<128x128xf32>
    %11 = arith.mulf %10, %10 : vector<128x128xf32>
    %cst_9 = arith.constant dense<0.000000e+00> : vector<128xf32>
    %12 = vector.multi_reduction <add>, %11, %cst_9 [0] : vector<128x128xf32> to vector<128xf32>
    %13 = vector.shape_cast %12 : vector<128xf32> to vector<1x128xf32>
    %cst_10 = arith.constant 1.280000e+02 : f32
    %14 = vector.broadcast %cst_10 : f32 to vector<1x128xf32>
    %15 = arith.divf %13, %14 : vector<1x128xf32>
    %cst_11 = arith.constant 9.99999974E-6 : f32
    %16 = vector.broadcast %cst_11 : f32 to vector<1x128xf32>
    %17 = arith.addf %15, %16 : vector<1x128xf32>
    %18 = math.rsqrt %17 : vector<1x128xf32>
    %19 = vector.broadcast %8 : vector<1x128xf32> to vector<128x128xf32>
    %20 = arith.subf %2, %19 : vector<128x128xf32>
    %21 = vector.broadcast %18 : vector<1x128xf32> to vector<128x128xf32>
    %22 = arith.mulf %20, %21 : vector<128x128xf32>
    %23 = vector.broadcast %3 : vector<1x128xf32> to vector<128x128xf32>
    %24 = arith.mulf %22, %23 : vector<128x128xf32>
    %25 = vector.broadcast %4 : vector<1x128xf32> to vector<128x128xf32>
    %26 = arith.addf %24, %25 : vector<128x128xf32>
    %cst_12 = arith.constant 0.000000e+00 : f32
    %27 = vector.broadcast %cst_12 : f32 to vector<128x128xf32>
    %28 = arith.maximumf %26, %27 : vector<128x128xf32>
    %29 = arith.truncf %28 : vector<128x128xf32> to vector<128x128xbf16>
    %c0_13 = arith.constant 0 : index
    %c0_14 = arith.constant 0 : index
    %c0_15 = arith.constant 0 : index
    %30 = vector.load %arg4[%c0_13, %c0_14, %c0_15] : memref<9x32x128xbf16, #tpu.memory_space<vmem>>, vector<1x32x128xbf16>
    %31 = vector.shape_cast %30 : vector<1x32x128xbf16> to vector<32x128xbf16>
    %cst_16 = arith.constant dense<0.000000e+00> : vector<32x128xf32>
    %32 = tpu.matmul %31, %29, %cst_16 {dimension_numbers = #tpu.dot_dimension_numbers<[1], [0], [0], [1], [0, 0, 1, 1], [], []>} : vector<32x128xbf16>, vector<128x128xbf16>, vector<32x128xf32> -> vector<32x128xf32>
    %33 = arith.truncf %32 : vector<32x128xf32> to vector<32x128xbf16>
    %c0_17 = arith.constant 0 : index
    %c0_18 = arith.constant 0 : index
    %c0_19 = arith.constant 0 : index
    %34 = vector.load %arg5[%c0_17, %c0_18, %c0_19] : memref<9x128x128xbf16, #tpu.memory_space<vmem>>, vector<1x128x128xbf16>
    %35 = vector.shape_cast %34 : vector<1x128x128xbf16> to vector<128x128xbf16>
    %cst_20 = arith.constant dense<0.000000e+00> : vector<32x128xf32>
    %36 = tpu.matmul %33, %35, %cst_20 {dimension_numbers = #tpu.dot_dimension_numbers<[1], [0], [0], [1], [0, 0, 1, 1], [], []>} : vector<32x128xbf16>, vector<128x128xbf16>, vector<32x128xf32> -> vector<32x128xf32>
    %c1 = arith.constant 1 : index
    %c0_21 = arith.constant 0 : index
    %c0_22 = arith.constant 0 : index
    %37 = vector.load %arg4[%c1, %c0_21, %c0_22] : memref<9x32x128xbf16, #tpu.memory_space<vmem>>, vector<1x32x128xbf16>
    %38 = vector.shape_cast %37 : vector<1x32x128xbf16> to vector<32x128xbf16>
    %cst_23 = arith.constant dense<0.000000e+00> : vector<32x128xf32>
    %39 = tpu.matmul %38, %29, %cst_23 {dimension_numbers = #tpu.dot_dimension_numbers<[1], [0], [0], [1], [0, 0, 1, 1], [], []>} : vector<32x128xbf16>, vector<128x128xbf16>, vector<32x128xf32> -> vector<32x128xf32>
    %40 = arith.truncf %39 : vector<32x128xf32> to vector<32x128xbf16>
    %c1_24 = arith.constant 1 : index
    %c0_25 = arith.constant 0 : index
    %c0_26 = arith.constant 0 : index
    %41 = vector.load %arg5[%c1_24, %c0_25, %c0_26] : memref<9x128x128xbf16, #tpu.memory_space<vmem>>, vector<1x128x128xbf16>
    %42 = vector.shape_cast %41 : vector<1x128x128xbf16> to vector<128x128xbf16>
    %cst_27 = arith.constant dense<0.000000e+00> : vector<32x128xf32>
    %43 = tpu.matmul %40, %42, %cst_27 {dimension_numbers = #tpu.dot_dimension_numbers<[1], [0], [0], [1], [0, 0, 1, 1], [], []>} : vector<32x128xbf16>, vector<128x128xbf16>, vector<32x128xf32> -> vector<32x128xf32>
    %44 = arith.addf %36, %43 : vector<32x128xf32>
    %c2 = arith.constant 2 : index
    %c0_28 = arith.constant 0 : index
    %c0_29 = arith.constant 0 : index
    %45 = vector.load %arg4[%c2, %c0_28, %c0_29] : memref<9x32x128xbf16, #tpu.memory_space<vmem>>, vector<1x32x128xbf16>
    %46 = vector.shape_cast %45 : vector<1x32x128xbf16> to vector<32x128xbf16>
    %cst_30 = arith.constant dense<0.000000e+00> : vector<32x128xf32>
    %47 = tpu.matmul %46, %29, %cst_30 {dimension_numbers = #tpu.dot_dimension_numbers<[1], [0], [0], [1], [0, 0, 1, 1], [], []>} : vector<32x128xbf16>, vector<128x128xbf16>, vector<32x128xf32> -> vector<32x128xf32>
    %48 = arith.truncf %47 : vector<32x128xf32> to vector<32x128xbf16>
    %c2_31 = arith.constant 2 : index
    %c0_32 = arith.constant 0 : index
    %c0_33 = arith.constant 0 : index
    %49 = vector.load %arg5[%c2_31, %c0_32, %c0_33] : memref<9x128x128xbf16, #tpu.memory_space<vmem>>, vector<1x128x128xbf16>
    %50 = vector.shape_cast %49 : vector<1x128x128xbf16> to vector<128x128xbf16>
    %cst_34 = arith.constant dense<0.000000e+00> : vector<32x128xf32>
    %51 = tpu.matmul %48, %50, %cst_34 {dimension_numbers = #tpu.dot_dimension_numbers<[1], [0], [0], [1], [0, 0, 1, 1], [], []>} : vector<32x128xbf16>, vector<128x128xbf16>, vector<32x128xf32> -> vector<32x128xf32>
    %52 = arith.addf %44, %51 : vector<32x128xf32>
    %c3 = arith.constant 3 : index
    %c0_35 = arith.constant 0 : index
    %c0_36 = arith.constant 0 : index
    %53 = vector.load %arg4[%c3, %c0_35, %c0_36] : memref<9x32x128xbf16, #tpu.memory_space<vmem>>, vector<1x32x128xbf16>
    %54 = vector.shape_cast %53 : vector<1x32x128xbf16> to vector<32x128xbf16>
    %cst_37 = arith.constant dense<0.000000e+00> : vector<32x128xf32>
    %55 = tpu.matmul %54, %29, %cst_37 {dimension_numbers = #tpu.dot_dimension_numbers<[1], [0], [0], [1], [0, 0, 1, 1], [], []>} : vector<32x128xbf16>, vector<128x128xbf16>, vector<32x128xf32> -> vector<32x128xf32>
    %56 = arith.truncf %55 : vector<32x128xf32> to vector<32x128xbf16>
    %c3_38 = arith.constant 3 : index
    %c0_39 = arith.constant 0 : index
    %c0_40 = arith.constant 0 : index
    %57 = vector.load %arg5[%c3_38, %c0_39, %c0_40] : memref<9x128x128xbf16, #tpu.memory_space<vmem>>, vector<1x128x128xbf16>
    %58 = vector.shape_cast %57 : vector<1x128x128xbf16> to vector<128x128xbf16>
    %cst_41 = arith.constant dense<0.000000e+00> : vector<32x128xf32>
    %59 = tpu.matmul %56, %58, %cst_41 {dimension_numbers = #tpu.dot_dimension_numbers<[1], [0], [0], [1], [0, 0, 1, 1], [], []>} : vector<32x128xbf16>, vector<128x128xbf16>, vector<32x128xf32> -> vector<32x128xf32>
    %60 = arith.addf %52, %59 : vector<32x128xf32>
    %c4 = arith.constant 4 : index
    %c0_42 = arith.constant 0 : index
    %c0_43 = arith.constant 0 : index
    %61 = vector.load %arg4[%c4, %c0_42, %c0_43] : memref<9x32x128xbf16, #tpu.memory_space<vmem>>, vector<1x32x128xbf16>
    %62 = vector.shape_cast %61 : vector<1x32x128xbf16> to vector<32x128xbf16>
    %cst_44 = arith.constant dense<0.000000e+00> : vector<32x128xf32>
    %63 = tpu.matmul %62, %29, %cst_44 {dimension_numbers = #tpu.dot_dimension_numbers<[1], [0], [0], [1], [0, 0, 1, 1], [], []>} : vector<32x128xbf16>, vector<128x128xbf16>, vector<32x128xf32> -> vector<32x128xf32>
    %64 = arith.truncf %63 : vector<32x128xf32> to vector<32x128xbf16>
    %c4_45 = arith.constant 4 : index
    %c0_46 = arith.constant 0 : index
    %c0_47 = arith.constant 0 : index
    %65 = vector.load %arg5[%c4_45, %c0_46, %c0_47] : memref<9x128x128xbf16, #tpu.memory_space<vmem>>, vector<1x128x128xbf16>
    %66 = vector.shape_cast %65 : vector<1x128x128xbf16> to vector<128x128xbf16>
    %cst_48 = arith.constant dense<0.000000e+00> : vector<32x128xf32>
    %67 = tpu.matmul %64, %66, %cst_48 {dimension_numbers = #tpu.dot_dimension_numbers<[1], [0], [0], [1], [0, 0, 1, 1], [], []>} : vector<32x128xbf16>, vector<128x128xbf16>, vector<32x128xf32> -> vector<32x128xf32>
    %68 = arith.addf %60, %67 : vector<32x128xf32>
    %c5 = arith.constant 5 : index
    %c0_49 = arith.constant 0 : index
    %c0_50 = arith.constant 0 : index
    %69 = vector.load %arg4[%c5, %c0_49, %c0_50] : memref<9x32x128xbf16, #tpu.memory_space<vmem>>, vector<1x32x128xbf16>
    %70 = vector.shape_cast %69 : vector<1x32x128xbf16> to vector<32x128xbf16>
    %cst_51 = arith.constant dense<0.000000e+00> : vector<32x128xf32>
    %71 = tpu.matmul %70, %29, %cst_51 {dimension_numbers = #tpu.dot_dimension_numbers<[1], [0], [0], [1], [0, 0, 1, 1], [], []>} : vector<32x128xbf16>, vector<128x128xbf16>, vector<32x128xf32> -> vector<32x128xf32>
    %72 = arith.truncf %71 : vector<32x128xf32> to vector<32x128xbf16>
    %c5_52 = arith.constant 5 : index
    %c0_53 = arith.constant 0 : index
    %c0_54 = arith.constant 0 : index
    %73 = vector.load %arg5[%c5_52, %c0_53, %c0_54] : memref<9x128x128xbf16, #tpu.memory_space<vmem>>, vector<1x128x128xbf16>
    %74 = vector.shape_cast %73 : vector<1x128x128xbf16> to vector<128x128xbf16>
    %cst_55 = arith.constant dense<0.000000e+00> : vector<32x128xf32>
    %75 = tpu.matmul %72, %74, %cst_55 {dimension_numbers = #tpu.dot_dimension_numbers<[1], [0], [0], [1], [0, 0, 1, 1], [], []>} : vector<32x128xbf16>, vector<128x128xbf16>, vector<32x128xf32> -> vector<32x128xf32>
    %76 = arith.addf %68, %75 : vector<32x128xf32>
    %c6 = arith.constant 6 : index
    %c0_56 = arith.constant 0 : index
    %c0_57 = arith.constant 0 : index
    %77 = vector.load %arg4[%c6, %c0_56, %c0_57] : memref<9x32x128xbf16, #tpu.memory_space<vmem>>, vector<1x32x128xbf16>
    %78 = vector.shape_cast %77 : vector<1x32x128xbf16> to vector<32x128xbf16>
    %cst_58 = arith.constant dense<0.000000e+00> : vector<32x128xf32>
    %79 = tpu.matmul %78, %29, %cst_58 {dimension_numbers = #tpu.dot_dimension_numbers<[1], [0], [0], [1], [0, 0, 1, 1], [], []>} : vector<32x128xbf16>, vector<128x128xbf16>, vector<32x128xf32> -> vector<32x128xf32>
    %80 = arith.truncf %79 : vector<32x128xf32> to vector<32x128xbf16>
    %c6_59 = arith.constant 6 : index
    %c0_60 = arith.constant 0 : index
    %c0_61 = arith.constant 0 : index
    %81 = vector.load %arg5[%c6_59, %c0_60, %c0_61] : memref<9x128x128xbf16, #tpu.memory_space<vmem>>, vector<1x128x128xbf16>
    %82 = vector.shape_cast %81 : vector<1x128x128xbf16> to vector<128x128xbf16>
    %cst_62 = arith.constant dense<0.000000e+00> : vector<32x128xf32>
    %83 = tpu.matmul %80, %82, %cst_62 {dimension_numbers = #tpu.dot_dimension_numbers<[1], [0], [0], [1], [0, 0, 1, 1], [], []>} : vector<32x128xbf16>, vector<128x128xbf16>, vector<32x128xf32> -> vector<32x128xf32>
    %84 = arith.addf %76, %83 : vector<32x128xf32>
    %c7 = arith.constant 7 : index
    %c0_63 = arith.constant 0 : index
    %c0_64 = arith.constant 0 : index
    %85 = vector.load %arg4[%c7, %c0_63, %c0_64] : memref<9x32x128xbf16, #tpu.memory_space<vmem>>, vector<1x32x128xbf16>
    %86 = vector.shape_cast %85 : vector<1x32x128xbf16> to vector<32x128xbf16>
    %cst_65 = arith.constant dense<0.000000e+00> : vector<32x128xf32>
    %87 = tpu.matmul %86, %29, %cst_65 {dimension_numbers = #tpu.dot_dimension_numbers<[1], [0], [0], [1], [0, 0, 1, 1], [], []>} : vector<32x128xbf16>, vector<128x128xbf16>, vector<32x128xf32> -> vector<32x128xf32>
    %88 = arith.truncf %87 : vector<32x128xf32> to vector<32x128xbf16>
    %c7_66 = arith.constant 7 : index
    %c0_67 = arith.constant 0 : index
    %c0_68 = arith.constant 0 : index
    %89 = vector.load %arg5[%c7_66, %c0_67, %c0_68] : memref<9x128x128xbf16, #tpu.memory_space<vmem>>, vector<1x128x128xbf16>
    %90 = vector.shape_cast %89 : vector<1x128x128xbf16> to vector<128x128xbf16>
    %cst_69 = arith.constant dense<0.000000e+00> : vector<32x128xf32>
    %91 = tpu.matmul %88, %90, %cst_69 {dimension_numbers = #tpu.dot_dimension_numbers<[1], [0], [0], [1], [0, 0, 1, 1], [], []>} : vector<32x128xbf16>, vector<128x128xbf16>, vector<32x128xf32> -> vector<32x128xf32>
    %92 = arith.addf %84, %91 : vector<32x128xf32>
    %c8 = arith.constant 8 : index
    %c0_70 = arith.constant 0 : index
    %c0_71 = arith.constant 0 : index
    %93 = vector.load %arg4[%c8, %c0_70, %c0_71] : memref<9x32x128xbf16, #tpu.memory_space<vmem>>, vector<1x32x128xbf16>
    %94 = vector.shape_cast %93 : vector<1x32x128xbf16> to vector<32x128xbf16>
    %cst_72 = arith.constant dense<0.000000e+00> : vector<32x128xf32>
    %95 = tpu.matmul %94, %29, %cst_72 {dimension_numbers = #tpu.dot_dimension_numbers<[1], [0], [0], [1], [0, 0, 1, 1], [], []>} : vector<32x128xbf16>, vector<128x128xbf16>, vector<32x128xf32> -> vector<32x128xf32>
    %96 = arith.truncf %95 : vector<32x128xf32> to vector<32x128xbf16>
    %c8_73 = arith.constant 8 : index
    %c0_74 = arith.constant 0 : index
    %c0_75 = arith.constant 0 : index
    %97 = vector.load %arg5[%c8_73, %c0_74, %c0_75] : memref<9x128x128xbf16, #tpu.memory_space<vmem>>, vector<1x128x128xbf16>
    %98 = vector.shape_cast %97 : vector<1x128x128xbf16> to vector<128x128xbf16>
    %cst_76 = arith.constant dense<0.000000e+00> : vector<32x128xf32>
    %99 = tpu.matmul %96, %98, %cst_76 {dimension_numbers = #tpu.dot_dimension_numbers<[1], [0], [0], [1], [0, 0, 1, 1], [], []>} : vector<32x128xbf16>, vector<128x128xbf16>, vector<32x128xf32> -> vector<32x128xf32>
    %100 = arith.addf %92, %99 : vector<32x128xf32>
    %c0_77 = arith.constant 0 : index
    %c0_78 = arith.constant 0 : index
    %101 = vector.load %arg6[%c0_77, %c0_78] : memref<1x128xf32, #tpu.memory_space<vmem>>, vector<1x128xf32>
    %c0_79 = arith.constant 0 : index
    %c0_80 = arith.constant 0 : index
    %102 = vector.load %arg7[%c0_79, %c0_80] : memref<1x128xf32, #tpu.memory_space<vmem>>, vector<1x128xf32>
    %cst_81 = arith.constant dense<0.000000e+00> : vector<128xf32>
    %103 = vector.multi_reduction <add>, %100, %cst_81 [0] : vector<32x128xf32> to vector<128xf32>
    %104 = vector.shape_cast %103 : vector<128xf32> to vector<1x128xf32>
    %cst_82 = arith.constant 3.200000e+01 : f32
    %105 = vector.broadcast %cst_82 : f32 to vector<1x128xf32>
    %106 = arith.divf %104, %105 : vector<1x128xf32>
    %107 = vector.broadcast %106 : vector<1x128xf32> to vector<32x128xf32>
    %108 = arith.subf %100, %107 : vector<32x128xf32>
    %109 = arith.mulf %108, %108 : vector<32x128xf32>
    %cst_83 = arith.constant dense<0.000000e+00> : vector<128xf32>
    %110 = vector.multi_reduction <add>, %109, %cst_83 [0] : vector<32x128xf32> to vector<128xf32>
    %111 = vector.shape_cast %110 : vector<128xf32> to vector<1x128xf32>
    %cst_84 = arith.constant 3.200000e+01 : f32
    %112 = vector.broadcast %cst_84 : f32 to vector<1x128xf32>
    %113 = arith.divf %111, %112 : vector<1x128xf32>
    %cst_85 = arith.constant 9.99999974E-6 : f32
    %114 = vector.broadcast %cst_85 : f32 to vector<1x128xf32>
    %115 = arith.addf %113, %114 : vector<1x128xf32>
    %116 = math.rsqrt %115 : vector<1x128xf32>
    %117 = vector.broadcast %106 : vector<1x128xf32> to vector<32x128xf32>
    %118 = arith.subf %100, %117 : vector<32x128xf32>
    %119 = vector.broadcast %116 : vector<1x128xf32> to vector<32x128xf32>
    %120 = arith.mulf %118, %119 : vector<32x128xf32>
    %121 = vector.broadcast %101 : vector<1x128xf32> to vector<32x128xf32>
    %122 = arith.mulf %120, %121 : vector<32x128xf32>
    %123 = vector.broadcast %102 : vector<1x128xf32> to vector<32x128xf32>
    %124 = arith.addf %122, %123 : vector<32x128xf32>
    %cst_86 = arith.constant 0.000000e+00 : f32
    %125 = vector.broadcast %cst_86 : f32 to vector<32x128xf32>
    %126 = arith.maximumf %124, %125 : vector<32x128xf32>
    %127 = arith.truncf %126 : vector<32x128xf32> to vector<32x128xbf16>
    %c0_87 = arith.constant 0 : index
    %c0_88 = arith.constant 0 : index
    %c0_89 = arith.constant 0 : index
    %128 = vector.load %arg8[%c0_87, %c0_88, %c0_89] : memref<9x8x32xbf16, #tpu.memory_space<vmem>>, vector<1x8x32xbf16>
    %129 = vector.shape_cast %128 : vector<1x8x32xbf16> to vector<8x32xbf16>
    %cst_90 = arith.constant dense<0.000000e+00> : vector<8x128xf32>
    %130 = tpu.matmul %129, %127, %cst_90 {dimension_numbers = #tpu.dot_dimension_numbers<[1], [0], [0], [1], [0, 0, 1, 1], [], []>} : vector<8x32xbf16>, vector<32x128xbf16>, vector<8x128xf32> -> vector<8x128xf32>
    %131 = arith.truncf %130 : vector<8x128xf32> to vector<8x128xbf16>
    %c0_91 = arith.constant 0 : index
    %c0_92 = arith.constant 0 : index
    %c0_93 = arith.constant 0 : index
    %132 = vector.load %arg9[%c0_91, %c0_92, %c0_93] : memref<9x128x128xbf16, #tpu.memory_space<vmem>>, vector<1x128x128xbf16>
    %133 = vector.shape_cast %132 : vector<1x128x128xbf16> to vector<128x128xbf16>
    %cst_94 = arith.constant dense<0.000000e+00> : vector<8x128xf32>
    %134 = tpu.matmul %131, %133, %cst_94 {dimension_numbers = #tpu.dot_dimension_numbers<[1], [0], [0], [1], [0, 0, 1, 1], [], []>} : vector<8x128xbf16>, vector<128x128xbf16>, vector<8x128xf32> -> vector<8x128xf32>
    %c1_95 = arith.constant 1 : index
    %c0_96 = arith.constant 0 : index
    %c0_97 = arith.constant 0 : index
    %135 = vector.load %arg8[%c1_95, %c0_96, %c0_97] : memref<9x8x32xbf16, #tpu.memory_space<vmem>>, vector<1x8x32xbf16>
    %136 = vector.shape_cast %135 : vector<1x8x32xbf16> to vector<8x32xbf16>
    %cst_98 = arith.constant dense<0.000000e+00> : vector<8x128xf32>
    %137 = tpu.matmul %136, %127, %cst_98 {dimension_numbers = #tpu.dot_dimension_numbers<[1], [0], [0], [1], [0, 0, 1, 1], [], []>} : vector<8x32xbf16>, vector<32x128xbf16>, vector<8x128xf32> -> vector<8x128xf32>
    %138 = arith.truncf %137 : vector<8x128xf32> to vector<8x128xbf16>
    %c1_99 = arith.constant 1 : index
    %c0_100 = arith.constant 0 : index
    %c0_101 = arith.constant 0 : index
    %139 = vector.load %arg9[%c1_99, %c0_100, %c0_101] : memref<9x128x128xbf16, #tpu.memory_space<vmem>>, vector<1x128x128xbf16>
    %140 = vector.shape_cast %139 : vector<1x128x128xbf16> to vector<128x128xbf16>
    %cst_102 = arith.constant dense<0.000000e+00> : vector<8x128xf32>
    %141 = tpu.matmul %138, %140, %cst_102 {dimension_numbers = #tpu.dot_dimension_numbers<[1], [0], [0], [1], [0, 0, 1, 1], [], []>} : vector<8x128xbf16>, vector<128x128xbf16>, vector<8x128xf32> -> vector<8x128xf32>
    %142 = arith.addf %134, %141 : vector<8x128xf32>
    %c2_103 = arith.constant 2 : index
    %c0_104 = arith.constant 0 : index
    %c0_105 = arith.constant 0 : index
    %143 = vector.load %arg8[%c2_103, %c0_104, %c0_105] : memref<9x8x32xbf16, #tpu.memory_space<vmem>>, vector<1x8x32xbf16>
    %144 = vector.shape_cast %143 : vector<1x8x32xbf16> to vector<8x32xbf16>
    %cst_106 = arith.constant dense<0.000000e+00> : vector<8x128xf32>
    %145 = tpu.matmul %144, %127, %cst_106 {dimension_numbers = #tpu.dot_dimension_numbers<[1], [0], [0], [1], [0, 0, 1, 1], [], []>} : vector<8x32xbf16>, vector<32x128xbf16>, vector<8x128xf32> -> vector<8x128xf32>
    %146 = arith.truncf %145 : vector<8x128xf32> to vector<8x128xbf16>
    %c2_107 = arith.constant 2 : index
    %c0_108 = arith.constant 0 : index
    %c0_109 = arith.constant 0 : index
    %147 = vector.load %arg9[%c2_107, %c0_108, %c0_109] : memref<9x128x128xbf16, #tpu.memory_space<vmem>>, vector<1x128x128xbf16>
    %148 = vector.shape_cast %147 : vector<1x128x128xbf16> to vector<128x128xbf16>
    %cst_110 = arith.constant dense<0.000000e+00> : vector<8x128xf32>
    %149 = tpu.matmul %146, %148, %cst_110 {dimension_numbers = #tpu.dot_dimension_numbers<[1], [0], [0], [1], [0, 0, 1, 1], [], []>} : vector<8x128xbf16>, vector<128x128xbf16>, vector<8x128xf32> -> vector<8x128xf32>
    %150 = arith.addf %142, %149 : vector<8x128xf32>
    %c3_111 = arith.constant 3 : index
    %c0_112 = arith.constant 0 : index
    %c0_113 = arith.constant 0 : index
    %151 = vector.load %arg8[%c3_111, %c0_112, %c0_113] : memref<9x8x32xbf16, #tpu.memory_space<vmem>>, vector<1x8x32xbf16>
    %152 = vector.shape_cast %151 : vector<1x8x32xbf16> to vector<8x32xbf16>
    %cst_114 = arith.constant dense<0.000000e+00> : vector<8x128xf32>
    %153 = tpu.matmul %152, %127, %cst_114 {dimension_numbers = #tpu.dot_dimension_numbers<[1], [0], [0], [1], [0, 0, 1, 1], [], []>} : vector<8x32xbf16>, vector<32x128xbf16>, vector<8x128xf32> -> vector<8x128xf32>
    %154 = arith.truncf %153 : vector<8x128xf32> to vector<8x128xbf16>
    %c3_115 = arith.constant 3 : index
    %c0_116 = arith.constant 0 : index
    %c0_117 = arith.constant 0 : index
    %155 = vector.load %arg9[%c3_115, %c0_116, %c0_117] : memref<9x128x128xbf16, #tpu.memory_space<vmem>>, vector<1x128x128xbf16>
    %156 = vector.shape_cast %155 : vector<1x128x128xbf16> to vector<128x128xbf16>
    %cst_118 = arith.constant dense<0.000000e+00> : vector<8x128xf32>
    %157 = tpu.matmul %154, %156, %cst_118 {dimension_numbers = #tpu.dot_dimension_numbers<[1], [0], [0], [1], [0, 0, 1, 1], [], []>} : vector<8x128xbf16>, vector<128x128xbf16>, vector<8x128xf32> -> vector<8x128xf32>
    %158 = arith.addf %150, %157 : vector<8x128xf32>
    %c4_119 = arith.constant 4 : index
    %c0_120 = arith.constant 0 : index
    %c0_121 = arith.constant 0 : index
    %159 = vector.load %arg8[%c4_119, %c0_120, %c0_121] : memref<9x8x32xbf16, #tpu.memory_space<vmem>>, vector<1x8x32xbf16>
    %160 = vector.shape_cast %159 : vector<1x8x32xbf16> to vector<8x32xbf16>
    %cst_122 = arith.constant dense<0.000000e+00> : vector<8x128xf32>
    %161 = tpu.matmul %160, %127, %cst_122 {dimension_numbers = #tpu.dot_dimension_numbers<[1], [0], [0], [1], [0, 0, 1, 1], [], []>} : vector<8x32xbf16>, vector<32x128xbf16>, vector<8x128xf32> -> vector<8x128xf32>
    %162 = arith.truncf %161 : vector<8x128xf32> to vector<8x128xbf16>
    %c4_123 = arith.constant 4 : index
    %c0_124 = arith.constant 0 : index
    %c0_125 = arith.constant 0 : index
    %163 = vector.load %arg9[%c4_123, %c0_124, %c0_125] : memref<9x128x128xbf16, #tpu.memory_space<vmem>>, vector<1x128x128xbf16>
    %164 = vector.shape_cast %163 : vector<1x128x128xbf16> to vector<128x128xbf16>
    %cst_126 = arith.constant dense<0.000000e+00> : vector<8x128xf32>
    %165 = tpu.matmul %162, %164, %cst_126 {dimension_numbers = #tpu.dot_dimension_numbers<[1], [0], [0], [1], [0, 0, 1, 1], [], []>} : vector<8x128xbf16>, vector<128x128xbf16>, vector<8x128xf32> -> vector<8x128xf32>
    %166 = arith.addf %158, %165 : vector<8x128xf32>
    %c5_127 = arith.constant 5 : index
    %c0_128 = arith.constant 0 : index
    %c0_129 = arith.constant 0 : index
    %167 = vector.load %arg8[%c5_127, %c0_128, %c0_129] : memref<9x8x32xbf16, #tpu.memory_space<vmem>>, vector<1x8x32xbf16>
    %168 = vector.shape_cast %167 : vector<1x8x32xbf16> to vector<8x32xbf16>
    %cst_130 = arith.constant dense<0.000000e+00> : vector<8x128xf32>
    %169 = tpu.matmul %168, %127, %cst_130 {dimension_numbers = #tpu.dot_dimension_numbers<[1], [0], [0], [1], [0, 0, 1, 1], [], []>} : vector<8x32xbf16>, vector<32x128xbf16>, vector<8x128xf32> -> vector<8x128xf32>
    %170 = arith.truncf %169 : vector<8x128xf32> to vector<8x128xbf16>
    %c5_131 = arith.constant 5 : index
    %c0_132 = arith.constant 0 : index
    %c0_133 = arith.constant 0 : index
    %171 = vector.load %arg9[%c5_131, %c0_132, %c0_133] : memref<9x128x128xbf16, #tpu.memory_space<vmem>>, vector<1x128x128xbf16>
    %172 = vector.shape_cast %171 : vector<1x128x128xbf16> to vector<128x128xbf16>
    %cst_134 = arith.constant dense<0.000000e+00> : vector<8x128xf32>
    %173 = tpu.matmul %170, %172, %cst_134 {dimension_numbers = #tpu.dot_dimension_numbers<[1], [0], [0], [1], [0, 0, 1, 1], [], []>} : vector<8x128xbf16>, vector<128x128xbf16>, vector<8x128xf32> -> vector<8x128xf32>
    %174 = arith.addf %166, %173 : vector<8x128xf32>
    %c6_135 = arith.constant 6 : index
    %c0_136 = arith.constant 0 : index
    %c0_137 = arith.constant 0 : index
    %175 = vector.load %arg8[%c6_135, %c0_136, %c0_137] : memref<9x8x32xbf16, #tpu.memory_space<vmem>>, vector<1x8x32xbf16>
    %176 = vector.shape_cast %175 : vector<1x8x32xbf16> to vector<8x32xbf16>
    %cst_138 = arith.constant dense<0.000000e+00> : vector<8x128xf32>
    %177 = tpu.matmul %176, %127, %cst_138 {dimension_numbers = #tpu.dot_dimension_numbers<[1], [0], [0], [1], [0, 0, 1, 1], [], []>} : vector<8x32xbf16>, vector<32x128xbf16>, vector<8x128xf32> -> vector<8x128xf32>
    %178 = arith.truncf %177 : vector<8x128xf32> to vector<8x128xbf16>
    %c6_139 = arith.constant 6 : index
    %c0_140 = arith.constant 0 : index
    %c0_141 = arith.constant 0 : index
    %179 = vector.load %arg9[%c6_139, %c0_140, %c0_141] : memref<9x128x128xbf16, #tpu.memory_space<vmem>>, vector<1x128x128xbf16>
    %180 = vector.shape_cast %179 : vector<1x128x128xbf16> to vector<128x128xbf16>
    %cst_142 = arith.constant dense<0.000000e+00> : vector<8x128xf32>
    %181 = tpu.matmul %178, %180, %cst_142 {dimension_numbers = #tpu.dot_dimension_numbers<[1], [0], [0], [1], [0, 0, 1, 1], [], []>} : vector<8x128xbf16>, vector<128x128xbf16>, vector<8x128xf32> -> vector<8x128xf32>
    %182 = arith.addf %174, %181 : vector<8x128xf32>
    %c7_143 = arith.constant 7 : index
    %c0_144 = arith.constant 0 : index
    %c0_145 = arith.constant 0 : index
    %183 = vector.load %arg8[%c7_143, %c0_144, %c0_145] : memref<9x8x32xbf16, #tpu.memory_space<vmem>>, vector<1x8x32xbf16>
    %184 = vector.shape_cast %183 : vector<1x8x32xbf16> to vector<8x32xbf16>
    %cst_146 = arith.constant dense<0.000000e+00> : vector<8x128xf32>
    %185 = tpu.matmul %184, %127, %cst_146 {dimension_numbers = #tpu.dot_dimension_numbers<[1], [0], [0], [1], [0, 0, 1, 1], [], []>} : vector<8x32xbf16>, vector<32x128xbf16>, vector<8x128xf32> -> vector<8x128xf32>
    %186 = arith.truncf %185 : vector<8x128xf32> to vector<8x128xbf16>
    %c7_147 = arith.constant 7 : index
    %c0_148 = arith.constant 0 : index
    %c0_149 = arith.constant 0 : index
    %187 = vector.load %arg9[%c7_147, %c0_148, %c0_149] : memref<9x128x128xbf16, #tpu.memory_space<vmem>>, vector<1x128x128xbf16>
    %188 = vector.shape_cast %187 : vector<1x128x128xbf16> to vector<128x128xbf16>
    %cst_150 = arith.constant dense<0.000000e+00> : vector<8x128xf32>
    %189 = tpu.matmul %186, %188, %cst_150 {dimension_numbers = #tpu.dot_dimension_numbers<[1], [0], [0], [1], [0, 0, 1, 1], [], []>} : vector<8x128xbf16>, vector<128x128xbf16>, vector<8x128xf32> -> vector<8x128xf32>
    %190 = arith.addf %182, %189 : vector<8x128xf32>
    %c8_151 = arith.constant 8 : index
    %c0_152 = arith.constant 0 : index
    %c0_153 = arith.constant 0 : index
    %191 = vector.load %arg8[%c8_151, %c0_152, %c0_153] : memref<9x8x32xbf16, #tpu.memory_space<vmem>>, vector<1x8x32xbf16>
    %192 = vector.shape_cast %191 : vector<1x8x32xbf16> to vector<8x32xbf16>
    %cst_154 = arith.constant dense<0.000000e+00> : vector<8x128xf32>
    %193 = tpu.matmul %192, %127, %cst_154 {dimension_numbers = #tpu.dot_dimension_numbers<[1], [0], [0], [1], [0, 0, 1, 1], [], []>} : vector<8x32xbf16>, vector<32x128xbf16>, vector<8x128xf32> -> vector<8x128xf32>
    %194 = arith.truncf %193 : vector<8x128xf32> to vector<8x128xbf16>
    %c8_155 = arith.constant 8 : index
    %c0_156 = arith.constant 0 : index
    %c0_157 = arith.constant 0 : index
    %195 = vector.load %arg9[%c8_155, %c0_156, %c0_157] : memref<9x128x128xbf16, #tpu.memory_space<vmem>>, vector<1x128x128xbf16>
    %196 = vector.shape_cast %195 : vector<1x128x128xbf16> to vector<128x128xbf16>
    %cst_158 = arith.constant dense<0.000000e+00> : vector<8x128xf32>
    %197 = tpu.matmul %194, %196, %cst_158 {dimension_numbers = #tpu.dot_dimension_numbers<[1], [0], [0], [1], [0, 0, 1, 1], [], []>} : vector<8x128xbf16>, vector<128x128xbf16>, vector<8x128xf32> -> vector<8x128xf32>
    %198 = arith.addf %190, %197 : vector<8x128xf32>
    %c0_159 = arith.constant 0 : index
    %c0_160 = arith.constant 0 : index
    %199 = vector.load %arg10[%c0_159, %c0_160] : memref<1x128xf32, #tpu.memory_space<vmem>>, vector<1x128xf32>
    %200 = vector.broadcast %199 : vector<1x128xf32> to vector<8x128xf32>
    %201 = arith.addf %198, %200 : vector<8x128xf32>
    %c0_161 = arith.constant 0 : index
    %c0_162 = arith.constant 0 : index
    %202 = vector.load %arg11[%c0_161, %c0_162] : memref<8x128xf32, #tpu.memory_space<vmem>>, vector<8x128xf32>
    tpu.vector_store %arg11[%c0_161, %c0_162], %201 {strides = array<i32>} : memref<8x128xf32, #tpu.memory_space<vmem>>, vector<8x128xf32>,
    return
  }
}

</mosaic_0001>

<llo_original>
// kernel: encoder_forward.1
$region0: #{encoder_forward.1}
  #allocation0 [shape = 'u32[]', space=smem, size = 0x4, offset = 0x4, fixed_abs, tag = 'smem constant byte address 0x4 - core index']
  #allocation1 [shape = 'u32[144,128]{1,0:T(1,128)}', space=vmem, size = 0x12000, scoped, tag = 'internal scratch']
  %s0 = inlined_call_operand.vmem [shape: bf16[128,128], index: 0, kind: input, shape index: {}]
  %s1 = inlined_call_operand.vmem [shape: bf16[128,128], index: 1, kind: input, shape index: {}]
  %s2 = inlined_call_operand.vmem [shape: f32[1,128], index: 2, kind: input, shape index: {}]
  %s3 = inlined_call_operand.vmem [shape: f32[1,128], index: 3, kind: input, shape index: {}]
  %s4 = inlined_call_operand.vmem [shape: bf16[9,32,128], index: 4, kind: input, shape index: {}]
  %s5 = inlined_call_operand.vmem [shape: bf16[9,128,128], index: 5, kind: input, shape index: {}]
  %s6 = inlined_call_operand.vmem [shape: f32[1,128], index: 6, kind: input, shape index: {}]
  %s7 = inlined_call_operand.vmem [shape: f32[1,128], index: 7, kind: input, shape index: {}]
  %s8 = inlined_call_operand.vmem [shape: bf16[9,8,32], index: 8, kind: input, shape index: {}]
  %s9 = inlined_call_operand.vmem [shape: bf16[9,128,128], index: 9, kind: input, shape index: {}]
  %s10 = inlined_call_operand.vmem [shape: f32[1,128], index: 10, kind: input, shape index: {}]
  %s11 = inlined_call_operand.hbm [shape: f32[8,128], index: 11, kind: output, shape index: {}]
  %s12 = sld [smem:[#allocation0]]
  $region54: #{encoder_forward.1} parent=0
    _
  %s14 = ssub.s32 1, %s12
  %s15 = scalar_select 0, %s14, %s12
  $region1: #{encoder_forward.1} parent=0
    #allocation2 [shape = 'u8[4096]{0}', space=vmem, size = 0x1000, scoped, tag = 'output window, operand 0, single buffered']
    #allocation3 [shape = 's32[1]{0}', space=sflag, size = 0x4, scoped, tag = 'scoped memory for encoder_forward.1']
    %16 = vsyncpa [#allocation3], 0
    // Predicated region
    $region2: #{encoder_forward.1} parent=1 // pred_check
      _
    $region3: #{encoder_forward.1} parent=1 // pred_check_branch
      %18 = sbr.rel (0) target = $region5
    $region4: #{encoder_forward.1} parent=1 // pred_region
      _
    $region5: #{encoder_forward.1} parent=1 // pred_fallthru
      _
    // Predicated region
    $region6: #{encoder_forward.1} parent=1 // pred_check
      _
    $region7: #{encoder_forward.1} parent=1 // pred_check_branch
      %20 = sbr.rel (0) target = $region9
    $region8: #{encoder_forward.1} parent=1 // pred_region
      _
    $region9: #{encoder_forward.1} parent=1 // pred_fallthru
      _
    // Predicated region
    $region10: #{encoder_forward.1} parent=1 // pred_check
      _
    $region11: #{encoder_forward.1} parent=1 // pred_check_branch
      %22 = sbr.rel (0) target = $region13
    $region12: #{encoder_forward.1} parent=1 // pred_region
      _
    $region13: #{encoder_forward.1} parent=1 // pred_fallthru
      _
    // Predicated region
    $region14: #{encoder_forward.1} parent=1 // pred_check
      _
    $region15: #{encoder_forward.1} parent=1 // pred_check_branch
      %24 = sbr.rel (0) target = $region17
    $region16: #{encoder_forward.1} parent=1 // pred_region
      _
    $region17: #{encoder_forward.1} parent=1 // pred_fallthru
      _
    // Predicated region
    $region18: #{encoder_forward.1} parent=1 // pred_check
      _
    $region19: #{encoder_forward.1} parent=1 // pred_check_branch
      %26 = sbr.rel (0) target = $region21
    $region20: #{encoder_forward.1} parent=1 // pred_region
      _
    $region21: #{encoder_forward.1} parent=1 // pred_fallthru
      _
    // Predicated region
    $region22: #{encoder_forward.1} parent=1 // pred_check
      _
    $region23: #{encoder_forward.1} parent=1 // pred_check_branch
      %28 = sbr.rel (0) target = $region25
    $region24: #{encoder_forward.1} parent=1 // pred_region
      _
    $region25: #{encoder_forward.1} parent=1 // pred_fallthru
      _
    // Predicated region
    $region26: #{encoder_forward.1} parent=1 // pred_check
      _
    $region27: #{encoder_forward.1} parent=1 // pred_check_branch
      %30 = sbr.rel (0) target = $region29
    $region28: #{encoder_forward.1} parent=1 // pred_region
      _
    $region29: #{encoder_forward.1} parent=1 // pred_fallthru
      _
    // Predicated region
    $region30: #{encoder_forward.1} parent=1 // pred_check
      _
    $region31: #{encoder_forward.1} parent=1 // pred_check_branch
      %32 = sbr.rel (0) target = $region33
    $region32: #{encoder_forward.1} parent=1 // pred_region
      _
    $region33: #{encoder_forward.1} parent=1 // pred_fallthru
      _
    // Predicated region
    $region34: #{encoder_forward.1} parent=1 // pred_check
      _
    $region35: #{encoder_forward.1} parent=1 // pred_check_branch
      %34 = sbr.rel (0) target = $region37
    $region36: #{encoder_forward.1} parent=1 // pred_region
      _
    $region37: #{encoder_forward.1} parent=1 // pred_fallthru
      _
    // Predicated region
    $region38: #{encoder_forward.1} parent=1 // pred_check
      _
    $region39: #{encoder_forward.1} parent=1 // pred_check_branch
      %36 = sbr.rel (0) target = $region41
    $region40: #{encoder_forward.1} parent=1 // pred_region
      _
    $region41: #{encoder_forward.1} parent=1 // pred_fallthru
      _
    // Predicated region
    $region42: #{encoder_forward.1} parent=1 // pred_check
      _
    $region43: #{encoder_forward.1} parent=1 // pred_check_branch
      %38 = sbr.rel (0) target = $region45
    $region44: #{encoder_forward.1} parent=1 // pred_region
      _
    $region45: #{encoder_forward.1} parent=1 // pred_fallthru
      _
    %v40 = vld [vmem:[%s0] sm:$0xf]
    %v41 = vld [vmem:[%s0 + $0x4] sm:$0xf]
    %v42 = vld [vmem:[%s0 + $0x8] sm:$0xf]
    %v43 = vld [vmem:[%s0 + $0xc] sm:$0xf]
    %v44 = vld [vmem:[%s0 + $0x10] sm:$0xf]
    %v45 = vld [vmem:[%s0 + $0x14] sm:$0xf]
    %v46 = vld [vmem:[%s0 + $0x18] sm:$0xf]
    %v47 = vld [vmem:[%s0 + $0x1c] sm:$0xf]
    %v48 = vld [vmem:[%s0 + $0x20] sm:$0xf]
    %v49 = vld [vmem:[%s0 + $0x24] sm:$0xf]
    %v50 = vld [vmem:[%s0 + $0x28] sm:$0xf]
    %v51 = vld [vmem:[%s0 + $0x2c] sm:$0xf]
    %v52 = vld [vmem:[%s0 + $0x30] sm:$0xf]
    %v53 = vld [vmem:[%s0 + $0x34] sm:$0xf]
    %v54 = vld [vmem:[%s0 + $0x38] sm:$0xf]
    %v55 = vld [vmem:[%s0 + $0x3c] sm:$0xf]
    %v56 = vld [vmem:[%s1] sm:$0xf]
    %v57 = vld [vmem:[%s1 + $0x4] sm:$0xf]
    %v58 = vld [vmem:[%s1 + $0x8] sm:$0xf]
    %v59 = vld [vmem:[%s1 + $0xc] sm:$0xf]
    %v60 = vld [vmem:[%s1 + $0x10] sm:$0xf]
    %v61 = vld [vmem:[%s1 + $0x14] sm:$0xf]
    %v62 = vld [vmem:[%s1 + $0x18] sm:$0xf]
    %v63 = vld [vmem:[%s1 + $0x1c] sm:$0xf]
    %v64 = vld [vmem:[%s1 + $0x20] sm:$0xf]
    %v65 = vld [vmem:[%s1 + $0x24] sm:$0xf]
    %v66 = vld [vmem:[%s1 + $0x28] sm:$0xf]
    %v67 = vld [vmem:[%s1 + $0x2c] sm:$0xf]
    %v68 = vld [vmem:[%s1 + $0x30] sm:$0xf]
    %v69 = vld [vmem:[%s1 + $0x34] sm:$0xf]
    %v70 = vld [vmem:[%s1 + $0x38] sm:$0xf]
    %v71 = vld [vmem:[%s1 + $0x3c] sm:$0xf]
    %v88 = vunpack.c.l.b16 %v40
    %v89 = vunpack.c.l.b16 %v41
    %v90 = vunpack.c.l.b16 %v42
    %v91 = vunpack.c.l.b16 %v43
    %v92 = vunpack.c.l.b16 %v44
    %v93 = vunpack.c.l.b16 %v45
    %v94 = vunpack.c.l.b16 %v46
    %v95 = vunpack.c.l.b16 %v47
    %v96 = vunpack.c.l.b16 %v48
    %v97 = vunpack.c.l.b16 %v49
    %v98 = vunpack.c.l.b16 %v50
    %v99 = vunpack.c.l.b16 %v51
    %v100 = vunpack.c.l.b16 %v52
    %v101 = vunpack.c.l.b16 %v53
    %v102 = vunpack.c.l.b16 %v54
    %v103 = vunpack.c.l.b16 %v55
    %v104 = vpack.c.b16 %v89, %v88
    %v105 = vpack.c.b16 %v91, %v90
    %v106 = vpack.c.b16 %v93, %v92
    %v107 = vpack.c.b16 %v95, %v94
    %v108 = vpack.c.b16 %v97, %v96
    %v109 = vpack.c.b16 %v99, %v98
    %v110 = vpack.c.b16 %v101, %v100
    %v111 = vpack.c.b16 %v103, %v102
    %v136 = vunpack.c.l.b16 %v56
    %v137 = vunpack.c.l.b16 %v57
    %v138 = vunpack.c.l.b16 %v58
    %v139 = vunpack.c.l.b16 %v59
    %v140 = vunpack.c.l.b16 %v60
    %v141 = vunpack.c.l.b16 %v61
    %v142 = vunpack.c.l.b16 %v62
    %v143 = vunpack.c.l.b16 %v63
    %v144 = vunpack.c.l.b16 %v64
    %v145 = vunpack.c.l.b16 %v65
    %v146 = vunpack.c.l.b16 %v66
    %v147 = vunpack.c.l.b16 %v67
    %v148 = vunpack.c.l.b16 %v68
    %v149 = vunpack.c.l.b16 %v69
    %v150 = vunpack.c.l.b16 %v70
    %v151 = vunpack.c.l.b16 %v71
    %v152 = vpack.c.b16 %v137, %v136
    %v153 = vpack.c.b16 %v139, %v138
    %v154 = vpack.c.b16 %v141, %v140
    %v155 = vpack.c.b16 %v143, %v142
    %v156 = vpack.c.b16 %v145, %v144
    %v157 = vpack.c.b16 %v147, %v146
    %v158 = vpack.c.b16 %v149, %v148
    %v159 = vpack.c.b16 %v151, %v150
    %168 = vmatprep.subr.bf16.mxu0 0
    %169 = vmatpush1.bf16.msra.mxu0 %v152
    %170 = vmatprep.subr.bf16.mxu0 0
    %171 = vmatpush1.bf16.msra.mxu0 %v153
    %172 = vmatprep.subr.bf16.mxu0 0
    %173 = vmatpush1.bf16.msra.mxu0 %v154
    %174 = vmatprep.subr.bf16.mxu0 0
    %175 = vmatpush1.bf16.msra.mxu0 %v155
    %176 = vmatprep.subr.bf16.mxu0 0
    %177 = vmatpush1.bf16.msra.mxu0 %v156
    %178 = vmatprep.subr.bf16.mxu0 0
    %179 = vmatpush1.bf16.msra.mxu0 %v157
    %180 = vmatprep.subr.bf16.mxu0 0
    %181 = vmatpush1.bf16.msra.mxu0 %v158
    %182 = vmatprep.subr.bf16.mxu0 0
    %183 = vmatpush1.bf16.msra.mxu0 %v159
    %184 = vmatprep.subr.bf16.mxu0 0
    %185 = vmatpush1.bf16.msra.mxu0 0
    %186 = vmatprep.subr.bf16.mxu0 0
    %187 = vmatpush1.bf16.msra.mxu0 0
    %188 = vmatprep.subr.bf16.mxu0 0
    %189 = vmatpush1.bf16.msra.mxu0 0
    %190 = vmatprep.subr.bf16.mxu0 0
    %191 = vmatpush1.bf16.msra.mxu0 0
    %192 = vmatprep.subr.bf16.mxu0 0
    %193 = vmatpush1.bf16.msra.mxu0 0
    %194 = vmatprep.subr.bf16.mxu0 0
    %195 = vmatpush1.bf16.msra.mxu0 0
    %196 = vmatprep.subr.bf16.mxu0 0
    %197 = vmatpush1.bf16.msra.mxu0 0
    %198 = vmatprep.subr.bf16.mxu0 0
    %199 = vmatpush1.bf16.msra.mxu0 0
    %200 = vmatprep.mubr.bf16.mxu0 0
    %201 = vmatmul.mubr.bf16.gmra.mrb[0].mxu0 %v104
    %v202 = vpop.f32.mrb[0].mxu0
    %v203 = vadd.f32 0.0, %v202
    %v204 = vpop.f32.mrb[0].mxu0
    %v205 = vpop.f32.mrb[0].mxu0
    %v206 = vadd.f32 0.0, %v205
    %v207 = vpop.f32.mrb[0].mxu0
    %208 = vmatprep.mubr.bf16.mxu0 0
    %209 = vmatmul.mubr.bf16.gmra.mrb[0].mxu0 %v105
    %v210 = vpop.f32.mrb[0].mxu0
    %v211 = vadd.f32 0.0, %v210
    %v212 = vpop.f32.mrb[0].mxu0
    %v213 = vpop.f32.mrb[0].mxu0
    %v214 = vadd.f32 0.0, %v213
    %v215 = vpop.f32.mrb[0].mxu0
    %216 = vmatprep.mubr.bf16.mxu0 0
    %217 = vmatmul.mubr.bf16.gmra.mrb[0].mxu0 %v106
    %v218 = vpop.f32.mrb[0].mxu0
    %v219 = vadd.f32 0.0, %v218
    %v220 = vpop.f32.mrb[0].mxu0
    %v221 = vpop.f32.mrb[0].mxu0
    %v222 = vadd.f32 0.0, %v221
    %v223 = vpop.f32.mrb[0].mxu0
    %224 = vmatprep.mubr.bf16.mxu0 0
    %225 = vmatmul.mubr.bf16.gmra.mrb[0].mxu0 %v107
    %v226 = vpop.f32.mrb[0].mxu0
    %v227 = vadd.f32 0.0, %v226
    %v228 = vpop.f32.mrb[0].mxu0
    %v229 = vpop.f32.mrb[0].mxu0
    %v230 = vadd.f32 0.0, %v229
    %v231 = vpop.f32.mrb[0].mxu0
    %232 = vmatprep.mubr.bf16.mxu0 0
    %233 = vmatmul.mubr.bf16.gmra.mrb[0].mxu0 %v108
    %v234 = vpop.f32.mrb[0].mxu0
    %v235 = vadd.f32 0.0, %v234
    %v236 = vpop.f32.mrb[0].mxu0
    %v237 = vpop.f32.mrb[0].mxu0
    %v238 = vadd.f32 0.0, %v237
    %v239 = vpop.f32.mrb[0].mxu0
    %240 = vmatprep.mubr.bf16.mxu0 0
    %241 = vmatmul.mubr.bf16.gmra.mrb[0].mxu0 %v109
    %v242 = vpop.f32.mrb[0].mxu0
    %v243 = vadd.f32 0.0, %v242
    %v244 = vpop.f32.mrb[0].mxu0
    %v245 = vpop.f32.mrb[0].mxu0
    %v246 = vadd.f32 0.0, %v245
    %v247 = vpop.f32.mrb[0].mxu0
    %248 = vmatprep.mubr.bf16.mxu0 0
    %249 = vmatmul.mubr.bf16.gmra.mrb[0].mxu0 %v110
    %v250 = vpop.f32.mrb[0].mxu0
    %v251 = vadd.f32 0.0, %v250
    %v252 = vpop.f32.mrb[0].mxu0
    %v253 = vpop.f32.mrb[0].mxu0
    %v254 = vadd.f32 0.0, %v253
    %v255 = vpop.f32.mrb[0].mxu0
    %256 = vmatprep.mubr.bf16.mxu0 0
    %257 = vmatmul.mubr.bf16.gmra.mrb[0].mxu0 %v111
    %v258 = vpop.f32.mrb[0].mxu0
    %v259 = vadd.f32 0.0, %v258
    %v260 = vpop.f32.mrb[0].mxu0
    %v261 = vpop.f32.mrb[0].mxu0
    %v262 = vadd.f32 0.0, %v261
    %v263 = vpop.f32.mrb[0].mxu0
    %264 = vdwg.mxu0
    %v265 = vld [vmem:[%s2] sm:$0x1]
    %v266 = vld [vmem:[%s3] sm:$0x1]
    %v267 = vadd.f32 %v203, %v206
    %v268 = vadd.f32 %v267, %v211
    %v269 = vadd.f32 %v268, %v214
    %v270 = vadd.f32 %v269, %v219
    %v271 = vadd.f32 %v270, %v222
    %v272 = vadd.f32 %v271, %v227
    %v273 = vadd.f32 %v272, %v230
    %v274 = vadd.f32 %v273, %v235
    %v275 = vadd.f32 %v274, %v238
    %v276 = vadd.f32 %v275, %v243
    %v277 = vadd.f32 %v276, %v246
    %v278 = vadd.f32 %v277, %v251
    %v279 = vadd.f32 %v278, %v254
    %v280 = vadd.f32 %v279, %v259
    %v281 = vadd.f32 %v280, %v262
    %v282 = vrot.slane %v281, 4
    %v283 = vadd.f32 %v281, %v282
    %v284 = vrot.slane %v283, 2
    %v285 = vadd.f32 %v283, %v284
    %v286 = vrot.slane %v285, 1
    %v287 = vadd.f32 %v285, %v286
    %v288 = vrcp.pop 128.0
    %v289 = vmul.f32 %v287, %v288
    %v290 = vsub.f32 %v203, %v289
    %v291 = vsub.f32 %v206, %v289
    %v292 = vsub.f32 %v211, %v289
    %v293 = vsub.f32 %v214, %v289
    %v294 = vsub.f32 %v219, %v289
    %v295 = vsub.f32 %v222, %v289
    %v296 = vsub.f32 %v227, %v289
    %v297 = vsub.f32 %v230, %v289
    %v298 = vsub.f32 %v235, %v289
    %v299 = vsub.f32 %v238, %v289
    %v300 = vsub.f32 %v243, %v289
    %v301 = vsub.f32 %v246, %v289
    %v302 = vsub.f32 %v251, %v289
    %v303 = vsub.f32 %v254, %v289
    %v304 = vsub.f32 %v259, %v289
    %v305 = vsub.f32 %v262, %v289
    %v306 = vmul.f32 %v290, %v290
    %v307 = vmul.f32 %v291, %v291
    %v308 = vmul.f32 %v292, %v292
    %v309 = vmul.f32 %v293, %v293
    %v310 = vmul.f32 %v294, %v294
    %v311 = vmul.f32 %v295, %v295
    %v312 = vmul.f32 %v296, %v296
    %v313 = vmul.f32 %v297, %v297
    %v314 = vmul.f32 %v298, %v298
    %v315 = vmul.f32 %v299, %v299
    %v316 = vmul.f32 %v300, %v300
    %v317 = vmul.f32 %v301, %v301
    %v318 = vmul.f32 %v302, %v302
    %v319 = vmul.f32 %v303, %v303
    %v320 = vmul.f32 %v304, %v304
    %v321 = vmul.f32 %v305, %v305
    %v322 = vadd.f32 %v306, %v307
    %v323 = vadd.f32 %v322, %v308
    %v324 = vadd.f32 %v323, %v309
    %v325 = vadd.f32 %v324, %v310
    %v326 = vadd.f32 %v325, %v311
    %v327 = vadd.f32 %v326, %v312
    %v328 = vadd.f32 %v327, %v313
    %v329 = vadd.f32 %v328, %v314
    %v330 = vadd.f32 %v329, %v315
    %v331 = vadd.f32 %v330, %v316
    %v332 = vadd.f32 %v331, %v317
    %v333 = vadd.f32 %v332, %v318
    %v334 = vadd.f32 %v333, %v319
    %v335 = vadd.f32 %v334, %v320
    %v336 = vadd.f32 %v335, %v321
    %v337 = vrot.slane %v336, 4
    %v338 = vadd.f32 %v336, %v337
    %v339 = vrot.slane %v338, 2
    %v340 = vadd.f32 %v338, %v339
    %v341 = vrot.slane %v340, 1
    %v342 = vadd.f32 %v340, %v341
    %v343 = vmul.f32 %v342, %v288
    %v344 = vadd.f32 %v343, 1e-05
    %v345 = vrsqrt.pop %v344
    %v346 = vmul.f32 %v290, %v345
    %v347 = vmul.f32 %v291, %v345
    %v348 = vmul.f32 %v292, %v345
    %v349 = vmul.f32 %v293, %v345
    %v350 = vmul.f32 %v294, %v345
    %v351 = vmul.f32 %v295, %v345
    %v352 = vmul.f32 %v296, %v345
    %v353 = vmul.f32 %v297, %v345
    %v354 = vmul.f32 %v298, %v345
    %v355 = vmul.f32 %v299, %v345
    %v356 = vmul.f32 %v300, %v345
    %v357 = vmul.f32 %v301, %v345
    %v358 = vmul.f32 %v302, %v345
    %v359 = vmul.f32 %v303, %v345
    %v360 = vmul.f32 %v304, %v345
    %v361 = vmul.f32 %v305, %v345
    %v363 = vlaneseq
    %v364 = vshrl.u32 %v363, 7
    %v365 = vsub.s32 0, %v364
    %v366 = vrot.slane %v265, %v365
    %v368 = vmul.f32 %v346, %v366
    %v369 = vmul.f32 %v347, %v366
    %v370 = vmul.f32 %v348, %v366
    %v371 = vmul.f32 %v349, %v366
    %v372 = vmul.f32 %v350, %v366
    %v373 = vmul.f32 %v351, %v366
    %v374 = vmul.f32 %v352, %v366
    %v375 = vmul.f32 %v353, %v366
    %v376 = vmul.f32 %v354, %v366
    %v377 = vmul.f32 %v355, %v366
    %v378 = vmul.f32 %v356, %v366
    %v379 = vmul.f32 %v357, %v366
    %v380 = vmul.f32 %v358, %v366
    %v381 = vmul.f32 %v359, %v366
    %v382 = vmul.f32 %v360, %v366
    %v383 = vmul.f32 %v361, %v366
    %v385 = vlaneseq
    %v386 = vshrl.u32 %v385, 7
    %v387 = vsub.s32 0, %v386
    %v388 = vrot.slane %v266, %v387
    %v390 = vadd.f32 %v368, %v388
    %v391 = vadd.f32 %v369, %v388
    %v392 = vadd.f32 %v370, %v388
    %v393 = vadd.f32 %v371, %v388
    %v394 = vadd.f32 %v372, %v388
    %v395 = vadd.f32 %v373, %v388
    %v396 = vadd.f32 %v374, %v388
    %v397 = vadd.f32 %v375, %v388
    %v398 = vadd.f32 %v376, %v388
    %v399 = vadd.f32 %v377, %v388
    %v400 = vadd.f32 %v378, %v388
    %v401 = vadd.f32 %v379, %v388
    %v402 = vadd.f32 %v380, %v388
    %v403 = vadd.f32 %v381, %v388
    %v404 = vadd.f32 %v382, %v388
    %v405 = vadd.f32 %v383, %v388
    %v406 = vmax.f32 %v390, 0.0
    %v407 = vmax.f32 %v391, 0.0
    %v408 = vmax.f32 %v392, 0.0
    %v409 = vmax.f32 %v393, 0.0
    %v410 = vmax.f32 %v394, 0.0
    %v411 = vmax.f32 %v395, 0.0
    %v412 = vmax.f32 %v396, 0.0
    %v413 = vmax.f32 %v397, 0.0
    %v414 = vmax.f32 %v398, 0.0
    %v415 = vmax.f32 %v399, 0.0
    %v416 = vmax.f32 %v400, 0.0
    %v417 = vmax.f32 %v401, 0.0
    %v418 = vmax.f32 %v402, 0.0
    %v419 = vmax.f32 %v403, 0.0
    %v420 = vmax.f32 %v404, 0.0
    %v421 = vmax.f32 %v405, 0.0
    %v422 = vpack.c.bf16 %v407, %v406
    %v423 = vpack.c.bf16 %v409, %v408
    %v424 = vpack.c.bf16 %v411, %v410
    %v425 = vpack.c.bf16 %v413, %v412
    %v426 = vpack.c.bf16 %v415, %v414
    %v427 = vpack.c.bf16 %v417, %v416
    %v428 = vpack.c.bf16 %v419, %v418
    %v429 = vpack.c.bf16 %v421, %v420
    %v430 = vld [vmem:[%s4] sm:$0xf]
    %v431 = vld [vmem:[%s4 + $0x4] sm:$0xf]
    %v432 = vld [vmem:[%s4 + $0x8] sm:$0xf]
    %v433 = vld [vmem:[%s4 + $0xc] sm:$0xf]
    %v438 = vunpack.c.l.b16 %v430
    %v439 = vunpack.c.l.b16 %v431
    %v440 = vunpack.c.l.b16 %v432
    %v441 = vunpack.c.l.b16 %v433
    %v442 = vpack.c.b16 %v439, %v438
    %v443 = vpack.c.b16 %v441, %v440
    %446 = vmatprep.subr.bf16.mxu0 0
    %447 = vmatpush1.bf16.msra.mxu0 %v422
    %448 = vmatprep.subr.bf16.mxu0 0
    %449 = vmatpush1.bf16.msra.mxu0 %v423
    %450 = vmatprep.subr.bf16.mxu0 0
    %451 = vmatpush1.bf16.msra.mxu0 %v424
    %452 = vmatprep.subr.bf16.mxu0 0
    %453 = vmatpush1.bf16.msra.mxu0 %v425
    %454 = vmatprep.subr.bf16.mxu0 0
    %455 = vmatpush1.bf16.msra.mxu0 %v426
    %456 = vmatprep.subr.bf16.mxu0 0
    %457 = vmatpush1.bf16.msra.mxu0 %v427
    %458 = vmatprep.subr.bf16.mxu0 0
    %459 = vmatpush1.bf16.msra.mxu0 %v428
    %460 = vmatprep.subr.bf16.mxu0 0
    %461 = vmatpush1.bf16.msra.mxu0 %v429
    %462 = vmatprep.subr.bf16.mxu0 0
    %463 = vmatpush1.bf16.msra.mxu0 0
    %464 = vmatprep.subr.bf16.mxu0 0
    %465 = vmatpush1.bf16.msra.mxu0 0
    %466 = vmatprep.subr.bf16.mxu0 0
    %467 = vmatpush1.bf16.msra.mxu0 0
    %468 = vmatprep.subr.bf16.mxu0 0
    %469 = vmatpush1.bf16.msra.mxu0 0
    %470 = vmatprep.subr.bf16.mxu0 0
    %471 = vmatpush1.bf16.msra.mxu0 0
    %472 = vmatprep.subr.bf16.mxu0 0
    %473 = vmatpush1.bf16.msra.mxu0 0
    %474 = vmatprep.subr.bf16.mxu0 0
    %475 = vmatpush1.bf16.msra.mxu0 0
    %476 = vmatprep.subr.bf16.mxu0 0
    %477 = vmatpush1.bf16.msra.mxu0 0
    %478 = vmatprep.mubr.bf16.mxu0 0
    %479 = vmatmul.mubr.bf16.gmra.mrb[0].mxu0 %v442
    %v480 = vpop.f32.mrb[0].mxu0
    %v481 = vadd.f32 0.0, %v480
    %v482 = vpop.f32.mrb[0].mxu0
    %v483 = vpop.f32.mrb[0].mxu0
    %v484 = vadd.f32 0.0, %v483
    %v485 = vpop.f32.mrb[0].mxu0
    %486 = vmatprep.mubr.bf16.mxu0 0
    %487 = vmatmul.mubr.bf16.gmra.mrb[0].mxu0 %v443
    %v488 = vpop.f32.mrb[0].mxu0
    %v489 = vadd.f32 0.0, %v488
    %v490 = vpop.f32.mrb[0].mxu0
    %v491 = vpop.f32.mrb[0].mxu0
    %v492 = vadd.f32 0.0, %v491
    %v493 = vpop.f32.mrb[0].mxu0
    %494 = vdwg.mxu0
    %v495 = vpack.c.bf16 %v484, %v481
    %v496 = vpack.c.bf16 %v492, %v489
    %v497 = vld [vmem:[%s5] sm:$0xf]
    %v498 = vld [vmem:[%s5 + $0x4] sm:$0xf]
    %v499 = vld [vmem:[%s5 + $0x8] sm:$0xf]
    %v500 = vld [vmem:[%s5 + $0xc] sm:$0xf]
    %v501 = vld [vmem:[%s5 + $0x10] sm:$0xf]
    %v502 = vld [vmem:[%s5 + $0x14] sm:$0xf]
    %v503 = vld [vmem:[%s5 + $0x18] sm:$0xf]
    %v504 = vld [vmem:[%s5 + $0x1c] sm:$0xf]
    %v505 = vld [vmem:[%s5 + $0x20] sm:$0xf]
    %v506 = vld [vmem:[%s5 + $0x24] sm:$0xf]
    %v507 = vld [vmem:[%s5 + $0x28] sm:$0xf]
    %v508 = vld [vmem:[%s5 + $0x2c] sm:$0xf]
    %v509 = vld [vmem:[%s5 + $0x30] sm:$0xf]
    %v510 = vld [vmem:[%s5 + $0x34] sm:$0xf]
    %v511 = vld [vmem:[%s5 + $0x38] sm:$0xf]
    %v512 = vld [vmem:[%s5 + $0x3c] sm:$0xf]
    %s513 = scalar_lea.vmem %s4, 16
    %v514 = vld [vmem:[%s513] sm:$0xf]
    %v515 = vld [vmem:[%s513 + $0x4] sm:$0xf]
    %v516 = vld [vmem:[%s513 + $0x8] sm:$0xf]
    %v517 = vld [vmem:[%s513 + $0xc] sm:$0xf]
    %v522 = vunpack.c.l.b16 %v514
    %v523 = vunpack.c.l.b16 %v515
    %v524 = vunpack.c.l.b16 %v516
    %v525 = vunpack.c.l.b16 %v517
    %v526 = vpack.c.b16 %v523, %v522
    %v527 = vpack.c.b16 %v525, %v524
    %530 = vmatprep.subr.bf16.mxu0 0
    %531 = vmatpush1.bf16.msra.mxu0 %v422
    %532 = vmatprep.subr.bf16.mxu0 0
    %533 = vmatpush1.bf16.msra.mxu0 %v423
    %534 = vmatprep.subr.bf16.mxu0 0
    %535 = vmatpush1.bf16.msra.mxu0 %v424
    %536 = vmatprep.subr.bf16.mxu0 0
    %537 = vmatpush1.bf16.msra.mxu0 %v425
    %538 = vmatprep.subr.bf16.mxu0 0
    %539 = vmatpush1.bf16.msra.mxu0 %v426
    %540 = vmatprep.subr.bf16.mxu0 0
    %541 = vmatpush1.bf16.msra.mxu0 %v427
    %542 = vmatprep.subr.bf16.mxu0 0
    %543 = vmatpush1.bf16.msra.mxu0 %v428
    %544 = vmatprep.subr.bf16.mxu0 0
    %545 = vmatpush1.bf16.msra.mxu0 %v429
    %546 = vmatprep.subr.bf16.mxu0 0
    %547 = vmatpush1.bf16.msra.mxu0 0
    %548 = vmatprep.subr.bf16.mxu0 0
    %549 = vmatpush1.bf16.msra.mxu0 0
    %550 = vmatprep.subr.bf16.mxu0 0
    %551 = vmatpush1.bf16.msra.mxu0 0
    %552 = vmatprep.subr.bf16.mxu0 0
    %553 = vmatpush1.bf16.msra.mxu0 0
    %554 = vmatprep.subr.bf16.mxu0 0
    %555 = vmatpush1.bf16.msra.mxu0 0
    %556 = vmatprep.subr.bf16.mxu0 0
    %557 = vmatpush1.bf16.msra.mxu0 0
    %558 = vmatprep.subr.bf16.mxu0 0
    %559 = vmatpush1.bf16.msra.mxu0 0
    %560 = vmatprep.subr.bf16.mxu0 0
    %561 = vmatpush1.bf16.msra.mxu0 0
    %562 = vmatprep.mubr.bf16.mxu0 0
    %563 = vmatmul.mubr.bf16.gmra.mrb[0].mxu0 %v526
    %v564 = vpop.f32.mrb[0].mxu0
    %v565 = vadd.f32 0.0, %v564
    %v566 = vpop.f32.mrb[0].mxu0
    %v567 = vpop.f32.mrb[0].mxu0
    %v568 = vadd.f32 0.0, %v567
    %v569 = vpop.f32.mrb[0].mxu0
    %570 = vmatprep.mubr.bf16.mxu0 0
    %571 = vmatmul.mubr.bf16.gmra.mrb[0].mxu0 %v527
    %v572 = vpop.f32.mrb[0].mxu0
    %v573 = vadd.f32 0.0, %v572
    %v574 = vpop.f32.mrb[0].mxu0
    %v575 = vpop.f32.mrb[0].mxu0
    %v576 = vadd.f32 0.0, %v575
    %v577 = vpop.f32.mrb[0].mxu0
    %578 = vdwg.mxu0
    %v579 = vpack.c.bf16 %v568, %v565
    %v580 = vpack.c.bf16 %v576, %v573
    %s581 = scalar_lea.vmem %s5, 64
    %v582 = vld [vmem:[%s581] sm:$0xf]
    %v583 = vld [vmem:[%s581 + $0x4] sm:$0xf]
    %v584 = vld [vmem:[%s581 + $0x8] sm:$0xf]
    %v585 = vld [vmem:[%s581 + $0xc] sm:$0xf]
    %v586 = vld [vmem:[%s581 + $0x10] sm:$0xf]
    %v587 = vld [vmem:[%s581 + $0x14] sm:$0xf]
    %v588 = vld [vmem:[%s581 + $0x18] sm:$0xf]
    %v589 = vld [vmem:[%s581 + $0x1c] sm:$0xf]
    %v590 = vld [vmem:[%s581 + $0x20] sm:$0xf]
    %v591 = vld [vmem:[%s581 + $0x24] sm:$0xf]
    %v592 = vld [vmem:[%s581 + $0x28] sm:$0xf]
    %v593 = vld [vmem:[%s581 + $0x2c] sm:$0xf]
    %v594 = vld [vmem:[%s581 + $0x30] sm:$0xf]
    %v595 = vld [vmem:[%s581 + $0x34] sm:$0xf]
    %v596 = vld [vmem:[%s581 + $0x38] sm:$0xf]
    %v597 = vld [vmem:[%s581 + $0x3c] sm:$0xf]
    %v614 = vunpack.c.l.b16 %v582
    %v615 = vunpack.c.l.b16 %v583
    %v616 = vunpack.c.l.b16 %v584
    %v617 = vunpack.c.l.b16 %v585
    %v618 = vunpack.c.l.b16 %v586
    %v619 = vunpack.c.l.b16 %v587
    %v620 = vunpack.c.l.b16 %v588
    %v621 = vunpack.c.l.b16 %v589
    %v622 = vunpack.c.l.b16 %v590
    %v623 = vunpack.c.l.b16 %v591
    %v624 = vunpack.c.l.b16 %v592
    %v625 = vunpack.c.l.b16 %v593
    %v626 = vunpack.c.l.b16 %v594
    %v627 = vunpack.c.l.b16 %v595
    %v628 = vunpack.c.l.b16 %v596
    %v629 = vunpack.c.l.b16 %v597
    %v630 = vpack.c.b16 %v615, %v614
    %v631 = vpack.c.b16 %v617, %v616
    %v632 = vpack.c.b16 %v619, %v618
    %v633 = vpack.c.b16 %v621, %v620
    %v634 = vpack.c.b16 %v623, %v622
    %v635 = vpack.c.b16 %v625, %v624
    %v636 = vpack.c.b16 %v627, %v626
    %v637 = vpack.c.b16 %v629, %v628
    %646 = vmatprep.subr.bf16.mxu0 0
    %647 = vmatpush1.bf16.msra.mxu0 %v630
    %648 = vmatprep.subr.bf16.mxu0 0
    %649 = vmatpush1.bf16.msra.mxu0 %v631
    %650 = vmatprep.subr.bf16.mxu0 0
    %651 = vmatpush1.bf16.msra.mxu0 %v632
    %652 = vmatprep.subr.bf16.mxu0 0
    %653 = vmatpush1.bf16.msra.mxu0 %v633
    %654 = vmatprep.subr.bf16.mxu0 0
    %655 = vmatpush1.bf16.msra.mxu0 %v634
    %656 = vmatprep.subr.bf16.mxu0 0
    %657 = vmatpush1.bf16.msra.mxu0 %v635
    %658 = vmatprep.subr.bf16.mxu0 0
    %659 = vmatpush1.bf16.msra.mxu0 %v636
    %660 = vmatprep.subr.bf16.mxu0 0
    %661 = vmatpush1.bf16.msra.mxu0 %v637
    %662 = vmatprep.subr.bf16.mxu0 0
    %663 = vmatpush1.bf16.msra.mxu0 0
    %664 = vmatprep.subr.bf16.mxu0 0
    %665 = vmatpush1.bf16.msra.mxu0 0
    %666 = vmatprep.subr.bf16.mxu0 0
    %667 = vmatpush1.bf16.msra.mxu0 0
    %668 = vmatprep.subr.bf16.mxu0 0
    %669 = vmatpush1.bf16.msra.mxu0 0
    %670 = vmatprep.subr.bf16.mxu0 0
    %671 = vmatpush1.bf16.msra.mxu0 0
    %672 = vmatprep.subr.bf16.mxu0 0
    %673 = vmatpush1.bf16.msra.mxu0 0
    %674 = vmatprep.subr.bf16.mxu0 0
    %675 = vmatpush1.bf16.msra.mxu0 0
    %676 = vmatprep.subr.bf16.mxu0 0
    %677 = vmatpush1.bf16.msra.mxu0 0
    %678 = vmatprep.mubr.bf16.mxu0 0
    %679 = vmatmul.mubr.bf16.gmra.mrb[0].mxu0 %v579
    %v680 = vpop.f32.mrb[0].mxu0
    %v681 = vadd.f32 0.0, %v680
    %v682 = vpop.f32.mrb[0].mxu0
    %v683 = vpop.f32.mrb[0].mxu0
    %v684 = vadd.f32 0.0, %v683
    %v685 = vpop.f32.mrb[0].mxu0
    %686 = vmatprep.mubr.bf16.mxu0 0
    %687 = vmatmul.mubr.bf16.gmra.mrb[0].mxu0 %v580
    %v688 = vpop.f32.mrb[0].mxu0
    %v689 = vadd.f32 0.0, %v688
    %v690 = vpop.f32.mrb[0].mxu0
    %v691 = vpop.f32.mrb[0].mxu0
    %v692 = vadd.f32 0.0, %v691
    %v693 = vpop.f32.mrb[0].mxu0
    %694 = vdwg.mxu0
    %v711 = vunpack.c.l.b16 %v497
    %v712 = vunpack.c.l.b16 %v498
    %v713 = vunpack.c.l.b16 %v499
    %v714 = vunpack.c.l.b16 %v500
    %v715 = vunpack.c.l.b16 %v501
    %v716 = vunpack.c.l.b16 %v502
    %v717 = vunpack.c.l.b16 %v503
    %v718 = vunpack.c.l.b16 %v504
    %v719 = vunpack.c.l.b16 %v505
    %v720 = vunpack.c.l.b16 %v506
    %v721 = vunpack.c.l.b16 %v507
    %v722 = vunpack.c.l.b16 %v508
    %v723 = vunpack.c.l.b16 %v509
    %v724 = vunpack.c.l.b16 %v510
    %v725 = vunpack.c.l.b16 %v511
    %v726 = vunpack.c.l.b16 %v512
    %v727 = vpack.c.b16 %v712, %v711
    %v728 = vpack.c.b16 %v714, %v713
    %v729 = vpack.c.b16 %v716, %v715
    %v730 = vpack.c.b16 %v718, %v717
    %v731 = vpack.c.b16 %v720, %v719
    %v732 = vpack.c.b16 %v722, %v721
    %v733 = vpack.c.b16 %v724, %v723
    %v734 = vpack.c.b16 %v726, %v725
    %743 = vmatprep.subr.bf16.mxu0 0
    %744 = vmatpush1.bf16.msra.mxu0 %v727
    %745 = vmatprep.subr.bf16.mxu0 0
    %746 = vmatpush1.bf16.msra.mxu0 %v728
    %747 = vmatprep.subr.bf16.mxu0 0
    %748 = vmatpush1.bf16.msra.mxu0 %v729
    %749 = vmatprep.subr.bf16.mxu0 0
    %750 = vmatpush1.bf16.msra.mxu0 %v730
    %751 = vmatprep.subr.bf16.mxu0 0
    %752 = vmatpush1.bf16.msra.mxu0 %v731
    %753 = vmatprep.subr.bf16.mxu0 0
    %754 = vmatpush1.bf16.msra.mxu0 %v732
    %755 = vmatprep.subr.bf16.mxu0 0
    %756 = vmatpush1.bf16.msra.mxu0 %v733
    %757 = vmatprep.subr.bf16.mxu0 0
    %758 = vmatpush1.bf16.msra.mxu0 %v734
    %759 = vmatprep.subr.bf16.mxu0 0
    %760 = vmatpush1.bf16.msra.mxu0 0
    %761 = vmatprep.subr.bf16.mxu0 0
    %762 = vmatpush1.bf16.msra.mxu0 0
    %763 = vmatprep.subr.bf16.mxu0 0
    %764 = vmatpush1.bf16.msra.mxu0 0
    %765 = vmatprep.subr.bf16.mxu0 0
    %766 = vmatpush1.bf16.msra.mxu0 0
    %767 = vmatprep.subr.bf16.mxu0 0
    %768 = vmatpush1.bf16.msra.mxu0 0
    %769 = vmatprep.subr.bf16.mxu0 0
    %770 = vmatpush1.bf16.msra.mxu0 0
    %771 = vmatprep.subr.bf16.mxu0 0
    %772 = vmatpush1.bf16.msra.mxu0 0
    %773 = vmatprep.subr.bf16.mxu0 0
    %774 = vmatpush1.bf16.msra.mxu0 0
    %775 = vmatprep.mubr.bf16.mxu0 0
    %776 = vmatmul.mubr.bf16.gmra.mrb[0].mxu0 %v495
    %v777 = vpop.f32.mrb[0].mxu0
    %v778 = vadd.f32 %v681, %v777
    %v779 = vpop.f32.mrb[0].mxu0
    %v780 = vpop.f32.mrb[0].mxu0
    %v781 = vadd.f32 %v684, %v780
    %v782 = vpop.f32.mrb[0].mxu0
    %783 = vmatprep.mubr.bf16.mxu0 0
    %784 = vmatmul.mubr.bf16.gmra.mrb[0].mxu0 %v496
    %v785 = vpop.f32.mrb[0].mxu0
    %v786 = vadd.f32 %v689, %v785
    %v787 = vpop.f32.mrb[0].mxu0
    %v788 = vpop.f32.mrb[0].mxu0
    %v789 = vadd.f32 %v692, %v788
    %v790 = vpop.f32.mrb[0].mxu0
    %791 = vdwg.mxu0
    %s792 = scalar_lea.vmem %s4, 32
    %v793 = vld [vmem:[%s792] sm:$0xf]
    %v794 = vld [vmem:[%s792 + $0x4] sm:$0xf]
    %v795 = vld [vmem:[%s792 + $0x8] sm:$0xf]
    %v796 = vld [vmem:[%s792 + $0xc] sm:$0xf]
    %v801 = vunpack.c.l.b16 %v793
    %v802 = vunpack.c.l.b16 %v794
    %v803 = vunpack.c.l.b16 %v795
    %v804 = vunpack.c.l.b16 %v796
    %v805 = vpack.c.b16 %v802, %v801
    %v806 = vpack.c.b16 %v804, %v803
    %809 = vmatprep.subr.bf16.mxu0 0
    %810 = vmatpush1.bf16.msra.mxu0 %v422
    %811 = vmatprep.subr.bf16.mxu0 0
    %812 = vmatpush1.bf16.msra.mxu0 %v423
    %813 = vmatprep.subr.bf16.mxu0 0
    %814 = vmatpush1.bf16.msra.mxu0 %v424
    %815 = vmatprep.subr.bf16.mxu0 0
    %816 = vmatpush1.bf16.msra.mxu0 %v425
    %817 = vmatprep.subr.bf16.mxu0 0
    %818 = vmatpush1.bf16.msra.mxu0 %v426
    %819 = vmatprep.subr.bf16.mxu0 0
    %820 = vmatpush1.bf16.msra.mxu0 %v427
    %821 = vmatprep.subr.bf16.mxu0 0
    %822 = vmatpush1.bf16.msra.mxu0 %v428
    %823 = vmatprep.subr.bf16.mxu0 0
    %824 = vmatpush1.bf16.msra.mxu0 %v429
    %825 = vmatprep.subr.bf16.mxu0 0
    %826 = vmatpush1.bf16.msra.mxu0 0
    %827 = vmatprep.subr.bf16.mxu0 0
    %828 = vmatpush1.bf16.msra.mxu0 0
    %829 = vmatprep.subr.bf16.mxu0 0
    %830 = vmatpush1.bf16.msra.mxu0 0
    %831 = vmatprep.subr.bf16.mxu0 0
    %832 = vmatpush1.bf16.msra.mxu0 0
    %833 = vmatprep.subr.bf16.mxu0 0
    %834 = vmatpush1.bf16.msra.mxu0 0
    %835 = vmatprep.subr.bf16.mxu0 0
    %836 = vmatpush1.bf16.msra.mxu0 0
    %837 = vmatprep.subr.bf16.mxu0 0
    %838 = vmatpush1.bf16.msra.mxu0 0
    %839 = vmatprep.subr.bf16.mxu0 0
    %840 = vmatpush1.bf16.msra.mxu0 0
    %841 = vmatprep.mubr.bf16.mxu0 0
    %842 = vmatmul.mubr.bf16.gmra.mrb[0].mxu0 %v805
    %v843 = vpop.f32.mrb[0].mxu0
    %v844 = vadd.f32 0.0, %v843
    %v845 = vpop.f32.mrb[0].mxu0
    %v846 = vpop.f32.mrb[0].mxu0
    %v847 = vadd.f32 0.0, %v846
    %v848 = vpop.f32.mrb[0].mxu0
    %849 = vmatprep.mubr.bf16.mxu0 0
    %850 = vmatmul.mubr.bf16.gmra.mrb[0].mxu0 %v806
    %v851 = vpop.f32.mrb[0].mxu0
    %v852 = vadd.f32 0.0, %v851
    %v853 = vpop.f32.mrb[0].mxu0
    %v854 = vpop.f32.mrb[0].mxu0
    %v855 = vadd.f32 0.0, %v854
    %v856 = vpop.f32.mrb[0].mxu0
    %857 = vdwg.mxu0
    %v858 = vpack.c.bf16 %v847, %v844
    %v859 = vpack.c.bf16 %v855, %v852
    %s860 = scalar_lea.vmem %s5, 128
    %v861 = vld [vmem:[%s860] sm:$0xf]
    %v862 = vld [vmem:[%s860 + $0x4] sm:$0xf]
    %v863 = vld [vmem:[%s860 + $0x8] sm:$0xf]
    %v864 = vld [vmem:[%s860 + $0xc] sm:$0xf]
    %v865 = vld [vmem:[%s860 + $0x10] sm:$0xf]
    %v866 = vld [vmem:[%s860 + $0x14] sm:$0xf]
    %v867 = vld [vmem:[%s860 + $0x18] sm:$0xf]
    %v868 = vld [vmem:[%s860 + $0x1c] sm:$0xf]
    %v869 = vld [vmem:[%s860 + $0x20] sm:$0xf]
    %v870 = vld [vmem:[%s860 + $0x24] sm:$0xf]
    %v871 = vld [vmem:[%s860 + $0x28] sm:$0xf]
    %v872 = vld [vmem:[%s860 + $0x2c] sm:$0xf]
    %v873 = vld [vmem:[%s860 + $0x30] sm:$0xf]
    %v874 = vld [vmem:[%s860 + $0x34] sm:$0xf]
    %v875 = vld [vmem:[%s860 + $0x38] sm:$0xf]
    %v876 = vld [vmem:[%s860 + $0x3c] sm:$0xf]
    %v893 = vunpack.c.l.b16 %v861
    %v894 = vunpack.c.l.b16 %v862
    %v895 = vunpack.c.l.b16 %v863
    %v896 = vunpack.c.l.b16 %v864
    %v897 = vunpack.c.l.b16 %v865
    %v898 = vunpack.c.l.b16 %v866
    %v899 = vunpack.c.l.b16 %v867
    %v900 = vunpack.c.l.b16 %v868
    %v901 = vunpack.c.l.b16 %v869
    %v902 = vunpack.c.l.b16 %v870
    %v903 = vunpack.c.l.b16 %v871
    %v904 = vunpack.c.l.b16 %v872
    %v905 = vunpack.c.l.b16 %v873
    %v906 = vunpack.c.l.b16 %v874
    %v907 = vunpack.c.l.b16 %v875
    %v908 = vunpack.c.l.b16 %v876
    %v909 = vpack.c.b16 %v894, %v893
    %v910 = vpack.c.b16 %v896, %v895
    %v911 = vpack.c.b16 %v898, %v897
    %v912 = vpack.c.b16 %v900, %v899
    %v913 = vpack.c.b16 %v902, %v901
    %v914 = vpack.c.b16 %v904, %v903
    %v915 = vpack.c.b16 %v906, %v905
    %v916 = vpack.c.b16 %v908, %v907
    %925 = vmatprep.subr.bf16.mxu0 0
    %926 = vmatpush1.bf16.msra.mxu0 %v909
    %927 = vmatprep.subr.bf16.mxu0 0
    %928 = vmatpush1.bf16.msra.mxu0 %v910
    %929 = vmatprep.subr.bf16.mxu0 0
    %930 = vmatpush1.bf16.msra.mxu0 %v911
    %931 = vmatprep.subr.bf16.mxu0 0
    %932 = vmatpush1.bf16.msra.mxu0 %v912
    %933 = vmatprep.subr.bf16.mxu0 0
    %934 = vmatpush1.bf16.msra.mxu0 %v913
    %935 = vmatprep.subr.bf16.mxu0 0
    %936 = vmatpush1.bf16.msra.mxu0 %v914
    %937 = vmatprep.subr.bf16.mxu0 0
    %938 = vmatpush1.bf16.msra.mxu0 %v915
    %939 = vmatprep.subr.bf16.mxu0 0
    %940 = vmatpush1.bf16.msra.mxu0 %v916
    %941 = vmatprep.subr.bf16.mxu0 0
    %942 = vmatpush1.bf16.msra.mxu0 0
    %943 = vmatprep.subr.bf16.mxu0 0
    %944 = vmatpush1.bf16.msra.mxu0 0
    %945 = vmatprep.subr.bf16.mxu0 0
    %946 = vmatpush1.bf16.msra.mxu0 0
    %947 = vmatprep.subr.bf16.mxu0 0
    %948 = vmatpush1.bf16.msra.mxu0 0
    %949 = vmatprep.subr.bf16.mxu0 0
    %950 = vmatpush1.bf16.msra.mxu0 0
    %951 = vmatprep.subr.bf16.mxu0 0
    %952 = vmatpush1.bf16.msra.mxu0 0
    %953 = vmatprep.subr.bf16.mxu0 0
    %954 = vmatpush1.bf16.msra.mxu0 0
    %955 = vmatprep.subr.bf16.mxu0 0
    %956 = vmatpush1.bf16.msra.mxu0 0
    %957 = vmatprep.mubr.bf16.mxu0 0
    %958 = vmatmul.mubr.bf16.gmra.mrb[0].mxu0 %v858
    %v959 = vpop.f32.mrb[0].mxu0
    %v960 = vadd.f32 0.0, %v959
    %v961 = vpop.f32.mrb[0].mxu0
    %v962 = vpop.f32.mrb[0].mxu0
    %v963 = vadd.f32 0.0, %v962
    %v964 = vpop.f32.mrb[0].mxu0
    %965 = vmatprep.mubr.bf16.mxu0 0
    %966 = vmatmul.mubr.bf16.gmra.mrb[0].mxu0 %v859
    %v967 = vpop.f32.mrb[0].mxu0
    %v968 = vadd.f32 0.0, %v967
    %v969 = vpop.f32.mrb[0].mxu0
    %v970 = vpop.f32.mrb[0].mxu0
    %v971 = vadd.f32 0.0, %v970
    %v972 = vpop.f32.mrb[0].mxu0
    %973 = vdwg.mxu0
    %v974 = vadd.f32 %v778, %v960
    %v975 = vadd.f32 %v781, %v963
    %v976 = vadd.f32 %v786, %v968
    %v977 = vadd.f32 %v789, %v971
    %s978 = scalar_lea.vmem %s4, 48
    %v979 = vld [vmem:[%s978] sm:$0xf]
    %v980 = vld [vmem:[%s978 + $0x4] sm:$0xf]
    %v981 = vld [vmem:[%s978 + $0x8] sm:$0xf]
    %v982 = vld [vmem:[%s978 + $0xc] sm:$0xf]
    %v987 = vunpack.c.l.b16 %v979
    %v988 = vunpack.c.l.b16 %v980
    %v989 = vunpack.c.l.b16 %v981
    %v990 = vunpack.c.l.b16 %v982
    %v991 = vpack.c.b16 %v988, %v987
    %v992 = vpack.c.b16 %v990, %v989
    %995 = vmatprep.subr.bf16.mxu0 0
    %996 = vmatpush1.bf16.msra.mxu0 %v422
    %997 = vmatprep.subr.bf16.mxu0 0
    %998 = vmatpush1.bf16.msra.mxu0 %v423
    %999 = vmatprep.subr.bf16.mxu0 0
    %1000 = vmatpush1.bf16.msra.mxu0 %v424
    %1001 = vmatprep.subr.bf16.mxu0 0
    %1002 = vmatpush1.bf16.msra.mxu0 %v425
    %1003 = vmatprep.subr.bf16.mxu0 0
    %1004 = vmatpush1.bf16.msra.mxu0 %v426
    %1005 = vmatprep.subr.bf16.mxu0 0
    %1006 = vmatpush1.bf16.msra.mxu0 %v427
    %1007 = vmatprep.subr.bf16.mxu0 0
    %1008 = vmatpush1.bf16.msra.mxu0 %v428
    %1009 = vmatprep.subr.bf16.mxu0 0
    %1010 = vmatpush1.bf16.msra.mxu0 %v429
    %1011 = vmatprep.subr.bf16.mxu0 0
    %1012 = vmatpush1.bf16.msra.mxu0 0
    %1013 = vmatprep.subr.bf16.mxu0 0
    %1014 = vmatpush1.bf16.msra.mxu0 0
    %1015 = vmatprep.subr.bf16.mxu0 0
    %1016 = vmatpush1.bf16.msra.mxu0 0
    %1017 = vmatprep.subr.bf16.mxu0 0
    %1018 = vmatpush1.bf16.msra.mxu0 0
    %1019 = vmatprep.subr.bf16.mxu0 0
    %1020 = vmatpush1.bf16.msra.mxu0 0
    %1021 = vmatprep.subr.bf16.mxu0 0
    %1022 = vmatpush1.bf16.msra.mxu0 0
    %1023 = vmatprep.subr.bf16.mxu0 0
    %1024 = vmatpush1.bf16.msra.mxu0 0
    %1025 = vmatprep.subr.bf16.mxu0 0
    %1026 = vmatpush1.bf16.msra.mxu0 0
    %1027 = vmatprep.mubr.bf16.mxu0 0
    %1028 = vmatmul.mubr.bf16.gmra.mrb[0].mxu0 %v991
    %v1029 = vpop.f32.mrb[0].mxu0
    %v1030 = vadd.f32 0.0, %v1029
    %v1031 = vpop.f32.mrb[0].mxu0
    %v1032 = vpop.f32.mrb[0].mxu0
    %v1033 = vadd.f32 0.0, %v1032
    %v1034 = vpop.f32.mrb[0].mxu0
    %1035 = vmatprep.mubr.bf16.mxu0 0
    %1036 = vmatmul.mubr.bf16.gmra.mrb[0].mxu0 %v992
    %v1037 = vpop.f32.mrb[0].mxu0
    %v1038 = vadd.f32 0.0, %v1037
    %v1039 = vpop.f32.mrb[0].mxu0
    %v1040 = vpop.f32.mrb[0].mxu0
    %v1041 = vadd.f32 0.0, %v1040
    %v1042 = vpop.f32.mrb[0].mxu0
    %1043 = vdwg.mxu0
    %v1044 = vpack.c.bf16 %v1033, %v1030
    %v1045 = vpack.c.bf16 %v1041, %v1038
    %s1046 = scalar_lea.vmem %s5, 192
    %v1047 = vld [vmem:[%s1046] sm:$0xf]
    %v1048 = vld [vmem:[%s1046 + $0x4] sm:$0xf]
    %v1049 = vld [vmem:[%s1046 + $0x8] sm:$0xf]
    %v1050 = vld [vmem:[%s1046 + $0xc] sm:$0xf]
    %v1051 = vld [vmem:[%s1046 + $0x10] sm:$0xf]
    %v1052 = vld [vmem:[%s1046 + $0x14] sm:$0xf]
    %v1053 = vld [vmem:[%s1046 + $0x18] sm:$0xf]
    %v1054 = vld [vmem:[%s1046 + $0x1c] sm:$0xf]
    %v1055 = vld [vmem:[%s1046 + $0x20] sm:$0xf]
    %v1056 = vld [vmem:[%s1046 + $0x24] sm:$0xf]
    %v1057 = vld [vmem:[%s1046 + $0x28] sm:$0xf]
    %v1058 = vld [vmem:[%s1046 + $0x2c] sm:$0xf]
    %v1059 = vld [vmem:[%s1046 + $0x30] sm:$0xf]
    %v1060 = vld [vmem:[%s1046 + $0x34] sm:$0xf]
    %v1061 = vld [vmem:[%s1046 + $0x38] sm:$0xf]
    %v1062 = vld [vmem:[%s1046 + $0x3c] sm:$0xf]
    %v1079 = vunpack.c.l.b16 %v1047
    %v1080 = vunpack.c.l.b16 %v1048
    %v1081 = vunpack.c.l.b16 %v1049
    %v1082 = vunpack.c.l.b16 %v1050
    %v1083 = vunpack.c.l.b16 %v1051
    %v1084 = vunpack.c.l.b16 %v1052
    %v1085 = vunpack.c.l.b16 %v1053
    %v1086 = vunpack.c.l.b16 %v1054
    %v1087 = vunpack.c.l.b16 %v1055
    %v1088 = vunpack.c.l.b16 %v1056
    %v1089 = vunpack.c.l.b16 %v1057
    %v1090 = vunpack.c.l.b16 %v1058
    %v1091 = vunpack.c.l.b16 %v1059
    %v1092 = vunpack.c.l.b16 %v1060
    %v1093 = vunpack.c.l.b16 %v1061
    %v1094 = vunpack.c.l.b16 %v1062
    %v1095 = vpack.c.b16 %v1080, %v1079
    %v1096 = vpack.c.b16 %v1082, %v1081
    %v1097 = vpack.c.b16 %v1084, %v1083
    %v1098 = vpack.c.b16 %v1086, %v1085
    %v1099 = vpack.c.b16 %v1088, %v1087
    %v1100 = vpack.c.b16 %v1090, %v1089
    %v1101 = vpack.c.b16 %v1092, %v1091
    %v1102 = vpack.c.b16 %v1094, %v1093
    %1111 = vmatprep.subr.bf16.mxu0 0
    %1112 = vmatpush1.bf16.msra.mxu0 %v1095
    %1113 = vmatprep.subr.bf16.mxu0 0
    %1114 = vmatpush1.bf16.msra.mxu0 %v1096
    %1115 = vmatprep.subr.bf16.mxu0 0
    %1116 = vmatpush1.bf16.msra.mxu0 %v1097
    %1117 = vmatprep.subr.bf16.mxu0 0
    %1118 = vmatpush1.bf16.msra.mxu0 %v1098
    %1119 = vmatprep.subr.bf16.mxu0 0
    %1120 = vmatpush1.bf16.msra.mxu0 %v1099
    %1121 = vmatprep.subr.bf16.mxu0 0
    %1122 = vmatpush1.bf16.msra.mxu0 %v1100
    %1123 = vmatprep.subr.bf16.mxu0 0
    %1124 = vmatpush1.bf16.msra.mxu0 %v1101
    %1125 = vmatprep.subr.bf16.mxu0 0
    %1126 = vmatpush1.bf16.msra.mxu0 %v1102
    %1127 = vmatprep.subr.bf16.mxu0 0
    %1128 = vmatpush1.bf16.msra.mxu0 0
    %1129 = vmatprep.subr.bf16.mxu0 0
    %1130 = vmatpush1.bf16.msra.mxu0 0
    %1131 = vmatprep.subr.bf16.mxu0 0
    %1132 = vmatpush1.bf16.msra.mxu0 0
    %1133 = vmatprep.subr.bf16.mxu0 0
    %1134 = vmatpush1.bf16.msra.mxu0 0
    %1135 = vmatprep.subr.bf16.mxu0 0
    %1136 = vmatpush1.bf16.msra.mxu0 0
    %1137 = vmatprep.subr.bf16.mxu0 0
    %1138 = vmatpush1.bf16.msra.mxu0 0
    %1139 = vmatprep.subr.bf16.mxu0 0
    %1140 = vmatpush1.bf16.msra.mxu0 0
    %1141 = vmatprep.subr.bf16.mxu0 0
    %1142 = vmatpush1.bf16.msra.mxu0 0
    %1143 = vmatprep.mubr.bf16.mxu0 0
    %1144 = vmatmul.mubr.bf16.gmra.mrb[0].mxu0 %v1044
    %v1145 = vpop.f32.mrb[0].mxu0
    %v1146 = vadd.f32 0.0, %v1145
    %v1147 = vpop.f32.mrb[0].mxu0
    %v1148 = vpop.f32.mrb[0].mxu0
    %v1149 = vadd.f32 0.0, %v1148
    %v1150 = vpop.f32.mrb[0].mxu0
    %1151 = vmatprep.mubr.bf16.mxu0 0
    %1152 = vmatmul.mubr.bf16.gmra.mrb[0].mxu0 %v1045
    %v1153 = vpop.f32.mrb[0].mxu0
    %v1154 = vadd.f32 0.0, %v1153
    %v1155 = vpop.f32.mrb[0].mxu0
    %v1156 = vpop.f32.mrb[0].mxu0
    %v1157 = vadd.f32 0.0, %v1156
    %v1158 = vpop.f32.mrb[0].mxu0
    %1159 = vdwg.mxu0
    %v1160 = vadd.f32 %v974, %v1146
    %v1161 = vadd.f32 %v975, %v1149
    %v1162 = vadd.f32 %v976, %v1154
    %v1163 = vadd.f32 %v977, %v1157
    %s1164 = scalar_lea.vmem %s4, 64
    %v1165 = vld [vmem:[%s1164] sm:$0xf]
    %v1166 = vld [vmem:[%s1164 + $0x4] sm:$0xf]
    %v1167 = vld [vmem:[%s1164 + $0x8] sm:$0xf]
    %v1168 = vld [vmem:[%s1164 + $0xc] sm:$0xf]
    %v1173 = vunpack.c.l.b16 %v1165
    %v1174 = vunpack.c.l.b16 %v1166
    %v1175 = vunpack.c.l.b16 %v1167
    %v1176 = vunpack.c.l.b16 %v1168
    %v1177 = vpack.c.b16 %v1174, %v1173
    %v1178 = vpack.c.b16 %v1176, %v1175
    %1181 = vmatprep.subr.bf16.mxu0 0
    %1182 = vmatpush1.bf16.msra.mxu0 %v422
    %1183 = vmatprep.subr.bf16.mxu0 0
    %1184 = vmatpush1.bf16.msra.mxu0 %v423
    %1185 = vmatprep.subr.bf16.mxu0 0
    %1186 = vmatpush1.bf16.msra.mxu0 %v424
    %1187 = vmatprep.subr.bf16.mxu0 0
    %1188 = vmatpush1.bf16.msra.mxu0 %v425
    %1189 = vmatprep.subr.bf16.mxu0 0
    %1190 = vmatpush1.bf16.msra.mxu0 %v426
    %1191 = vmatprep.subr.bf16.mxu0 0
    %1192 = vmatpush1.bf16.msra.mxu0 %v427
    %1193 = vmatprep.subr.bf16.mxu0 0
    %1194 = vmatpush1.bf16.msra.mxu0 %v428
    %1195 = vmatprep.subr.bf16.mxu0 0
    %1196 = vmatpush1.bf16.msra.mxu0 %v429
    %1197 = vmatprep.subr.bf16.mxu0 0
    %1198 = vmatpush1.bf16.msra.mxu0 0
    %1199 = vmatprep.subr.bf16.mxu0 0
    %1200 = vmatpush1.bf16.msra.mxu0 0
    %1201 = vmatprep.subr.bf16.mxu0 0
    %1202 = vmatpush1.bf16.msra.mxu0 0
    %1203 = vmatprep.subr.bf16.mxu0 0
    %1204 = vmatpush1.bf16.msra.mxu0 0
    %1205 = vmatprep.subr.bf16.mxu0 0
    %1206 = vmatpush1.bf16.msra.mxu0 0
    %1207 = vmatprep.subr.bf16.mxu0 0
    %1208 = vmatpush1.bf16.msra.mxu0 0
    %1209 = vmatprep.subr.bf16.mxu0 0
    %1210 = vmatpush1.bf16.msra.mxu0 0
    %1211 = vmatprep.subr.bf16.mxu0 0
    %1212 = vmatpush1.bf16.msra.mxu0 0
    %1213 = vmatprep.mubr.bf16.mxu0 0
    %1214 = vmatmul.mubr.bf16.gmra.mrb[0].mxu0 %v1177
    %v1215 = vpop.f32.mrb[0].mxu0
    %v1216 = vadd.f32 0.0, %v1215
    %v1217 = vpop.f32.mrb[0].mxu0
    %v1218 = vpop.f32.mrb[0].mxu0
    %v1219 = vadd.f32 0.0, %v1218
    %v1220 = vpop.f32.mrb[0].mxu0
    %1221 = vmatprep.mubr.bf16.mxu0 0
    %1222 = vmatmul.mubr.bf16.gmra.mrb[0].mxu0 %v1178
    %v1223 = vpop.f32.mrb[0].mxu0
    %v1224 = vadd.f32 0.0, %v1223
    %v1225 = vpop.f32.mrb[0].mxu0
    %v1226 = vpop.f32.mrb[0].mxu0
    %v1227 = vadd.f32 0.0, %v1226
    %v1228 = vpop.f32.mrb[0].mxu0
    %1229 = vdwg.mxu0
    %v1230 = vpack.c.bf16 %v1219, %v1216
    %v1231 = vpack.c.bf16 %v1227, %v1224
    %s1232 = scalar_lea.vmem %s5, 256
    %v1233 = vld [vmem:[%s1232] sm:$0xf]
    %v1234 = vld [vmem:[%s1232 + $0x4] sm:$0xf]
    %v1235 = vld [vmem:[%s1232 + $0x8] sm:$0xf]
    %v1236 = vld [vmem:[%s1232 + $0xc] sm:$0xf]
    %v1237 = vld [vmem:[%s1232 + $0x10] sm:$0xf]
    %v1238 = vld [vmem:[%s1232 + $0x14] sm:$0xf]
    %v1239 = vld [vmem:[%s1232 + $0x18] sm:$0xf]
    %v1240 = vld [vmem:[%s1232 + $0x1c] sm:$0xf]
    %v1241 = vld [vmem:[%s1232 + $0x20] sm:$0xf]
    %v1242 = vld [vmem:[%s1232 + $0x24] sm:$0xf]
    %v1243 = vld [vmem:[%s1232 + $0x28] sm:$0xf]
    %v1244 = vld [vmem:[%s1232 + $0x2c] sm:$0xf]
    %v1245 = vld [vmem:[%s1232 + $0x30] sm:$0xf]
    %v1246 = vld [vmem:[%s1232 + $0x34] sm:$0xf]
    %v1247 = vld [vmem:[%s1232 + $0x38] sm:$0xf]
    %v1248 = vld [vmem:[%s1232 + $0x3c] sm:$0xf]
    %v1265 = vunpack.c.l.b16 %v1233
    %v1266 = vunpack.c.l.b16 %v1234
    %v1267 = vunpack.c.l.b16 %v1235
    %v1268 = vunpack.c.l.b16 %v1236
    %v1269 = vunpack.c.l.b16 %v1237
    %v1270 = vunpack.c.l.b16 %v1238
    %v1271 = vunpack.c.l.b16 %v1239
    %v1272 = vunpack.c.l.b16 %v1240
    %v1273 = vunpack.c.l.b16 %v1241
    %v1274 = vunpack.c.l.b16 %v1242
    %v1275 = vunpack.c.l.b16 %v1243
    %v1276 = vunpack.c.l.b16 %v1244
    %v1277 = vunpack.c.l.b16 %v1245
    %v1278 = vunpack.c.l.b16 %v1246
    %v1279 = vunpack.c.l.b16 %v1247
    %v1280 = vunpack.c.l.b16 %v1248
    %v1281 = vpack.c.b16 %v1266, %v1265
    %v1282 = vpack.c.b16 %v1268, %v1267
    %v1283 = vpack.c.b16 %v1270, %v1269
    %v1284 = vpack.c.b16 %v1272, %v1271
    %v1285 = vpack.c.b16 %v1274, %v1273
    %v1286 = vpack.c.b16 %v1276, %v1275
    %v1287 = vpack.c.b16 %v1278, %v1277
    %v1288 = vpack.c.b16 %v1280, %v1279
    %1297 = vmatprep.subr.bf16.mxu0 0
    %1298 = vmatpush1.bf16.msra.mxu0 %v1281
    %1299 = vmatprep.subr.bf16.mxu0 0
    %1300 = vmatpush1.bf16.msra.mxu0 %v1282
    %1301 = vmatprep.subr.bf16.mxu0 0
    %1302 = vmatpush1.bf16.msra.mxu0 %v1283
    %1303 = vmatprep.subr.bf16.mxu0 0
    %1304 = vmatpush1.bf16.msra.mxu0 %v1284
    %1305 = vmatprep.subr.bf16.mxu0 0
    %1306 = vmatpush1.bf16.msra.mxu0 %v1285
    %1307 = vmatprep.subr.bf16.mxu0 0
    %1308 = vmatpush1.bf16.msra.mxu0 %v1286
    %1309 = vmatprep.subr.bf16.mxu0 0
    %1310 = vmatpush1.bf16.msra.mxu0 %v1287
    %1311 = vmatprep.subr.bf16.mxu0 0
    %1312 = vmatpush1.bf16.msra.mxu0 %v1288
    %1313 = vmatprep.subr.bf16.mxu0 0
    %1314 = vmatpush1.bf16.msra.mxu0 0
    %1315 = vmatprep.subr.bf16.mxu0 0
    %1316 = vmatpush1.bf16.msra.mxu0 0
    %1317 = vmatprep.subr.bf16.mxu0 0
    %1318 = vmatpush1.bf16.msra.mxu0 0
    %1319 = vmatprep.subr.bf16.mxu0 0
    %1320 = vmatpush1.bf16.msra.mxu0 0
    %1321 = vmatprep.subr.bf16.mxu0 0
    %1322 = vmatpush1.bf16.msra.mxu0 0
    %1323 = vmatprep.subr.bf16.mxu0 0
    %1324 = vmatpush1.bf16.msra.mxu0 0
    %1325 = vmatprep.subr.bf16.mxu0 0
    %1326 = vmatpush1.bf16.msra.mxu0 0
    %1327 = vmatprep.subr.bf16.mxu0 0
    %1328 = vmatpush1.bf16.msra.mxu0 0
    %1329 = vmatprep.mubr.bf16.mxu0 0
    %1330 = vmatmul.mubr.bf16.gmra.mrb[0].mxu0 %v1230
    %v1331 = vpop.f32.mrb[0].mxu0
    %v1332 = vadd.f32 0.0, %v1331
    %v1333 = vpop.f32.mrb[0].mxu0
    %v1334 = vpop.f32.mrb[0].mxu0
    %v1335 = vadd.f32 0.0, %v1334
    %v1336 = vpop.f32.mrb[0].mxu0
    %1337 = vmatprep.mubr.bf16.mxu0 0
    %1338 = vmatmul.mubr.bf16.gmra.mrb[0].mxu0 %v1231
    %v1339 = vpop.f32.mrb[0].mxu0
    %v1340 = vadd.f32 0.0, %v1339
    %v1341 = vpop.f32.mrb[0].mxu0
    %v1342 = vpop.f32.mrb[0].mxu0
    %v1343 = vadd.f32 0.0, %v1342
    %v1344 = vpop.f32.mrb[0].mxu0
    %1345 = vdwg.mxu0
    %v1346 = vadd.f32 %v1160, %v1332
    %v1347 = vadd.f32 %v1161, %v1335
    %v1348 = vadd.f32 %v1162, %v1340
    %v1349 = vadd.f32 %v1163, %v1343
    %s1350 = scalar_lea.vmem %s4, 80
    %v1351 = vld [vmem:[%s1350] sm:$0xf]
    %v1352 = vld [vmem:[%s1350 + $0x4] sm:$0xf]
    %v1353 = vld [vmem:[%s1350 + $0x8] sm:$0xf]
    %v1354 = vld [vmem:[%s1350 + $0xc] sm:$0xf]
    %v1359 = vunpack.c.l.b16 %v1351
    %v1360 = vunpack.c.l.b16 %v1352
    %v1361 = vunpack.c.l.b16 %v1353
    %v1362 = vunpack.c.l.b16 %v1354
    %v1363 = vpack.c.b16 %v1360, %v1359
    %v1364 = vpack.c.b16 %v1362, %v1361
    %1367 = vmatprep.subr.bf16.mxu0 0
    %1368 = vmatpush1.bf16.msra.mxu0 %v422
    %1369 = vmatprep.subr.bf16.mxu0 0
    %1370 = vmatpush1.bf16.msra.mxu0 %v423
    %1371 = vmatprep.subr.bf16.mxu0 0
    %1372 = vmatpush1.bf16.msra.mxu0 %v424
    %1373 = vmatprep.subr.bf16.mxu0 0
    %1374 = vmatpush1.bf16.msra.mxu0 %v425
    %1375 = vmatprep.subr.bf16.mxu0 0
    %1376 = vmatpush1.bf16.msra.mxu0 %v426
    %1377 = vmatprep.subr.bf16.mxu0 0
    %1378 = vmatpush1.bf16.msra.mxu0 %v427
    %1379 = vmatprep.subr.bf16.mxu0 0
    %1380 = vmatpush1.bf16.msra.mxu0 %v428
    %1381 = vmatprep.subr.bf16.mxu0 0
    %1382 = vmatpush1.bf16.msra.mxu0 %v429
    %1383 = vmatprep.subr.bf16.mxu0 0
    %1384 = vmatpush1.bf16.msra.mxu0 0
    %1385 = vmatprep.subr.bf16.mxu0 0
    %1386 = vmatpush1.bf16.msra.mxu0 0
    %1387 = vmatprep.subr.bf16.mxu0 0
    %1388 = vmatpush1.bf16.msra.mxu0 0
    %1389 = vmatprep.subr.bf16.mxu0 0
    %1390 = vmatpush1.bf16.msra.mxu0 0
    %1391 = vmatprep.subr.bf16.mxu0 0
    %1392 = vmatpush1.bf16.msra.mxu0 0
    %1393 = vmatprep.subr.bf16.mxu0 0
    %1394 = vmatpush1.bf16.msra.mxu0 0
    %1395 = vmatprep.subr.bf16.mxu0 0
    %1396 = vmatpush1.bf16.msra.mxu0 0
    %1397 = vmatprep.subr.bf16.mxu0 0
    %1398 = vmatpush1.bf16.msra.mxu0 0
    %1399 = vmatprep.mubr.bf16.mxu0 0
    %1400 = vmatmul.mubr.bf16.gmra.mrb[0].mxu0 %v1363
    %v1401 = vpop.f32.mrb[0].mxu0
    %v1402 = vadd.f32 0.0, %v1401
    %v1403 = vpop.f32.mrb[0].mxu0
    %v1404 = vpop.f32.mrb[0].mxu0
    %v1405 = vadd.f32 0.0, %v1404
    %v1406 = vpop.f32.mrb[0].mxu0
    %1407 = vmatprep.mubr.bf16.mxu0 0
    %1408 = vmatmul.mubr.bf16.gmra.mrb[0].mxu0 %v1364
    %v1409 = vpop.f32.mrb[0].mxu0
    %v1410 = vadd.f32 0.0, %v1409
    %v1411 = vpop.f32.mrb[0].mxu0
    %v1412 = vpop.f32.mrb[0].mxu0
    %v1413 = vadd.f32 0.0, %v1412
    %v1414 = vpop.f32.mrb[0].mxu0
    %1415 = vdwg.mxu0
    %v1416 = vpack.c.bf16 %v1405, %v1402
    %v1417 = vpack.c.bf16 %v1413, %v1410
    %s1418 = scalar_lea.vmem %s5, 320
    %v1419 = vld [vmem:[%s1418] sm:$0xf]
    %v1420 = vld [vmem:[%s1418 + $0x4] sm:$0xf]
    %v1421 = vld [vmem:[%s1418 + $0x8] sm:$0xf]
    %v1422 = vld [vmem:[%s1418 + $0xc] sm:$0xf]
    %v1423 = vld [vmem:[%s1418 + $0x10] sm:$0xf]
    %v1424 = vld [vmem:[%s1418 + $0x14] sm:$0xf]
    %v1425 = vld [vmem:[%s1418 + $0x18] sm:$0xf]
    %v1426 = vld [vmem:[%s1418 + $0x1c] sm:$0xf]
    %v1427 = vld [vmem:[%s1418 + $0x20] sm:$0xf]
    %v1428 = vld [vmem:[%s1418 + $0x24] sm:$0xf]
    %v1429 = vld [vmem:[%s1418 + $0x28] sm:$0xf]
    %v1430 = vld [vmem:[%s1418 + $0x2c] sm:$0xf]
    %v1431 = vld [vmem:[%s1418 + $0x30] sm:$0xf]
    %v1432 = vld [vmem:[%s1418 + $0x34] sm:$0xf]
    %v1433 = vld [vmem:[%s1418 + $0x38] sm:$0xf]
    %v1434 = vld [vmem:[%s1418 + $0x3c] sm:$0xf]
    %v1451 = vunpack.c.l.b16 %v1419
    %v1452 = vunpack.c.l.b16 %v1420
    %v1453 = vunpack.c.l.b16 %v1421
    %v1454 = vunpack.c.l.b16 %v1422
    %v1455 = vunpack.c.l.b16 %v1423
    %v1456 = vunpack.c.l.b16 %v1424
    %v1457 = vunpack.c.l.b16 %v1425
    %v1458 = vunpack.c.l.b16 %v1426
    %v1459 = vunpack.c.l.b16 %v1427
    %v1460 = vunpack.c.l.b16 %v1428
    %v1461 = vunpack.c.l.b16 %v1429
    %v1462 = vunpack.c.l.b16 %v1430
    %v1463 = vunpack.c.l.b16 %v1431
    %v1464 = vunpack.c.l.b16 %v1432
    %v1465 = vunpack.c.l.b16 %v1433
    %v1466 = vunpack.c.l.b16 %v1434
    %v1467 = vpack.c.b16 %v1452, %v1451
    %v1468 = vpack.c.b16 %v1454, %v1453
    %v1469 = vpack.c.b16 %v1456, %v1455
    %v1470 = vpack.c.b16 %v1458, %v1457
    %v1471 = vpack.c.b16 %v1460, %v1459
    %v1472 = vpack.c.b16 %v1462, %v1461
    %v1473 = vpack.c.b16 %v1464, %v1463
    %v1474 = vpack.c.b16 %v1466, %v1465
    %1483 = vmatprep.subr.bf16.mxu0 0
    %1484 = vmatpush1.bf16.msra.mxu0 %v1467
    %1485 = vmatprep.subr.bf16.mxu0 0
    %1486 = vmatpush1.bf16.msra.mxu0 %v1468
    %1487 = vmatprep.subr.bf16.mxu0 0
    %1488 = vmatpush1.bf16.msra.mxu0 %v1469
    %1489 = vmatprep.subr.bf16.mxu0 0
    %1490 = vmatpush1.bf16.msra.mxu0 %v1470
    %1491 = vmatprep.subr.bf16.mxu0 0
    %1492 = vmatpush1.bf16.msra.mxu0 %v1471
    %1493 = vmatprep.subr.bf16.mxu0 0
    %1494 = vmatpush1.bf16.msra.mxu0 %v1472
    %1495 = vmatprep.subr.bf16.mxu0 0
    %1496 = vmatpush1.bf16.msra.mxu0 %v1473
    %1497 = vmatprep.subr.bf16.mxu0 0
    %1498 = vmatpush1.bf16.msra.mxu0 %v1474
    %1499 = vmatprep.subr.bf16.mxu0 0
    %1500 = vmatpush1.bf16.msra.mxu0 0
    %1501 = vmatprep.subr.bf16.mxu0 0
    %1502 = vmatpush1.bf16.msra.mxu0 0
    %1503 = vmatprep.subr.bf16.mxu0 0
    %1504 = vmatpush1.bf16.msra.mxu0 0
    %1505 = vmatprep.subr.bf16.mxu0 0
    %1506 = vmatpush1.bf16.msra.mxu0 0
    %1507 = vmatprep.subr.bf16.mxu0 0
    %1508 = vmatpush1.bf16.msra.mxu0 0
    %1509 = vmatprep.subr.bf16.mxu0 0
    %1510 = vmatpush1.bf16.msra.mxu0 0
    %1511 = vmatprep.subr.bf16.mxu0 0
    %1512 = vmatpush1.bf16.msra.mxu0 0
    %1513 = vmatprep.subr.bf16.mxu0 0
    %1514 = vmatpush1.bf16.msra.mxu0 0
    %1515 = vmatprep.mubr.bf16.mxu0 0
    %1516 = vmatmul.mubr.bf16.gmra.mrb[0].mxu0 %v1416
    %v1517 = vpop.f32.mrb[0].mxu0
    %v1518 = vadd.f32 0.0, %v1517
    %v1519 = vpop.f32.mrb[0].mxu0
    %v1520 = vpop.f32.mrb[0].mxu0
    %v1521 = vadd.f32 0.0, %v1520
    %v1522 = vpop.f32.mrb[0].mxu0
    %1523 = vmatprep.mubr.bf16.mxu0 0
    %1524 = vmatmul.mubr.bf16.gmra.mrb[0].mxu0 %v1417
    %v1525 = vpop.f32.mrb[0].mxu0
    %v1526 = vadd.f32 0.0, %v1525
    %v1527 = vpop.f32.mrb[0].mxu0
    %v1528 = vpop.f32.mrb[0].mxu0
    %v1529 = vadd.f32 0.0, %v1528
    %v1530 = vpop.f32.mrb[0].mxu0
    %1531 = vdwg.mxu0
    %v1532 = vadd.f32 %v1346, %v1518
    %v1533 = vadd.f32 %v1347, %v1521
    %v1534 = vadd.f32 %v1348, %v1526
    %v1535 = vadd.f32 %v1349, %v1529
    %s1536 = scalar_lea.vmem %s4, 96
    %v1537 = vld [vmem:[%s1536] sm:$0xf]
    %v1538 = vld [vmem:[%s1536 + $0x4] sm:$0xf]
    %v1539 = vld [vmem:[%s1536 + $0x8] sm:$0xf]
    %v1540 = vld [vmem:[%s1536 + $0xc] sm:$0xf]
    %v1545 = vunpack.c.l.b16 %v1537
    %v1546 = vunpack.c.l.b16 %v1538
    %v1547 = vunpack.c.l.b16 %v1539
    %v1548 = vunpack.c.l.b16 %v1540
    %v1549 = vpack.c.b16 %v1546, %v1545
    %v1550 = vpack.c.b16 %v1548, %v1547
    %1553 = vmatprep.subr.bf16.mxu0 0
    %1554 = vmatpush1.bf16.msra.mxu0 %v422
    %1555 = vmatprep.subr.bf16.mxu0 0
    %1556 = vmatpush1.bf16.msra.mxu0 %v423
    %1557 = vmatprep.subr.bf16.mxu0 0
    %1558 = vmatpush1.bf16.msra.mxu0 %v424
    %1559 = vmatprep.subr.bf16.mxu0 0
    %1560 = vmatpush1.bf16.msra.mxu0 %v425
    %1561 = vmatprep.subr.bf16.mxu0 0
    %1562 = vmatpush1.bf16.msra.mxu0 %v426
    %1563 = vmatprep.subr.bf16.mxu0 0
    %1564 = vmatpush1.bf16.msra.mxu0 %v427
    %1565 = vmatprep.subr.bf16.mxu0 0
    %1566 = vmatpush1.bf16.msra.mxu0 %v428
    %1567 = vmatprep.subr.bf16.mxu0 0
    %1568 = vmatpush1.bf16.msra.mxu0 %v429
    %1569 = vmatprep.subr.bf16.mxu0 0
    %1570 = vmatpush1.bf16.msra.mxu0 0
    %1571 = vmatprep.subr.bf16.mxu0 0
    %1572 = vmatpush1.bf16.msra.mxu0 0
    %1573 = vmatprep.subr.bf16.mxu0 0
    %1574 = vmatpush1.bf16.msra.mxu0 0
    %1575 = vmatprep.subr.bf16.mxu0 0
    %1576 = vmatpush1.bf16.msra.mxu0 0
    %1577 = vmatprep.subr.bf16.mxu0 0
    %1578 = vmatpush1.bf16.msra.mxu0 0
    %1579 = vmatprep.subr.bf16.mxu0 0
    %1580 = vmatpush1.bf16.msra.mxu0 0
    %1581 = vmatprep.subr.bf16.mxu0 0
    %1582 = vmatpush1.bf16.msra.mxu0 0
    %1583 = vmatprep.subr.bf16.mxu0 0
    %1584 = vmatpush1.bf16.msra.mxu0 0
    %1585 = vmatprep.mubr.bf16.mxu0 0
    %1586 = vmatmul.mubr.bf16.gmra.mrb[0].mxu0 %v1549
    %v1587 = vpop.f32.mrb[0].mxu0
    %v1588 = vadd.f32 0.0, %v1587
    %v1589 = vpop.f32.mrb[0].mxu0
    %v1590 = vpop.f32.mrb[0].mxu0
    %v1591 = vadd.f32 0.0, %v1590
    %v1592 = vpop.f32.mrb[0].mxu0
    %1593 = vmatprep.mubr.bf16.mxu0 0
    %1594 = vmatmul.mubr.bf16.gmra.mrb[0].mxu0 %v1550
    %v1595 = vpop.f32.mrb[0].mxu0
    %v1596 = vadd.f32 0.0, %v1595
    %v1597 = vpop.f32.mrb[0].mxu0
    %v1598 = vpop.f32.mrb[0].mxu0
    %v1599 = vadd.f32 0.0, %v1598
    %v1600 = vpop.f32.mrb[0].mxu0
    %1601 = vdwg.mxu0
    %v1602 = vpack.c.bf16 %v1591, %v1588
    %v1603 = vpack.c.bf16 %v1599, %v1596
    %s1604 = scalar_lea.vmem %s5, 384
    %v1605 = vld [vmem:[%s1604] sm:$0xf]
    %v1606 = vld [vmem:[%s1604 + $0x4] sm:$0xf]
    %v1607 = vld [vmem:[%s1604 + $0x8] sm:$0xf]
    %v1608 = vld [vmem:[%s1604 + $0xc] sm:$0xf]
    %v1609 = vld [vmem:[%s1604 + $0x10] sm:$0xf]
    %v1610 = vld [vmem:[%s1604 + $0x14] sm:$0xf]
    %v1611 = vld [vmem:[%s1604 + $0x18] sm:$0xf]
    %v1612 = vld [vmem:[%s1604 + $0x1c] sm:$0xf]
    %v1613 = vld [vmem:[%s1604 + $0x20] sm:$0xf]
    %v1614 = vld [vmem:[%s1604 + $0x24] sm:$0xf]
    %v1615 = vld [vmem:[%s1604 + $0x28] sm:$0xf]
    %v1616 = vld [vmem:[%s1604 + $0x2c] sm:$0xf]
    %v1617 = vld [vmem:[%s1604 + $0x30] sm:$0xf]
    %v1618 = vld [vmem:[%s1604 + $0x34] sm:$0xf]
    %v1619 = vld [vmem:[%s1604 + $0x38] sm:$0xf]
    %v1620 = vld [vmem:[%s1604 + $0x3c] sm:$0xf]
    %v1637 = vunpack.c.l.b16 %v1605
    %v1638 = vunpack.c.l.b16 %v1606
    %v1639 = vunpack.c.l.b16 %v1607
    %v1640 = vunpack.c.l.b16 %v1608
    %v1641 = vunpack.c.l.b16 %v1609
    %v1642 = vunpack.c.l.b16 %v1610
    %v1643 = vunpack.c.l.b16 %v1611
    %v1644 = vunpack.c.l.b16 %v1612
    %v1645 = vunpack.c.l.b16 %v1613
    %v1646 = vunpack.c.l.b16 %v1614
    %v1647 = vunpack.c.l.b16 %v1615
    %v1648 = vunpack.c.l.b16 %v1616
    %v1649 = vunpack.c.l.b16 %v1617
    %v1650 = vunpack.c.l.b16 %v1618
    %v1651 = vunpack.c.l.b16 %v1619
    %v1652 = vunpack.c.l.b16 %v1620
    %v1653 = vpack.c.b16 %v1638, %v1637
    %v1654 = vpack.c.b16 %v1640, %v1639
    %v1655 = vpack.c.b16 %v1642, %v1641
    %v1656 = vpack.c.b16 %v1644, %v1643
    %v1657 = vpack.c.b16 %v1646, %v1645
    %v1658 = vpack.c.b16 %v1648, %v1647
    %v1659 = vpack.c.b16 %v1650, %v1649
    %v1660 = vpack.c.b16 %v1652, %v1651
    %1669 = vmatprep.subr.bf16.mxu0 0
    %1670 = vmatpush1.bf16.msra.mxu0 %v1653
    %1671 = vmatprep.subr.bf16.mxu0 0
    %1672 = vmatpush1.bf16.msra.mxu0 %v1654
    %1673 = vmatprep.subr.bf16.mxu0 0
    %1674 = vmatpush1.bf16.msra.mxu0 %v1655
    %1675 = vmatprep.subr.bf16.mxu0 0
    %1676 = vmatpush1.bf16.msra.mxu0 %v1656
    %1677 = vmatprep.subr.bf16.mxu0 0
    %1678 = vmatpush1.bf16.msra.mxu0 %v1657
    %1679 = vmatprep.subr.bf16.mxu0 0
    %1680 = vmatpush1.bf16.msra.mxu0 %v1658
    %1681 = vmatprep.subr.bf16.mxu0 0
    %1682 = vmatpush1.bf16.msra.mxu0 %v1659
    %1683 = vmatprep.subr.bf16.mxu0 0
    %1684 = vmatpush1.bf16.msra.mxu0 %v1660
    %1685 = vmatprep.subr.bf16.mxu0 0
    %1686 = vmatpush1.bf16.msra.mxu0 0
    %1687 = vmatprep.subr.bf16.mxu0 0
    %1688 = vmatpush1.bf16.msra.mxu0 0
    %1689 = vmatprep.subr.bf16.mxu0 0
    %1690 = vmatpush1.bf16.msra.mxu0 0
    %1691 = vmatprep.subr.bf16.mxu0 0
    %1692 = vmatpush1.bf16.msra.mxu0 0
    %1693 = vmatprep.subr.bf16.mxu0 0
    %1694 = vmatpush1.bf16.msra.mxu0 0
    %1695 = vmatprep.subr.bf16.mxu0 0
    %1696 = vmatpush1.bf16.msra.mxu0 0
    %1697 = vmatprep.subr.bf16.mxu0 0
    %1698 = vmatpush1.bf16.msra.mxu0 0
    %1699 = vmatprep.subr.bf16.mxu0 0
    %1700 = vmatpush1.bf16.msra.mxu0 0
    %1701 = vmatprep.mubr.bf16.mxu0 0
    %1702 = vmatmul.mubr.bf16.gmra.mrb[0].mxu0 %v1602
    %v1703 = vpop.f32.mrb[0].mxu0
    %v1704 = vadd.f32 0.0, %v1703
    %v1705 = vpop.f32.mrb[0].mxu0
    %v1706 = vpop.f32.mrb[0].mxu0
    %v1707 = vadd.f32 0.0, %v1706
    %v1708 = vpop.f32.mrb[0].mxu0
    %1709 = vmatprep.mubr.bf16.mxu0 0
    %1710 = vmatmul.mubr.bf16.gmra.mrb[0].mxu0 %v1603
    %v1711 = vpop.f32.mrb[0].mxu0
    %v1712 = vadd.f32 0.0, %v1711
    %v1713 = vpop.f32.mrb[0].mxu0
    %v1714 = vpop.f32.mrb[0].mxu0
    %v1715 = vadd.f32 0.0, %v1714
    %v1716 = vpop.f32.mrb[0].mxu0
    %1717 = vdwg.mxu0
    %v1718 = vadd.f32 %v1532, %v1704
    %v1719 = vadd.f32 %v1533, %v1707
    %v1720 = vadd.f32 %v1534, %v1712
    %v1721 = vadd.f32 %v1535, %v1715
    %s1722 = scalar_lea.vmem %s4, 112
    %v1723 = vld [vmem:[%s1722] sm:$0xf]
    %v1724 = vld [vmem:[%s1722 + $0x4] sm:$0xf]
    %v1725 = vld [vmem:[%s1722 + $0x8] sm:$0xf]
    %v1726 = vld [vmem:[%s1722 + $0xc] sm:$0xf]
    %v1731 = vunpack.c.l.b16 %v1723
    %v1732 = vunpack.c.l.b16 %v1724
    %v1733 = vunpack.c.l.b16 %v1725
    %v1734 = vunpack.c.l.b16 %v1726
    %v1735 = vpack.c.b16 %v1732, %v1731
    %v1736 = vpack.c.b16 %v1734, %v1733
    %1739 = vmatprep.subr.bf16.mxu0 0
    %1740 = vmatpush1.bf16.msra.mxu0 %v422
    %1741 = vmatprep.subr.bf16.mxu0 0
    %1742 = vmatpush1.bf16.msra.mxu0 %v423
    %1743 = vmatprep.subr.bf16.mxu0 0
    %1744 = vmatpush1.bf16.msra.mxu0 %v424
    %1745 = vmatprep.subr.bf16.mxu0 0
    %1746 = vmatpush1.bf16.msra.mxu0 %v425
    %1747 = vmatprep.subr.bf16.mxu0 0
    %1748 = vmatpush1.bf16.msra.mxu0 %v426
    %1749 = vmatprep.subr.bf16.mxu0 0
    %1750 = vmatpush1.bf16.msra.mxu0 %v427
    %1751 = vmatprep.subr.bf16.mxu0 0
    %1752 = vmatpush1.bf16.msra.mxu0 %v428
    %1753 = vmatprep.subr.bf16.mxu0 0
    %1754 = vmatpush1.bf16.msra.mxu0 %v429
    %1755 = vmatprep.subr.bf16.mxu0 0
    %1756 = vmatpush1.bf16.msra.mxu0 0
    %1757 = vmatprep.subr.bf16.mxu0 0
    %1758 = vmatpush1.bf16.msra.mxu0 0
    %1759 = vmatprep.subr.bf16.mxu0 0
    %1760 = vmatpush1.bf16.msra.mxu0 0
    %1761 = vmatprep.subr.bf16.mxu0 0
    %1762 = vmatpush1.bf16.msra.mxu0 0
    %1763 = vmatprep.subr.bf16.mxu0 0
    %1764 = vmatpush1.bf16.msra.mxu0 0
    %1765 = vmatprep.subr.bf16.mxu0 0
    %1766 = vmatpush1.bf16.msra.mxu0 0
    %1767 = vmatprep.subr.bf16.mxu0 0
    %1768 = vmatpush1.bf16.msra.mxu0 0
    %1769 = vmatprep.subr.bf16.mxu0 0
    %1770 = vmatpush1.bf16.msra.mxu0 0
    %1771 = vmatprep.mubr.bf16.mxu0 0
    %1772 = vmatmul.mubr.bf16.gmra.mrb[0].mxu0 %v1735
    %v1773 = vpop.f32.mrb[0].mxu0
    %v1774 = vadd.f32 0.0, %v1773
    %v1775 = vpop.f32.mrb[0].mxu0
    %v1776 = vpop.f32.mrb[0].mxu0
    %v1777 = vadd.f32 0.0, %v1776
    %v1778 = vpop.f32.mrb[0].mxu0
    %1779 = vmatprep.mubr.bf16.mxu0 0
    %1780 = vmatmul.mubr.bf16.gmra.mrb[0].mxu0 %v1736
    %v1781 = vpop.f32.mrb[0].mxu0
    %v1782 = vadd.f32 0.0, %v1781
    %v1783 = vpop.f32.mrb[0].mxu0
    %v1784 = vpop.f32.mrb[0].mxu0
    %v1785 = vadd.f32 0.0, %v1784
    %v1786 = vpop.f32.mrb[0].mxu0
    %1787 = vdwg.mxu0
    %v1788 = vpack.c.bf16 %v1777, %v1774
    %v1789 = vpack.c.bf16 %v1785, %v1782
    %s1790 = scalar_lea.vmem %s5, 448
    %v1791 = vld [vmem:[%s1790] sm:$0xf]
    %v1792 = vld [vmem:[%s1790 + $0x4] sm:$0xf]
    %v1793 = vld [vmem:[%s1790 + $0x8] sm:$0xf]
    %v1794 = vld [vmem:[%s1790 + $0xc] sm:$0xf]
    %v1795 = vld [vmem:[%s1790 + $0x10] sm:$0xf]
    %v1796 = vld [vmem:[%s1790 + $0x14] sm:$0xf]
    %v1797 = vld [vmem:[%s1790 + $0x18] sm:$0xf]
    %v1798 = vld [vmem:[%s1790 + $0x1c] sm:$0xf]
    %v1799 = vld [vmem:[%s1790 + $0x20] sm:$0xf]
    %v1800 = vld [vmem:[%s1790 + $0x24] sm:$0xf]
    %v1801 = vld [vmem:[%s1790 + $0x28] sm:$0xf]
    %v1802 = vld [vmem:[%s1790 + $0x2c] sm:$0xf]
    %v1803 = vld [vmem:[%s1790 + $0x30] sm:$0xf]
    %v1804 = vld [vmem:[%s1790 + $0x34] sm:$0xf]
    %v1805 = vld [vmem:[%s1790 + $0x38] sm:$0xf]
    %v1806 = vld [vmem:[%s1790 + $0x3c] sm:$0xf]
    %v1823 = vunpack.c.l.b16 %v1791
    %v1824 = vunpack.c.l.b16 %v1792
    %v1825 = vunpack.c.l.b16 %v1793
    %v1826 = vunpack.c.l.b16 %v1794
    %v1827 = vunpack.c.l.b16 %v1795
    %v1828 = vunpack.c.l.b16 %v1796
    %v1829 = vunpack.c.l.b16 %v1797
    %v1830 = vunpack.c.l.b16 %v1798
    %v1831 = vunpack.c.l.b16 %v1799
    %v1832 = vunpack.c.l.b16 %v1800
    %v1833 = vunpack.c.l.b16 %v1801
    %v1834 = vunpack.c.l.b16 %v1802
    %v1835 = vunpack.c.l.b16 %v1803
    %v1836 = vunpack.c.l.b16 %v1804
    %v1837 = vunpack.c.l.b16 %v1805
    %v1838 = vunpack.c.l.b16 %v1806
    %v1839 = vpack.c.b16 %v1824, %v1823
    %v1840 = vpack.c.b16 %v1826, %v1825
    %v1841 = vpack.c.b16 %v1828, %v1827
    %v1842 = vpack.c.b16 %v1830, %v1829
    %v1843 = vpack.c.b16 %v1832, %v1831
    %v1844 = vpack.c.b16 %v1834, %v1833
    %v1845 = vpack.c.b16 %v1836, %v1835
    %v1846 = vpack.c.b16 %v1838, %v1837
    %1855 = vmatprep.subr.bf16.mxu0 0
    %1856 = vmatpush1.bf16.msra.mxu0 %v1839
    %1857 = vmatprep.subr.bf16.mxu0 0
    %1858 = vmatpush1.bf16.msra.mxu0 %v1840
    %1859 = vmatprep.subr.bf16.mxu0 0
    %1860 = vmatpush1.bf16.msra.mxu0 %v1841
    %1861 = vmatprep.subr.bf16.mxu0 0
    %1862 = vmatpush1.bf16.msra.mxu0 %v1842
    %1863 = vmatprep.subr.bf16.mxu0 0
    %1864 = vmatpush1.bf16.msra.mxu0 %v1843
    %1865 = vmatprep.subr.bf16.mxu0 0
    %1866 = vmatpush1.bf16.msra.mxu0 %v1844
    %1867 = vmatprep.subr.bf16.mxu0 0
    %1868 = vmatpush1.bf16.msra.mxu0 %v1845
    %1869 = vmatprep.subr.bf16.mxu0 0
    %1870 = vmatpush1.bf16.msra.mxu0 %v1846
    %1871 = vmatprep.subr.bf16.mxu0 0
    %1872 = vmatpush1.bf16.msra.mxu0 0
    %1873 = vmatprep.subr.bf16.mxu0 0
    %1874 = vmatpush1.bf16.msra.mxu0 0
    %1875 = vmatprep.subr.bf16.mxu0 0
    %1876 = vmatpush1.bf16.msra.mxu0 0
    %1877 = vmatprep.subr.bf16.mxu0 0
    %1878 = vmatpush1.bf16.msra.mxu0 0
    %1879 = vmatprep.subr.bf16.mxu0 0
    %1880 = vmatpush1.bf16.msra.mxu0 0
    %1881 = vmatprep.subr.bf16.mxu0 0
    %1882 = vmatpush1.bf16.msra.mxu0 0
    %1883 = vmatprep.subr.bf16.mxu0 0
    %1884 = vmatpush1.bf16.msra.mxu0 0
    %1885 = vmatprep.subr.bf16.mxu0 0
    %1886 = vmatpush1.bf16.msra.mxu0 0
    %1887 = vmatprep.mubr.bf16.mxu0 0
    %1888 = vmatmul.mubr.bf16.gmra.mrb[0].mxu0 %v1788
    %v1889 = vpop.f32.mrb[0].mxu0
    %v1890 = vadd.f32 0.0, %v1889
    %v1891 = vpop.f32.mrb[0].mxu0
    %v1892 = vpop.f32.mrb[0].mxu0
    %v1893 = vadd.f32 0.0, %v1892
    %v1894 = vpop.f32.mrb[0].mxu0
    %1895 = vmatprep.mubr.bf16.mxu0 0
    %1896 = vmatmul.mubr.bf16.gmra.mrb[0].mxu0 %v1789
    %v1897 = vpop.f32.mrb[0].mxu0
    %v1898 = vadd.f32 0.0, %v1897
    %v1899 = vpop.f32.mrb[0].mxu0
    %v1900 = vpop.f32.mrb[0].mxu0
    %v1901 = vadd.f32 0.0, %v1900
    %v1902 = vpop.f32.mrb[0].mxu0
    %1903 = vdwg.mxu0
    %v1904 = vadd.f32 %v1718, %v1890
    %v1905 = vadd.f32 %v1719, %v1893
    %v1906 = vadd.f32 %v1720, %v1898
    %v1907 = vadd.f32 %v1721, %v1901
    %s1908 = scalar_lea.vmem %s4, 128
    %v1909 = vld [vmem:[%s1908] sm:$0xf]
    %v1910 = vld [vmem:[%s1908 + $0x4] sm:$0xf]
    %v1911 = vld [vmem:[%s1908 + $0x8] sm:$0xf]
    %v1912 = vld [vmem:[%s1908 + $0xc] sm:$0xf]
    %v1917 = vunpack.c.l.b16 %v1909
    %v1918 = vunpack.c.l.b16 %v1910
    %v1919 = vunpack.c.l.b16 %v1911
    %v1920 = vunpack.c.l.b16 %v1912
    %v1921 = vpack.c.b16 %v1918, %v1917
    %v1922 = vpack.c.b16 %v1920, %v1919
    %1925 = vmatprep.subr.bf16.mxu0 0
    %1926 = vmatpush1.bf16.msra.mxu0 %v422
    %1927 = vmatprep.subr.bf16.mxu0 0
    %1928 = vmatpush1.bf16.msra.mxu0 %v423
    %1929 = vmatprep.subr.bf16.mxu0 0
    %1930 = vmatpush1.bf16.msra.mxu0 %v424
    %1931 = vmatprep.subr.bf16.mxu0 0
    %1932 = vmatpush1.bf16.msra.mxu0 %v425
    %1933 = vmatprep.subr.bf16.mxu0 0
    %1934 = vmatpush1.bf16.msra.mxu0 %v426
    %1935 = vmatprep.subr.bf16.mxu0 0
    %1936 = vmatpush1.bf16.msra.mxu0 %v427
    %1937 = vmatprep.subr.bf16.mxu0 0
    %1938 = vmatpush1.bf16.msra.mxu0 %v428
    %1939 = vmatprep.subr.bf16.mxu0 0
    %1940 = vmatpush1.bf16.msra.mxu0 %v429
    %1941 = vmatprep.subr.bf16.mxu0 0
    %1942 = vmatpush1.bf16.msra.mxu0 0
    %1943 = vmatprep.subr.bf16.mxu0 0
    %1944 = vmatpush1.bf16.msra.mxu0 0
    %1945 = vmatprep.subr.bf16.mxu0 0
    %1946 = vmatpush1.bf16.msra.mxu0 0
    %1947 = vmatprep.subr.bf16.mxu0 0
    %1948 = vmatpush1.bf16.msra.mxu0 0
    %1949 = vmatprep.subr.bf16.mxu0 0
    %1950 = vmatpush1.bf16.msra.mxu0 0
    %1951 = vmatprep.subr.bf16.mxu0 0
    %1952 = vmatpush1.bf16.msra.mxu0 0
    %1953 = vmatprep.subr.bf16.mxu0 0
    %1954 = vmatpush1.bf16.msra.mxu0 0
    %1955 = vmatprep.subr.bf16.mxu0 0
    %1956 = vmatpush1.bf16.msra.mxu0 0
    %1957 = vmatprep.mubr.bf16.mxu0 0
    %1958 = vmatmul.mubr.bf16.gmra.mrb[0].mxu0 %v1921
    %v1959 = vpop.f32.mrb[0].mxu0
    %v1960 = vadd.f32 0.0, %v1959
    %v1961 = vpop.f32.mrb[0].mxu0
    %v1962 = vpop.f32.mrb[0].mxu0
    %v1963 = vadd.f32 0.0, %v1962
    %v1964 = vpop.f32.mrb[0].mxu0
    %1965 = vmatprep.mubr.bf16.mxu0 0
    %1966 = vmatmul.mubr.bf16.gmra.mrb[0].mxu0 %v1922
    %v1967 = vpop.f32.mrb[0].mxu0
    %v1968 = vadd.f32 0.0, %v1967
    %v1969 = vpop.f32.mrb[0].mxu0
    %v1970 = vpop.f32.mrb[0].mxu0
    %v1971 = vadd.f32 0.0, %v1970
    %v1972 = vpop.f32.mrb[0].mxu0
    %1973 = vdwg.mxu0
    %v1974 = vpack.c.bf16 %v1963, %v1960
    %v1975 = vpack.c.bf16 %v1971, %v1968
    %s1976 = scalar_lea.vmem %s5, 512
    %v1977 = vld [vmem:[%s1976] sm:$0xf]
    %v1978 = vld [vmem:[%s1976 + $0x4] sm:$0xf]
    %v1979 = vld [vmem:[%s1976 + $0x8] sm:$0xf]
    %v1980 = vld [vmem:[%s1976 + $0xc] sm:$0xf]
    %v1981 = vld [vmem:[%s1976 + $0x10] sm:$0xf]
    %v1982 = vld [vmem:[%s1976 + $0x14] sm:$0xf]
    %v1983 = vld [vmem:[%s1976 + $0x18] sm:$0xf]
    %v1984 = vld [vmem:[%s1976 + $0x1c] sm:$0xf]
    %v1985 = vld [vmem:[%s1976 + $0x20] sm:$0xf]
    %v1986 = vld [vmem:[%s1976 + $0x24] sm:$0xf]
    %v1987 = vld [vmem:[%s1976 + $0x28] sm:$0xf]
    %v1988 = vld [vmem:[%s1976 + $0x2c] sm:$0xf]
    %v1989 = vld [vmem:[%s1976 + $0x30] sm:$0xf]
    %v1990 = vld [vmem:[%s1976 + $0x34] sm:$0xf]
    %v1991 = vld [vmem:[%s1976 + $0x38] sm:$0xf]
    %v1992 = vld [vmem:[%s1976 + $0x3c] sm:$0xf]
    %v2009 = vunpack.c.l.b16 %v1977
    %v2010 = vunpack.c.l.b16 %v1978
    %v2011 = vunpack.c.l.b16 %v1979
    %v2012 = vunpack.c.l.b16 %v1980
    %v2013 = vunpack.c.l.b16 %v1981
    %v2014 = vunpack.c.l.b16 %v1982
    %v2015 = vunpack.c.l.b16 %v1983
    %v2016 = vunpack.c.l.b16 %v1984
    %v2017 = vunpack.c.l.b16 %v1985
    %v2018 = vunpack.c.l.b16 %v1986
    %v2019 = vunpack.c.l.b16 %v1987
    %v2020 = vunpack.c.l.b16 %v1988
    %v2021 = vunpack.c.l.b16 %v1989
    %v2022 = vunpack.c.l.b16 %v1990
    %v2023 = vunpack.c.l.b16 %v1991
    %v2024 = vunpack.c.l.b16 %v1992
    %v2025 = vpack.c.b16 %v2010, %v2009
    %v2026 = vpack.c.b16 %v2012, %v2011
    %v2027 = vpack.c.b16 %v2014, %v2013
    %v2028 = vpack.c.b16 %v2016, %v2015
    %v2029 = vpack.c.b16 %v2018, %v2017
    %v2030 = vpack.c.b16 %v2020, %v2019
    %v2031 = vpack.c.b16 %v2022, %v2021
    %v2032 = vpack.c.b16 %v2024, %v2023
    %2041 = vmatprep.subr.bf16.mxu0 0
    %2042 = vmatpush1.bf16.msra.mxu0 %v2025
    %2043 = vmatprep.subr.bf16.mxu0 0
    %2044 = vmatpush1.bf16.msra.mxu0 %v2026
    %2045 = vmatprep.subr.bf16.mxu0 0
    %2046 = vmatpush1.bf16.msra.mxu0 %v2027
    %2047 = vmatprep.subr.bf16.mxu0 0
    %2048 = vmatpush1.bf16.msra.mxu0 %v2028
    %2049 = vmatprep.subr.bf16.mxu0 0
    %2050 = vmatpush1.bf16.msra.mxu0 %v2029
    %2051 = vmatprep.subr.bf16.mxu0 0
    %2052 = vmatpush1.bf16.msra.mxu0 %v2030
    %2053 = vmatprep.subr.bf16.mxu0 0
    %2054 = vmatpush1.bf16.msra.mxu0 %v2031
    %2055 = vmatprep.subr.bf16.mxu0 0
    %2056 = vmatpush1.bf16.msra.mxu0 %v2032
    %2057 = vmatprep.subr.bf16.mxu0 0
    %2058 = vmatpush1.bf16.msra.mxu0 0
    %2059 = vmatprep.subr.bf16.mxu0 0
    %2060 = vmatpush1.bf16.msra.mxu0 0
    %2061 = vmatprep.subr.bf16.mxu0 0
    %2062 = vmatpush1.bf16.msra.mxu0 0
    %2063 = vmatprep.subr.bf16.mxu0 0
    %2064 = vmatpush1.bf16.msra.mxu0 0
    %2065 = vmatprep.subr.bf16.mxu0 0
    %2066 = vmatpush1.bf16.msra.mxu0 0
    %2067 = vmatprep.subr.bf16.mxu0 0
    %2068 = vmatpush1.bf16.msra.mxu0 0
    %2069 = vmatprep.subr.bf16.mxu0 0
    %2070 = vmatpush1.bf16.msra.mxu0 0
    %2071 = vmatprep.subr.bf16.mxu0 0
    %2072 = vmatpush1.bf16.msra.mxu0 0
    %2073 = vmatprep.mubr.bf16.mxu0 0
    %2074 = vmatmul.mubr.bf16.gmra.mrb[0].mxu0 %v1974
    %v2075 = vpop.f32.mrb[0].mxu0
    %v2076 = vadd.f32 0.0, %v2075
    %v2077 = vpop.f32.mrb[0].mxu0
    %v2078 = vpop.f32.mrb[0].mxu0
    %v2079 = vadd.f32 0.0, %v2078
    %v2080 = vpop.f32.mrb[0].mxu0
    %2081 = vmatprep.mubr.bf16.mxu0 0
    %2082 = vmatmul.mubr.bf16.gmra.mrb[0].mxu0 %v1975
    %v2083 = vpop.f32.mrb[0].mxu0
    %v2084 = vadd.f32 0.0, %v2083
    %v2085 = vpop.f32.mrb[0].mxu0
    %v2086 = vpop.f32.mrb[0].mxu0
    %v2087 = vadd.f32 0.0, %v2086
    %v2088 = vpop.f32.mrb[0].mxu0
    %2089 = vdwg.mxu0
    %v2090 = vadd.f32 %v1904, %v2076
    %v2091 = vadd.f32 %v1905, %v2079
    %v2092 = vadd.f32 %v1906, %v2084
    %v2093 = vadd.f32 %v1907, %v2087
    %v2094 = vld [vmem:[%s6] sm:$0x1]
    %v2095 = vld [vmem:[%s7] sm:$0x1]
    %v2096 = vadd.f32 %v2090, %v2091
    %v2097 = vadd.f32 %v2096, %v2092
    %v2098 = vadd.f32 %v2097, %v2093
    %v2099 = vrot.slane %v2098, 4
    %v2100 = vadd.f32 %v2098, %v2099
    %v2101 = vrot.slane %v2100, 2
    %v2102 = vadd.f32 %v2100, %v2101
    %v2103 = vrot.slane %v2102, 1
    %v2104 = vadd.f32 %v2102, %v2103
    %v2105 = vrcp.pop 32.0
    %v2106 = vmul.f32 %v2104, %v2105
    %v2107 = vsub.f32 %v2090, %v2106
    %v2108 = vsub.f32 %v2091, %v2106
    %v2109 = vsub.f32 %v2092, %v2106
    %v2110 = vsub.f32 %v2093, %v2106
    %v2111 = vmul.f32 %v2107, %v2107
    %v2112 = vmul.f32 %v2108, %v2108
    %v2113 = vmul.f32 %v2109, %v2109
    %v2114 = vmul.f32 %v2110, %v2110
    %v2115 = vadd.f32 %v2111, %v2112
    %v2116 = vadd.f32 %v2115, %v2113
    %v2117 = vadd.f32 %v2116, %v2114
    %v2118 = vrot.slane %v2117, 4
    %v2119 = vadd.f32 %v2117, %v2118
    %v2120 = vrot.slane %v2119, 2
    %v2121 = vadd.f32 %v2119, %v2120
    %v2122 = vrot.slane %v2121, 1
    %v2123 = vadd.f32 %v2121, %v2122
    %v2124 = vmul.f32 %v2123, %v2105
    %v2125 = vadd.f32 %v2124, 1e-05
    %v2126 = vrsqrt.pop %v2125
    %v2127 = vmul.f32 %v2107, %v2126
    %v2128 = vmul.f32 %v2108, %v2126
    %v2129 = vmul.f32 %v2109, %v2126
    %v2130 = vmul.f32 %v2110, %v2126
    %v2132 = vlaneseq
    %v2133 = vshrl.u32 %v2132, 7
    %v2134 = vsub.s32 0, %v2133
    %v2135 = vrot.slane %v2094, %v2134
    %v2137 = vmul.f32 %v2127, %v2135
    %v2138 = vmul.f32 %v2128, %v2135
    %v2139 = vmul.f32 %v2129, %v2135
    %v2140 = vmul.f32 %v2130, %v2135
    %v2142 = vlaneseq
    %v2143 = vshrl.u32 %v2142, 7
    %v2144 = vsub.s32 0, %v2143
    %v2145 = vrot.slane %v2095, %v2144
    %v2147 = vadd.f32 %v2137, %v2145
    %v2148 = vadd.f32 %v2138, %v2145
    %v2149 = vadd.f32 %v2139, %v2145
    %v2150 = vadd.f32 %v2140, %v2145
    %v2151 = vmax.f32 %v2147, 0.0
    %v2152 = vmax.f32 %v2148, 0.0
    %v2153 = vmax.f32 %v2149, 0.0
    %v2154 = vmax.f32 %v2150, 0.0
    %v2155 = vpack.c.bf16 %v2152, %v2151
    %v2156 = vpack.c.bf16 %v2154, %v2153
    %v2157 = vld [vmem:[%s8] sm:$0xf]
    %vm2158 = vcmask 261120
    %v2160 = vsel %vm2158, %v2157, 0
    %2162 = vmatprep.subr.bf16.mxu0 0
    %2163 = vmatpush1.bf16.msra.mxu0 %v2155
    %2164 = vmatprep.subr.bf16.mxu0 0
    %2165 = vmatpush1.bf16.msra.mxu0 %v2156
    %2166 = vmatprep.subr.bf16.mxu0 0
    %2167 = vmatpush1.bf16.msra.mxu0 0
    %2168 = vmatprep.subr.bf16.mxu0 0
    %2169 = vmatpush1.bf16.msra.mxu0 0
    %2170 = vmatprep.subr.bf16.mxu0 0
    %2171 = vmatpush1.bf16.msra.mxu0 0
    %2172 = vmatprep.subr.bf16.mxu0 0
    %2173 = vmatpush1.bf16.msra.mxu0 0
    %2174 = vmatprep.subr.bf16.mxu0 0
    %2175 = vmatpush1.bf16.msra.mxu0 0
    %2176 = vmatprep.subr.bf16.mxu0 0
    %2177 = vmatpush1.bf16.msra.mxu0 0
    %2178 = vmatprep.subr.bf16.mxu0 0
    %2179 = vmatpush1.bf16.msra.mxu0 0
    %2180 = vmatprep.subr.bf16.mxu0 0
    %2181 = vmatpush1.bf16.msra.mxu0 0
    %2182 = vmatprep.subr.bf16.mxu0 0
    %2183 = vmatpush1.bf16.msra.mxu0 0
    %2184 = vmatprep.subr.bf16.mxu0 0
    %2185 = vmatpush1.bf16.msra.mxu0 0
    %2186 = vmatprep.subr.bf16.mxu0 0
    %2187 = vmatpush1.bf16.msra.mxu0 0
    %2188 = vmatprep.subr.bf16.mxu0 0
    %2189 = vmatpush1.bf16.msra.mxu0 0
    %2190 = vmatprep.subr.bf16.mxu0 0
    %2191 = vmatpush1.bf16.msra.mxu0 0
    %2192 = vmatprep.subr.bf16.mxu0 0
    %2193 = vmatpush1.bf16.msra.mxu0 0
    %2194 = vmatprep.mubr.bf16.mxu0 0
    %2195 = vmatmul.mubr.bf16.gmra.mrb[0].mxu0 %v2160
    %v2196 = vpop.f32.mrb[0].mxu0
    %v2197 = vadd.f32 0.0, %v2196
    %v2198 = vpop.f32.mrb[0].mxu0
    %v2199 = vpop.f32.mrb[0].mxu0
    %v2200 = vpop.f32.mrb[0].mxu0
    %2201 = vdwg.mxu0
    %v2202 = vpack.c.bf16 %v2197, %v2197
    %v2203 = vld [vmem:[%s9] sm:$0xf]
    %v2204 = vld [vmem:[%s9 + $0x4] sm:$0xf]
    %v2205 = vld [vmem:[%s9 + $0x8] sm:$0xf]
    %v2206 = vld [vmem:[%s9 + $0xc] sm:$0xf]
    %v2207 = vld [vmem:[%s9 + $0x10] sm:$0xf]
    %v2208 = vld [vmem:[%s9 + $0x14] sm:$0xf]
    %v2209 = vld [vmem:[%s9 + $0x18] sm:$0xf]
    %v2210 = vld [vmem:[%s9 + $0x1c] sm:$0xf]
    %v2211 = vld [vmem:[%s9 + $0x20] sm:$0xf]
    %v2212 = vld [vmem:[%s9 + $0x24] sm:$0xf]
    %v2213 = vld [vmem:[%s9 + $0x28] sm:$0xf]
    %v2214 = vld [vmem:[%s9 + $0x2c] sm:$0xf]
    %v2215 = vld [vmem:[%s9 + $0x30] sm:$0xf]
    %v2216 = vld [vmem:[%s9 + $0x34] sm:$0xf]
    %v2217 = vld [vmem:[%s9 + $0x38] sm:$0xf]
    %v2218 = vld [vmem:[%s9 + $0x3c] sm:$0xf]
    %s2219 = scalar_lea.vmem %s8, 4
    %v2220 = vld [vmem:[%s2219] sm:$0xf]
    %v2222 = vsel %vm2158, %v2220, 0
    %2224 = vmatprep.subr.bf16.mxu0 0
    %2225 = vmatpush1.bf16.msra.mxu0 %v2155
    %2226 = vmatprep.subr.bf16.mxu0 0
    %2227 = vmatpush1.bf16.msra.mxu0 %v2156
    %2228 = vmatprep.subr.bf16.mxu0 0
    %2229 = vmatpush1.bf16.msra.mxu0 0
    %2230 = vmatprep.subr.bf16.mxu0 0
    %2231 = vmatpush1.bf16.msra.mxu0 0
    %2232 = vmatprep.subr.bf16.mxu0 0
    %2233 = vmatpush1.bf16.msra.mxu0 0
    %2234 = vmatprep.subr.bf16.mxu0 0
    %2235 = vmatpush1.bf16.msra.mxu0 0
    %2236 = vmatprep.subr.bf16.mxu0 0
    %2237 = vmatpush1.bf16.msra.mxu0 0
    %2238 = vmatprep.subr.bf16.mxu0 0
    %2239 = vmatpush1.bf16.msra.mxu0 0
    %2240 = vmatprep.subr.bf16.mxu0 0
    %2241 = vmatpush1.bf16.msra.mxu0 0
    %2242 = vmatprep.subr.bf16.mxu0 0
    %2243 = vmatpush1.bf16.msra.mxu0 0
    %2244 = vmatprep.subr.bf16.mxu0 0
    %2245 = vmatpush1.bf16.msra.mxu0 0
    %2246 = vmatprep.subr.bf16.mxu0 0
    %2247 = vmatpush1.bf16.msra.mxu0 0
    %2248 = vmatprep.subr.bf16.mxu0 0
    %2249 = vmatpush1.bf16.msra.mxu0 0
    %2250 = vmatprep.subr.bf16.mxu0 0
    %2251 = vmatpush1.bf16.msra.mxu0 0
    %2252 = vmatprep.subr.bf16.mxu0 0
    %2253 = vmatpush1.bf16.msra.mxu0 0
    %2254 = vmatprep.subr.bf16.mxu0 0
    %2255 = vmatpush1.bf16.msra.mxu0 0
    %2256 = vmatprep.mubr.bf16.mxu0 0
    %2257 = vmatmul.mubr.bf16.gmra.mrb[0].mxu0 %v2222
    %v2258 = vpop.f32.mrb[0].mxu0
    %v2259 = vadd.f32 0.0, %v2258
    %v2260 = vpop.f32.mrb[0].mxu0
    %v2261 = vpop.f32.mrb[0].mxu0
    %v2262 = vpop.f32.mrb[0].mxu0
    %2263 = vdwg.mxu0
    %v2264 = vpack.c.bf16 %v2259, %v2259
    %s2265 = scalar_lea.vmem %s9, 64
    %v2266 = vld [vmem:[%s2265] sm:$0xf]
    %v2267 = vld [vmem:[%s2265 + $0x4] sm:$0xf]
    %v2268 = vld [vmem:[%s2265 + $0x8] sm:$0xf]
    %v2269 = vld [vmem:[%s2265 + $0xc] sm:$0xf]
    %v2270 = vld [vmem:[%s2265 + $0x10] sm:$0xf]
    %v2271 = vld [vmem:[%s2265 + $0x14] sm:$0xf]
    %v2272 = vld [vmem:[%s2265 + $0x18] sm:$0xf]
    %v2273 = vld [vmem:[%s2265 + $0x1c] sm:$0xf]
    %v2274 = vld [vmem:[%s2265 + $0x20] sm:$0xf]
    %v2275 = vld [vmem:[%s2265 + $0x24] sm:$0xf]
    %v2276 = vld [vmem:[%s2265 + $0x28] sm:$0xf]
    %v2277 = vld [vmem:[%s2265 + $0x2c] sm:$0xf]
    %v2278 = vld [vmem:[%s2265 + $0x30] sm:$0xf]
    %v2279 = vld [vmem:[%s2265 + $0x34] sm:$0xf]
    %v2280 = vld [vmem:[%s2265 + $0x38] sm:$0xf]
    %v2281 = vld [vmem:[%s2265 + $0x3c] sm:$0xf]
    %v2298 = vunpack.c.l.b16 %v2266
    %v2299 = vunpack.c.l.b16 %v2267
    %v2300 = vunpack.c.l.b16 %v2268
    %v2301 = vunpack.c.l.b16 %v2269
    %v2302 = vunpack.c.l.b16 %v2270
    %v2303 = vunpack.c.l.b16 %v2271
    %v2304 = vunpack.c.l.b16 %v2272
    %v2305 = vunpack.c.l.b16 %v2273
    %v2306 = vunpack.c.l.b16 %v2274
    %v2307 = vunpack.c.l.b16 %v2275
    %v2308 = vunpack.c.l.b16 %v2276
    %v2309 = vunpack.c.l.b16 %v2277
    %v2310 = vunpack.c.l.b16 %v2278
    %v2311 = vunpack.c.l.b16 %v2279
    %v2312 = vunpack.c.l.b16 %v2280
    %v2313 = vunpack.c.l.b16 %v2281
    %v2314 = vpack.c.b16 %v2299, %v2298
    %v2315 = vpack.c.b16 %v2301, %v2300
    %v2316 = vpack.c.b16 %v2303, %v2302
    %v2317 = vpack.c.b16 %v2305, %v2304
    %v2318 = vpack.c.b16 %v2307, %v2306
    %v2319 = vpack.c.b16 %v2309, %v2308
    %v2320 = vpack.c.b16 %v2311, %v2310
    %v2321 = vpack.c.b16 %v2313, %v2312
    %2330 = vmatprep.subr.bf16.mxu0 0
    %2331 = vmatpush1.bf16.msra.mxu0 %v2314
    %2332 = vmatprep.subr.bf16.mxu0 0
    %2333 = vmatpush1.bf16.msra.mxu0 %v2315
    %2334 = vmatprep.subr.bf16.mxu0 0
    %2335 = vmatpush1.bf16.msra.mxu0 %v2316
    %2336 = vmatprep.subr.bf16.mxu0 0
    %2337 = vmatpush1.bf16.msra.mxu0 %v2317
    %2338 = vmatprep.subr.bf16.mxu0 0
    %2339 = vmatpush1.bf16.msra.mxu0 %v2318
    %2340 = vmatprep.subr.bf16.mxu0 0
    %2341 = vmatpush1.bf16.msra.mxu0 %v2319
    %2342 = vmatprep.subr.bf16.mxu0 0
    %2343 = vmatpush1.bf16.msra.mxu0 %v2320
    %2344 = vmatprep.subr.bf16.mxu0 0
    %2345 = vmatpush1.bf16.msra.mxu0 %v2321
    %2346 = vmatprep.subr.bf16.mxu0 0
    %2347 = vmatpush1.bf16.msra.mxu0 0
    %2348 = vmatprep.subr.bf16.mxu0 0
    %2349 = vmatpush1.bf16.msra.mxu0 0
    %2350 = vmatprep.subr.bf16.mxu0 0
    %2351 = vmatpush1.bf16.msra.mxu0 0
    %2352 = vmatprep.subr.bf16.mxu0 0
    %2353 = vmatpush1.bf16.msra.mxu0 0
    %2354 = vmatprep.subr.bf16.mxu0 0
    %2355 = vmatpush1.bf16.msra.mxu0 0
    %2356 = vmatprep.subr.bf16.mxu0 0
    %2357 = vmatpush1.bf16.msra.mxu0 0
    %2358 = vmatprep.subr.bf16.mxu0 0
    %2359 = vmatpush1.bf16.msra.mxu0 0
    %2360 = vmatprep.subr.bf16.mxu0 0
    %2361 = vmatpush1.bf16.msra.mxu0 0
    %2362 = vmatprep.mubr.bf16.mxu0 0
    %2363 = vmatmul.mubr.bf16.gmra.mrb[0].mxu0 %v2264
    %v2364 = vpop.f32.mrb[0].mxu0
    %v2365 = vadd.f32 0.0, %v2364
    %v2366 = vpop.f32.mrb[0].mxu0
    %v2367 = vpop.f32.mrb[0].mxu0
    %v2368 = vpop.f32.mrb[0].mxu0
    %2369 = vdwg.mxu0
    %v2386 = vunpack.c.l.b16 %v2203
    %v2387 = vunpack.c.l.b16 %v2204
    %v2388 = vunpack.c.l.b16 %v2205
    %v2389 = vunpack.c.l.b16 %v2206
    %v2390 = vunpack.c.l.b16 %v2207
    %v2391 = vunpack.c.l.b16 %v2208
    %v2392 = vunpack.c.l.b16 %v2209
    %v2393 = vunpack.c.l.b16 %v2210
    %v2394 = vunpack.c.l.b16 %v2211
    %v2395 = vunpack.c.l.b16 %v2212
    %v2396 = vunpack.c.l.b16 %v2213
    %v2397 = vunpack.c.l.b16 %v2214
    %v2398 = vunpack.c.l.b16 %v2215
    %v2399 = vunpack.c.l.b16 %v2216
    %v2400 = vunpack.c.l.b16 %v2217
    %v2401 = vunpack.c.l.b16 %v2218
    %v2402 = vpack.c.b16 %v2387, %v2386
    %v2403 = vpack.c.b16 %v2389, %v2388
    %v2404 = vpack.c.b16 %v2391, %v2390
    %v2405 = vpack.c.b16 %v2393, %v2392
    %v2406 = vpack.c.b16 %v2395, %v2394
    %v2407 = vpack.c.b16 %v2397, %v2396
    %v2408 = vpack.c.b16 %v2399, %v2398
    %v2409 = vpack.c.b16 %v2401, %v2400
    %2418 = vmatprep.subr.bf16.mxu0 0
    %2419 = vmatpush1.bf16.msra.mxu0 %v2402
    %2420 = vmatprep.subr.bf16.mxu0 0
    %2421 = vmatpush1.bf16.msra.mxu0 %v2403
    %2422 = vmatprep.subr.bf16.mxu0 0
    %2423 = vmatpush1.bf16.msra.mxu0 %v2404
    %2424 = vmatprep.subr.bf16.mxu0 0
    %2425 = vmatpush1.bf16.msra.mxu0 %v2405
    %2426 = vmatprep.subr.bf16.mxu0 0
    %2427 = vmatpush1.bf16.msra.mxu0 %v2406
    %2428 = vmatprep.subr.bf16.mxu0 0
    %2429 = vmatpush1.bf16.msra.mxu0 %v2407
    %2430 = vmatprep.subr.bf16.mxu0 0
    %2431 = vmatpush1.bf16.msra.mxu0 %v2408
    %2432 = vmatprep.subr.bf16.mxu0 0
    %2433 = vmatpush1.bf16.msra.mxu0 %v2409
    %2434 = vmatprep.subr.bf16.mxu0 0
    %2435 = vmatpush1.bf16.msra.mxu0 0
    %2436 = vmatprep.subr.bf16.mxu0 0
    %2437 = vmatpush1.bf16.msra.mxu0 0
    %2438 = vmatprep.subr.bf16.mxu0 0
    %2439 = vmatpush1.bf16.msra.mxu0 0
    %2440 = vmatprep.subr.bf16.mxu0 0
    %2441 = vmatpush1.bf16.msra.mxu0 0
    %2442 = vmatprep.subr.bf16.mxu0 0
    %2443 = vmatpush1.bf16.msra.mxu0 0
    %2444 = vmatprep.subr.bf16.mxu0 0
    %2445 = vmatpush1.bf16.msra.mxu0 0
    %2446 = vmatprep.subr.bf16.mxu0 0
    %2447 = vmatpush1.bf16.msra.mxu0 0
    %2448 = vmatprep.subr.bf16.mxu0 0
    %2449 = vmatpush1.bf16.msra.mxu0 0
    %2450 = vmatprep.mubr.bf16.mxu0 0
    %2451 = vmatmul.mubr.bf16.gmra.mrb[0].mxu0 %v2202
    %v2452 = vpop.f32.mrb[0].mxu0
    %v2453 = vadd.f32 %v2365, %v2452
    %v2454 = vpop.f32.mrb[0].mxu0
    %v2455 = vpop.f32.mrb[0].mxu0
    %v2456 = vpop.f32.mrb[0].mxu0
    %2457 = vdwg.mxu0
    %s2458 = scalar_lea.vmem %s8, 8
    %v2459 = vld [vmem:[%s2458] sm:$0xf]
    %v2461 = vsel %vm2158, %v2459, 0
    %2463 = vmatprep.subr.bf16.mxu0 0
    %2464 = vmatpush1.bf16.msra.mxu0 %v2155
    %2465 = vmatprep.subr.bf16.mxu0 0
    %2466 = vmatpush1.bf16.msra.mxu0 %v2156
    %2467 = vmatprep.subr.bf16.mxu0 0
    %2468 = vmatpush1.bf16.msra.mxu0 0
    %2469 = vmatprep.subr.bf16.mxu0 0
    %2470 = vmatpush1.bf16.msra.mxu0 0
    %2471 = vmatprep.subr.bf16.mxu0 0
    %2472 = vmatpush1.bf16.msra.mxu0 0
    %2473 = vmatprep.subr.bf16.mxu0 0
    %2474 = vmatpush1.bf16.msra.mxu0 0
    %2475 = vmatprep.subr.bf16.mxu0 0
    %2476 = vmatpush1.bf16.msra.mxu0 0
    %2477 = vmatprep.subr.bf16.mxu0 0
    %2478 = vmatpush1.bf16.msra.mxu0 0
    %2479 = vmatprep.subr.bf16.mxu0 0
    %2480 = vmatpush1.bf16.msra.mxu0 0
    %2481 = vmatprep.subr.bf16.mxu0 0
    %2482 = vmatpush1.bf16.msra.mxu0 0
    %2483 = vmatprep.subr.bf16.mxu0 0
    %2484 = vmatpush1.bf16.msra.mxu0 0
    %2485 = vmatprep.subr.bf16.mxu0 0
    %2486 = vmatpush1.bf16.msra.mxu0 0
    %2487 = vmatprep.subr.bf16.mxu0 0
    %2488 = vmatpush1.bf16.msra.mxu0 0
    %2489 = vmatprep.subr.bf16.mxu0 0
    %2490 = vmatpush1.bf16.msra.mxu0 0
    %2491 = vmatprep.subr.bf16.mxu0 0
    %2492 = vmatpush1.bf16.msra.mxu0 0
    %2493 = vmatprep.subr.bf16.mxu0 0
    %2494 = vmatpush1.bf16.msra.mxu0 0
    %2495 = vmatprep.mubr.bf16.mxu0 0
    %2496 = vmatmul.mubr.bf16.gmra.mrb[0].mxu0 %v2461
    %v2497 = vpop.f32.mrb[0].mxu0
    %v2498 = vadd.f32 0.0, %v2497
    %v2499 = vpop.f32.mrb[0].mxu0
    %v2500 = vpop.f32.mrb[0].mxu0
    %v2501 = vpop.f32.mrb[0].mxu0
    %2502 = vdwg.mxu0
    %v2503 = vpack.c.bf16 %v2498, %v2498
    %s2504 = scalar_lea.vmem %s9, 128
    %v2505 = vld [vmem:[%s2504] sm:$0xf]
    %v2506 = vld [vmem:[%s2504 + $0x4] sm:$0xf]
    %v2507 = vld [vmem:[%s2504 + $0x8] sm:$0xf]
    %v2508 = vld [vmem:[%s2504 + $0xc] sm:$0xf]
    %v2509 = vld [vmem:[%s2504 + $0x10] sm:$0xf]
    %v2510 = vld [vmem:[%s2504 + $0x14] sm:$0xf]
    %v2511 = vld [vmem:[%s2504 + $0x18] sm:$0xf]
    %v2512 = vld [vmem:[%s2504 + $0x1c] sm:$0xf]
    %v2513 = vld [vmem:[%s2504 + $0x20] sm:$0xf]
    %v2514 = vld [vmem:[%s2504 + $0x24] sm:$0xf]
    %v2515 = vld [vmem:[%s2504 + $0x28] sm:$0xf]
    %v2516 = vld [vmem:[%s2504 + $0x2c] sm:$0xf]
    %v2517 = vld [vmem:[%s2504 + $0x30] sm:$0xf]
    %v2518 = vld [vmem:[%s2504 + $0x34] sm:$0xf]
    %v2519 = vld [vmem:[%s2504 + $0x38] sm:$0xf]
    %v2520 = vld [vmem:[%s2504 + $0x3c] sm:$0xf]
    %v2537 = vunpack.c.l.b16 %v2505
    %v2538 = vunpack.c.l.b16 %v2506
    %v2539 = vunpack.c.l.b16 %v2507
    %v2540 = vunpack.c.l.b16 %v2508
    %v2541 = vunpack.c.l.b16 %v2509
    %v2542 = vunpack.c.l.b16 %v2510
    %v2543 = vunpack.c.l.b16 %v2511
    %v2544 = vunpack.c.l.b16 %v2512
    %v2545 = vunpack.c.l.b16 %v2513
    %v2546 = vunpack.c.l.b16 %v2514
    %v2547 = vunpack.c.l.b16 %v2515
    %v2548 = vunpack.c.l.b16 %v2516
    %v2549 = vunpack.c.l.b16 %v2517
    %v2550 = vunpack.c.l.b16 %v2518
    %v2551 = vunpack.c.l.b16 %v2519
    %v2552 = vunpack.c.l.b16 %v2520
    %v2553 = vpack.c.b16 %v2538, %v2537
    %v2554 = vpack.c.b16 %v2540, %v2539
    %v2555 = vpack.c.b16 %v2542, %v2541
    %v2556 = vpack.c.b16 %v2544, %v2543
    %v2557 = vpack.c.b16 %v2546, %v2545
    %v2558 = vpack.c.b16 %v2548, %v2547
    %v2559 = vpack.c.b16 %v2550, %v2549
    %v2560 = vpack.c.b16 %v2552, %v2551
    %2569 = vmatprep.subr.bf16.mxu0 0
    %2570 = vmatpush1.bf16.msra.mxu0 %v2553
    %2571 = vmatprep.subr.bf16.mxu0 0
    %2572 = vmatpush1.bf16.msra.mxu0 %v2554
    %2573 = vmatprep.subr.bf16.mxu0 0
    %2574 = vmatpush1.bf16.msra.mxu0 %v2555
    %2575 = vmatprep.subr.bf16.mxu0 0
    %2576 = vmatpush1.bf16.msra.mxu0 %v2556
    %2577 = vmatprep.subr.bf16.mxu0 0
    %2578 = vmatpush1.bf16.msra.mxu0 %v2557
    %2579 = vmatprep.subr.bf16.mxu0 0
    %2580 = vmatpush1.bf16.msra.mxu0 %v2558
    %2581 = vmatprep.subr.bf16.mxu0 0
    %2582 = vmatpush1.bf16.msra.mxu0 %v2559
    %2583 = vmatprep.subr.bf16.mxu0 0
    %2584 = vmatpush1.bf16.msra.mxu0 %v2560
    %2585 = vmatprep.subr.bf16.mxu0 0
    %2586 = vmatpush1.bf16.msra.mxu0 0
    %2587 = vmatprep.subr.bf16.mxu0 0
    %2588 = vmatpush1.bf16.msra.mxu0 0
    %2589 = vmatprep.subr.bf16.mxu0 0
    %2590 = vmatpush1.bf16.msra.mxu0 0
    %2591 = vmatprep.subr.bf16.mxu0 0
    %2592 = vmatpush1.bf16.msra.mxu0 0
    %2593 = vmatprep.subr.bf16.mxu0 0
    %2594 = vmatpush1.bf16.msra.mxu0 0
    %2595 = vmatprep.subr.bf16.mxu0 0
    %2596 = vmatpush1.bf16.msra.mxu0 0
    %2597 = vmatprep.subr.bf16.mxu0 0
    %2598 = vmatpush1.bf16.msra.mxu0 0
    %2599 = vmatprep.subr.bf16.mxu0 0
    %2600 = vmatpush1.bf16.msra.mxu0 0
    %2601 = vmatprep.mubr.bf16.mxu0 0
    %2602 = vmatmul.mubr.bf16.gmra.mrb[0].mxu0 %v2503
    %v2603 = vpop.f32.mrb[0].mxu0
    %v2604 = vadd.f32 0.0, %v2603
    %v2605 = vpop.f32.mrb[0].mxu0
    %v2606 = vpop.f32.mrb[0].mxu0
    %v2607 = vpop.f32.mrb[0].mxu0
    %2608 = vdwg.mxu0
    %v2609 = vadd.f32 %v2453, %v2604
    %s2610 = scalar_lea.vmem %s8, 12
    %v2611 = vld [vmem:[%s2610] sm:$0xf]
    %v2613 = vsel %vm2158, %v2611, 0
    %2615 = vmatprep.subr.bf16.mxu0 0
    %2616 = vmatpush1.bf16.msra.mxu0 %v2155
    %2617 = vmatprep.subr.bf16.mxu0 0
    %2618 = vmatpush1.bf16.msra.mxu0 %v2156
    %2619 = vmatprep.subr.bf16.mxu0 0
    %2620 = vmatpush1.bf16.msra.mxu0 0
    %2621 = vmatprep.subr.bf16.mxu0 0
    %2622 = vmatpush1.bf16.msra.mxu0 0
    %2623 = vmatprep.subr.bf16.mxu0 0
    %2624 = vmatpush1.bf16.msra.mxu0 0
    %2625 = vmatprep.subr.bf16.mxu0 0
    %2626 = vmatpush1.bf16.msra.mxu0 0
    %2627 = vmatprep.subr.bf16.mxu0 0
    %2628 = vmatpush1.bf16.msra.mxu0 0
    %2629 = vmatprep.subr.bf16.mxu0 0
    %2630 = vmatpush1.bf16.msra.mxu0 0
    %2631 = vmatprep.subr.bf16.mxu0 0
    %2632 = vmatpush1.bf16.msra.mxu0 0
    %2633 = vmatprep.subr.bf16.mxu0 0
    %2634 = vmatpush1.bf16.msra.mxu0 0
    %2635 = vmatprep.subr.bf16.mxu0 0
    %2636 = vmatpush1.bf16.msra.mxu0 0
    %2637 = vmatprep.subr.bf16.mxu0 0
    %2638 = vmatpush1.bf16.msra.mxu0 0
    %2639 = vmatprep.subr.bf16.mxu0 0
    %2640 = vmatpush1.bf16.msra.mxu0 0
    %2641 = vmatprep.subr.bf16.mxu0 0
    %2642 = vmatpush1.bf16.msra.mxu0 0
    %2643 = vmatprep.subr.bf16.mxu0 0
    %2644 = vmatpush1.bf16.msra.mxu0 0
    %2645 = vmatprep.subr.bf16.mxu0 0
    %2646 = vmatpush1.bf16.msra.mxu0 0
    %2647 = vmatprep.mubr.bf16.mxu0 0
    %2648 = vmatmul.mubr.bf16.gmra.mrb[0].mxu0 %v2613
    %v2649 = vpop.f32.mrb[0].mxu0
    %v2650 = vadd.f32 0.0, %v2649
    %v2651 = vpop.f32.mrb[0].mxu0
    %v2652 = vpop.f32.mrb[0].mxu0
    %v2653 = vpop.f32.mrb[0].mxu0
    %2654 = vdwg.mxu0
    %v2655 = vpack.c.bf16 %v2650, %v2650
    %s2656 = scalar_lea.vmem %s9, 192
    %v2657 = vld [vmem:[%s2656] sm:$0xf]
    %v2658 = vld [vmem:[%s2656 + $0x4] sm:$0xf]
    %v2659 = vld [vmem:[%s2656 + $0x8] sm:$0xf]
    %v2660 = vld [vmem:[%s2656 + $0xc] sm:$0xf]
    %v2661 = vld [vmem:[%s2656 + $0x10] sm:$0xf]
    %v2662 = vld [vmem:[%s2656 + $0x14] sm:$0xf]
    %v2663 = vld [vmem:[%s2656 + $0x18] sm:$0xf]
    %v2664 = vld [vmem:[%s2656 + $0x1c] sm:$0xf]
    %v2665 = vld [vmem:[%s2656 + $0x20] sm:$0xf]
    %v2666 = vld [vmem:[%s2656 + $0x24] sm:$0xf]
    %v2667 = vld [vmem:[%s2656 + $0x28] sm:$0xf]
    %v2668 = vld [vmem:[%s2656 + $0x2c] sm:$0xf]
    %v2669 = vld [vmem:[%s2656 + $0x30] sm:$0xf]
    %v2670 = vld [vmem:[%s2656 + $0x34] sm:$0xf]
    %v2671 = vld [vmem:[%s2656 + $0x38] sm:$0xf]
    %v2672 = vld [vmem:[%s2656 + $0x3c] sm:$0xf]
    %v2689 = vunpack.c.l.b16 %v2657
    %v2690 = vunpack.c.l.b16 %v2658
    %v2691 = vunpack.c.l.b16 %v2659
    %v2692 = vunpack.c.l.b16 %v2660
    %v2693 = vunpack.c.l.b16 %v2661
    %v2694 = vunpack.c.l.b16 %v2662
    %v2695 = vunpack.c.l.b16 %v2663
    %v2696 = vunpack.c.l.b16 %v2664
    %v2697 = vunpack.c.l.b16 %v2665
    %v2698 = vunpack.c.l.b16 %v2666
    %v2699 = vunpack.c.l.b16 %v2667
    %v2700 = vunpack.c.l.b16 %v2668
    %v2701 = vunpack.c.l.b16 %v2669
    %v2702 = vunpack.c.l.b16 %v2670
    %v2703 = vunpack.c.l.b16 %v2671
    %v2704 = vunpack.c.l.b16 %v2672
    %v2705 = vpack.c.b16 %v2690, %v2689
    %v2706 = vpack.c.b16 %v2692, %v2691
    %v2707 = vpack.c.b16 %v2694, %v2693
    %v2708 = vpack.c.b16 %v2696, %v2695
    %v2709 = vpack.c.b16 %v2698, %v2697
    %v2710 = vpack.c.b16 %v2700, %v2699
    %v2711 = vpack.c.b16 %v2702, %v2701
    %v2712 = vpack.c.b16 %v2704, %v2703
    %2721 = vmatprep.subr.bf16.mxu0 0
    %2722 = vmatpush1.bf16.msra.mxu0 %v2705
    %2723 = vmatprep.subr.bf16.mxu0 0
    %2724 = vmatpush1.bf16.msra.mxu0 %v2706
    %2725 = vmatprep.subr.bf16.mxu0 0
    %2726 = vmatpush1.bf16.msra.mxu0 %v2707
    %2727 = vmatprep.subr.bf16.mxu0 0
    %2728 = vmatpush1.bf16.msra.mxu0 %v2708
    %2729 = vmatprep.subr.bf16.mxu0 0
    %2730 = vmatpush1.bf16.msra.mxu0 %v2709
    %2731 = vmatprep.subr.bf16.mxu0 0
    %2732 = vmatpush1.bf16.msra.mxu0 %v2710
    %2733 = vmatprep.subr.bf16.mxu0 0
    %2734 = vmatpush1.bf16.msra.mxu0 %v2711
    %2735 = vmatprep.subr.bf16.mxu0 0
    %2736 = vmatpush1.bf16.msra.mxu0 %v2712
    %2737 = vmatprep.subr.bf16.mxu0 0
    %2738 = vmatpush1.bf16.msra.mxu0 0
    %2739 = vmatprep.subr.bf16.mxu0 0
    %2740 = vmatpush1.bf16.msra.mxu0 0
    %2741 = vmatprep.subr.bf16.mxu0 0
    %2742 = vmatpush1.bf16.msra.mxu0 0
    %2743 = vmatprep.subr.bf16.mxu0 0
    %2744 = vmatpush1.bf16.msra.mxu0 0
    %2745 = vmatprep.subr.bf16.mxu0 0
    %2746 = vmatpush1.bf16.msra.mxu0 0
    %2747 = vmatprep.subr.bf16.mxu0 0
    %2748 = vmatpush1.bf16.msra.mxu0 0
    %2749 = vmatprep.subr.bf16.mxu0 0
    %2750 = vmatpush1.bf16.msra.mxu0 0
    %2751 = vmatprep.subr.bf16.mxu0 0
    %2752 = vmatpush1.bf16.msra.mxu0 0
    %2753 = vmatprep.mubr.bf16.mxu0 0
    %2754 = vmatmul.mubr.bf16.gmra.mrb[0].mxu0 %v2655
    %v2755 = vpop.f32.mrb[0].mxu0
    %v2756 = vadd.f32 0.0, %v2755
    %v2757 = vpop.f32.mrb[0].mxu0
    %v2758 = vpop.f32.mrb[0].mxu0
    %v2759 = vpop.f32.mrb[0].mxu0
    %2760 = vdwg.mxu0
    %v2761 = vadd.f32 %v2609, %v2756
    %s2762 = scalar_lea.vmem %s8, 16
    %v2763 = vld [vmem:[%s2762] sm:$0xf]
    %v2765 = vsel %vm2158, %v2763, 0
    %2767 = vmatprep.subr.bf16.mxu0 0
    %2768 = vmatpush1.bf16.msra.mxu0 %v2155
    %2769 = vmatprep.subr.bf16.mxu0 0
    %2770 = vmatpush1.bf16.msra.mxu0 %v2156
    %2771 = vmatprep.subr.bf16.mxu0 0
    %2772 = vmatpush1.bf16.msra.mxu0 0
    %2773 = vmatprep.subr.bf16.mxu0 0
    %2774 = vmatpush1.bf16.msra.mxu0 0
    %2775 = vmatprep.subr.bf16.mxu0 0
    %2776 = vmatpush1.bf16.msra.mxu0 0
    %2777 = vmatprep.subr.bf16.mxu0 0
    %2778 = vmatpush1.bf16.msra.mxu0 0
    %2779 = vmatprep.subr.bf16.mxu0 0
    %2780 = vmatpush1.bf16.msra.mxu0 0
    %2781 = vmatprep.subr.bf16.mxu0 0
    %2782 = vmatpush1.bf16.msra.mxu0 0
    %2783 = vmatprep.subr.bf16.mxu0 0
    %2784 = vmatpush1.bf16.msra.mxu0 0
    %2785 = vmatprep.subr.bf16.mxu0 0
    %2786 = vmatpush1.bf16.msra.mxu0 0
    %2787 = vmatprep.subr.bf16.mxu0 0
    %2788 = vmatpush1.bf16.msra.mxu0 0
    %2789 = vmatprep.subr.bf16.mxu0 0
    %2790 = vmatpush1.bf16.msra.mxu0 0
    %2791 = vmatprep.subr.bf16.mxu0 0
    %2792 = vmatpush1.bf16.msra.mxu0 0
    %2793 = vmatprep.subr.bf16.mxu0 0
    %2794 = vmatpush1.bf16.msra.mxu0 0
    %2795 = vmatprep.subr.bf16.mxu0 0
    %2796 = vmatpush1.bf16.msra.mxu0 0
    %2797 = vmatprep.subr.bf16.mxu0 0
    %2798 = vmatpush1.bf16.msra.mxu0 0
    %2799 = vmatprep.mubr.bf16.mxu0 0
    %2800 = vmatmul.mubr.bf16.gmra.mrb[0].mxu0 %v2765
    %v2801 = vpop.f32.mrb[0].mxu0
    %v2802 = vadd.f32 0.0, %v2801
    %v2803 = vpop.f32.mrb[0].mxu0
    %v2804 = vpop.f32.mrb[0].mxu0
    %v2805 = vpop.f32.mrb[0].mxu0
    %2806 = vdwg.mxu0
    %v2807 = vpack.c.bf16 %v2802, %v2802
    %s2808 = scalar_lea.vmem %s9, 256
    %v2809 = vld [vmem:[%s2808] sm:$0xf]
    %v2810 = vld [vmem:[%s2808 + $0x4] sm:$0xf]
    %v2811 = vld [vmem:[%s2808 + $0x8] sm:$0xf]
    %v2812 = vld [vmem:[%s2808 + $0xc] sm:$0xf]
    %v2813 = vld [vmem:[%s2808 + $0x10] sm:$0xf]
    %v2814 = vld [vmem:[%s2808 + $0x14] sm:$0xf]
    %v2815 = vld [vmem:[%s2808 + $0x18] sm:$0xf]
    %v2816 = vld [vmem:[%s2808 + $0x1c] sm:$0xf]
    %v2817 = vld [vmem:[%s2808 + $0x20] sm:$0xf]
    %v2818 = vld [vmem:[%s2808 + $0x24] sm:$0xf]
    %v2819 = vld [vmem:[%s2808 + $0x28] sm:$0xf]
    %v2820 = vld [vmem:[%s2808 + $0x2c] sm:$0xf]
    %v2821 = vld [vmem:[%s2808 + $0x30] sm:$0xf]
    %v2822 = vld [vmem:[%s2808 + $0x34] sm:$0xf]
    %v2823 = vld [vmem:[%s2808 + $0x38] sm:$0xf]
    %v2824 = vld [vmem:[%s2808 + $0x3c] sm:$0xf]
    %v2841 = vunpack.c.l.b16 %v2809
    %v2842 = vunpack.c.l.b16 %v2810
    %v2843 = vunpack.c.l.b16 %v2811
    %v2844 = vunpack.c.l.b16 %v2812
    %v2845 = vunpack.c.l.b16 %v2813
    %v2846 = vunpack.c.l.b16 %v2814
    %v2847 = vunpack.c.l.b16 %v2815
    %v2848 = vunpack.c.l.b16 %v2816
    %v2849 = vunpack.c.l.b16 %v2817
    %v2850 = vunpack.c.l.b16 %v2818
    %v2851 = vunpack.c.l.b16 %v2819
    %v2852 = vunpack.c.l.b16 %v2820
    %v2853 = vunpack.c.l.b16 %v2821
    %v2854 = vunpack.c.l.b16 %v2822
    %v2855 = vunpack.c.l.b16 %v2823
    %v2856 = vunpack.c.l.b16 %v2824
    %v2857 = vpack.c.b16 %v2842, %v2841
    %v2858 = vpack.c.b16 %v2844, %v2843
    %v2859 = vpack.c.b16 %v2846, %v2845
    %v2860 = vpack.c.b16 %v2848, %v2847
    %v2861 = vpack.c.b16 %v2850, %v2849
    %v2862 = vpack.c.b16 %v2852, %v2851
    %v2863 = vpack.c.b16 %v2854, %v2853
    %v2864 = vpack.c.b16 %v2856, %v2855
    %2873 = vmatprep.subr.bf16.mxu0 0
    %2874 = vmatpush1.bf16.msra.mxu0 %v2857
    %2875 = vmatprep.subr.bf16.mxu0 0
    %2876 = vmatpush1.bf16.msra.mxu0 %v2858
    %2877 = vmatprep.subr.bf16.mxu0 0
    %2878 = vmatpush1.bf16.msra.mxu0 %v2859
    %2879 = vmatprep.subr.bf16.mxu0 0
    %2880 = vmatpush1.bf16.msra.mxu0 %v2860
    %2881 = vmatprep.subr.bf16.mxu0 0
    %2882 = vmatpush1.bf16.msra.mxu0 %v2861
    %2883 = vmatprep.subr.bf16.mxu0 0
    %2884 = vmatpush1.bf16.msra.mxu0 %v2862
    %2885 = vmatprep.subr.bf16.mxu0 0
    %2886 = vmatpush1.bf16.msra.mxu0 %v2863
    %2887 = vmatprep.subr.bf16.mxu0 0
    %2888 = vmatpush1.bf16.msra.mxu0 %v2864
    %2889 = vmatprep.subr.bf16.mxu0 0
    %2890 = vmatpush1.bf16.msra.mxu0 0
    %2891 = vmatprep.subr.bf16.mxu0 0
    %2892 = vmatpush1.bf16.msra.mxu0 0
    %2893 = vmatprep.subr.bf16.mxu0 0
    %2894 = vmatpush1.bf16.msra.mxu0 0
    %2895 = vmatprep.subr.bf16.mxu0 0
    %2896 = vmatpush1.bf16.msra.mxu0 0
    %2897 = vmatprep.subr.bf16.mxu0 0
    %2898 = vmatpush1.bf16.msra.mxu0 0
    %2899 = vmatprep.subr.bf16.mxu0 0
    %2900 = vmatpush1.bf16.msra.mxu0 0
    %2901 = vmatprep.subr.bf16.mxu0 0
    %2902 = vmatpush1.bf16.msra.mxu0 0
    %2903 = vmatprep.subr.bf16.mxu0 0
    %2904 = vmatpush1.bf16.msra.mxu0 0
    %2905 = vmatprep.mubr.bf16.mxu0 0
    %2906 = vmatmul.mubr.bf16.gmra.mrb[0].mxu0 %v2807
    %v2907 = vpop.f32.mrb[0].mxu0
    %v2908 = vadd.f32 0.0, %v2907
    %v2909 = vpop.f32.mrb[0].mxu0
    %v2910 = vpop.f32.mrb[0].mxu0
    %v2911 = vpop.f32.mrb[0].mxu0
    %2912 = vdwg.mxu0
    %v2913 = vadd.f32 %v2761, %v2908
    %s2914 = scalar_lea.vmem %s8, 20
    %v2915 = vld [vmem:[%s2914] sm:$0xf]
    %v2917 = vsel %vm2158, %v2915, 0
    %2919 = vmatprep.subr.bf16.mxu0 0
    %2920 = vmatpush1.bf16.msra.mxu0 %v2155
    %2921 = vmatprep.subr.bf16.mxu0 0
    %2922 = vmatpush1.bf16.msra.mxu0 %v2156
    %2923 = vmatprep.subr.bf16.mxu0 0
    %2924 = vmatpush1.bf16.msra.mxu0 0
    %2925 = vmatprep.subr.bf16.mxu0 0
    %2926 = vmatpush1.bf16.msra.mxu0 0
    %2927 = vmatprep.subr.bf16.mxu0 0
    %2928 = vmatpush1.bf16.msra.mxu0 0
    %2929 = vmatprep.subr.bf16.mxu0 0
    %2930 = vmatpush1.bf16.msra.mxu0 0
    %2931 = vmatprep.subr.bf16.mxu0 0
    %2932 = vmatpush1.bf16.msra.mxu0 0
    %2933 = vmatprep.subr.bf16.mxu0 0
    %2934 = vmatpush1.bf16.msra.mxu0 0
    %2935 = vmatprep.subr.bf16.mxu0 0
    %2936 = vmatpush1.bf16.msra.mxu0 0
    %2937 = vmatprep.subr.bf16.mxu0 0
    %2938 = vmatpush1.bf16.msra.mxu0 0
    %2939 = vmatprep.subr.bf16.mxu0 0
    %2940 = vmatpush1.bf16.msra.mxu0 0
    %2941 = vmatprep.subr.bf16.mxu0 0
    %2942 = vmatpush1.bf16.msra.mxu0 0
    %2943 = vmatprep.subr.bf16.mxu0 0
    %2944 = vmatpush1.bf16.msra.mxu0 0
    %2945 = vmatprep.subr.bf16.mxu0 0
    %2946 = vmatpush1.bf16.msra.mxu0 0
    %2947 = vmatprep.subr.bf16.mxu0 0
    %2948 = vmatpush1.bf16.msra.mxu0 0
    %2949 = vmatprep.subr.bf16.mxu0 0
    %2950 = vmatpush1.bf16.msra.mxu0 0
    %2951 = vmatprep.mubr.bf16.mxu0 0
    %2952 = vmatmul.mubr.bf16.gmra.mrb[0].mxu0 %v2917
    %v2953 = vpop.f32.mrb[0].mxu0
    %v2954 = vadd.f32 0.0, %v2953
    %v2955 = vpop.f32.mrb[0].mxu0
    %v2956 = vpop.f32.mrb[0].mxu0
    %v2957 = vpop.f32.mrb[0].mxu0
    %2958 = vdwg.mxu0
    %v2959 = vpack.c.bf16 %v2954, %v2954
    %s2960 = scalar_lea.vmem %s9, 320
    %v2961 = vld [vmem:[%s2960] sm:$0xf]
    %v2962 = vld [vmem:[%s2960 + $0x4] sm:$0xf]
    %v2963 = vld [vmem:[%s2960 + $0x8] sm:$0xf]
    %v2964 = vld [vmem:[%s2960 + $0xc] sm:$0xf]
    %v2965 = vld [vmem:[%s2960 + $0x10] sm:$0xf]
    %v2966 = vld [vmem:[%s2960 + $0x14] sm:$0xf]
    %v2967 = vld [vmem:[%s2960 + $0x18] sm:$0xf]
    %v2968 = vld [vmem:[%s2960 + $0x1c] sm:$0xf]
    %v2969 = vld [vmem:[%s2960 + $0x20] sm:$0xf]
    %v2970 = vld [vmem:[%s2960 + $0x24] sm:$0xf]
    %v2971 = vld [vmem:[%s2960 + $0x28] sm:$0xf]
    %v2972 = vld [vmem:[%s2960 + $0x2c] sm:$0xf]
    %v2973 = vld [vmem:[%s2960 + $0x30] sm:$0xf]
    %v2974 = vld [vmem:[%s2960 + $0x34] sm:$0xf]
    %v2975 = vld [vmem:[%s2960 + $0x38] sm:$0xf]
    %v2976 = vld [vmem:[%s2960 + $0x3c] sm:$0xf]
    %v2993 = vunpack.c.l.b16 %v2961
    %v2994 = vunpack.c.l.b16 %v2962
    %v2995 = vunpack.c.l.b16 %v2963
    %v2996 = vunpack.c.l.b16 %v2964
    %v2997 = vunpack.c.l.b16 %v2965
    %v2998 = vunpack.c.l.b16 %v2966
    %v2999 = vunpack.c.l.b16 %v2967
    %v3000 = vunpack.c.l.b16 %v2968
    %v3001 = vunpack.c.l.b16 %v2969
    %v3002 = vunpack.c.l.b16 %v2970
    %v3003 = vunpack.c.l.b16 %v2971
    %v3004 = vunpack.c.l.b16 %v2972
    %v3005 = vunpack.c.l.b16 %v2973
    %v3006 = vunpack.c.l.b16 %v2974
    %v3007 = vunpack.c.l.b16 %v2975
    %v3008 = vunpack.c.l.b16 %v2976
    %v3009 = vpack.c.b16 %v2994, %v2993
    %v3010 = vpack.c.b16 %v2996, %v2995
    %v3011 = vpack.c.b16 %v2998, %v2997
    %v3012 = vpack.c.b16 %v3000, %v2999
    %v3013 = vpack.c.b16 %v3002, %v3001
    %v3014 = vpack.c.b16 %v3004, %v3003
    %v3015 = vpack.c.b16 %v3006, %v3005
    %v3016 = vpack.c.b16 %v3008, %v3007
    %3025 = vmatprep.subr.bf16.mxu0 0
    %3026 = vmatpush1.bf16.msra.mxu0 %v3009
    %3027 = vmatprep.subr.bf16.mxu0 0
    %3028 = vmatpush1.bf16.msra.mxu0 %v3010
    %3029 = vmatprep.subr.bf16.mxu0 0
    %3030 = vmatpush1.bf16.msra.mxu0 %v3011
    %3031 = vmatprep.subr.bf16.mxu0 0
    %3032 = vmatpush1.bf16.msra.mxu0 %v3012
    %3033 = vmatprep.subr.bf16.mxu0 0
    %3034 = vmatpush1.bf16.msra.mxu0 %v3013
    %3035 = vmatprep.subr.bf16.mxu0 0
    %3036 = vmatpush1.bf16.msra.mxu0 %v3014
    %3037 = vmatprep.subr.bf16.mxu0 0
    %3038 = vmatpush1.bf16.msra.mxu0 %v3015
    %3039 = vmatprep.subr.bf16.mxu0 0
    %3040 = vmatpush1.bf16.msra.mxu0 %v3016
    %3041 = vmatprep.subr.bf16.mxu0 0
    %3042 = vmatpush1.bf16.msra.mxu0 0
    %3043 = vmatprep.subr.bf16.mxu0 0
    %3044 = vmatpush1.bf16.msra.mxu0 0
    %3045 = vmatprep.subr.bf16.mxu0 0
    %3046 = vmatpush1.bf16.msra.mxu0 0
    %3047 = vmatprep.subr.bf16.mxu0 0
    %3048 = vmatpush1.bf16.msra.mxu0 0
    %3049 = vmatprep.subr.bf16.mxu0 0
    %3050 = vmatpush1.bf16.msra.mxu0 0
    %3051 = vmatprep.subr.bf16.mxu0 0
    %3052 = vmatpush1.bf16.msra.mxu0 0
    %3053 = vmatprep.subr.bf16.mxu0 0
    %3054 = vmatpush1.bf16.msra.mxu0 0
    %3055 = vmatprep.subr.bf16.mxu0 0
    %3056 = vmatpush1.bf16.msra.mxu0 0
    %3057 = vmatprep.mubr.bf16.mxu0 0
    %3058 = vmatmul.mubr.bf16.gmra.mrb[0].mxu0 %v2959
    %v3059 = vpop.f32.mrb[0].mxu0
    %v3060 = vadd.f32 0.0, %v3059
    %v3061 = vpop.f32.mrb[0].mxu0
    %v3062 = vpop.f32.mrb[0].mxu0
    %v3063 = vpop.f32.mrb[0].mxu0
    %3064 = vdwg.mxu0
    %v3065 = vadd.f32 %v2913, %v3060
    %s3066 = scalar_lea.vmem %s8, 24
    %v3067 = vld [vmem:[%s3066] sm:$0xf]
    %v3069 = vsel %vm2158, %v3067, 0
    %3071 = vmatprep.subr.bf16.mxu0 0
    %3072 = vmatpush1.bf16.msra.mxu0 %v2155
    %3073 = vmatprep.subr.bf16.mxu0 0
    %3074 = vmatpush1.bf16.msra.mxu0 %v2156
    %3075 = vmatprep.subr.bf16.mxu0 0
    %3076 = vmatpush1.bf16.msra.mxu0 0
    %3077 = vmatprep.subr.bf16.mxu0 0
    %3078 = vmatpush1.bf16.msra.mxu0 0
    %3079 = vmatprep.subr.bf16.mxu0 0
    %3080 = vmatpush1.bf16.msra.mxu0 0
    %3081 = vmatprep.subr.bf16.mxu0 0
    %3082 = vmatpush1.bf16.msra.mxu0 0
    %3083 = vmatprep.subr.bf16.mxu0 0
    %3084 = vmatpush1.bf16.msra.mxu0 0
    %3085 = vmatprep.subr.bf16.mxu0 0
    %3086 = vmatpush1.bf16.msra.mxu0 0
    %3087 = vmatprep.subr.bf16.mxu0 0
    %3088 = vmatpush1.bf16.msra.mxu0 0
    %3089 = vmatprep.subr.bf16.mxu0 0
    %3090 = vmatpush1.bf16.msra.mxu0 0
    %3091 = vmatprep.subr.bf16.mxu0 0
    %3092 = vmatpush1.bf16.msra.mxu0 0
    %3093 = vmatprep.subr.bf16.mxu0 0
    %3094 = vmatpush1.bf16.msra.mxu0 0
    %3095 = vmatprep.subr.bf16.mxu0 0
    %3096 = vmatpush1.bf16.msra.mxu0 0
    %3097 = vmatprep.subr.bf16.mxu0 0
    %3098 = vmatpush1.bf16.msra.mxu0 0
    %3099 = vmatprep.subr.bf16.mxu0 0
    %3100 = vmatpush1.bf16.msra.mxu0 0
    %3101 = vmatprep.subr.bf16.mxu0 0
    %3102 = vmatpush1.bf16.msra.mxu0 0
    %3103 = vmatprep.mubr.bf16.mxu0 0
    %3104 = vmatmul.mubr.bf16.gmra.mrb[0].mxu0 %v3069
    %v3105 = vpop.f32.mrb[0].mxu0
    %v3106 = vadd.f32 0.0, %v3105
    %v3107 = vpop.f32.mrb[0].mxu0
    %v3108 = vpop.f32.mrb[0].mxu0
    %v3109 = vpop.f32.mrb[0].mxu0
    %3110 = vdwg.mxu0
    %v3111 = vpack.c.bf16 %v3106, %v3106
    %s3112 = scalar_lea.vmem %s9, 384
    %v3113 = vld [vmem:[%s3112] sm:$0xf]
    %v3114 = vld [vmem:[%s3112 + $0x4] sm:$0xf]
    %v3115 = vld [vmem:[%s3112 + $0x8] sm:$0xf]
    %v3116 = vld [vmem:[%s3112 + $0xc] sm:$0xf]
    %v3117 = vld [vmem:[%s3112 + $0x10] sm:$0xf]
    %v3118 = vld [vmem:[%s3112 + $0x14] sm:$0xf]
    %v3119 = vld [vmem:[%s3112 + $0x18] sm:$0xf]
    %v3120 = vld [vmem:[%s3112 + $0x1c] sm:$0xf]
    %v3121 = vld [vmem:[%s3112 + $0x20] sm:$0xf]
    %v3122 = vld [vmem:[%s3112 + $0x24] sm:$0xf]
    %v3123 = vld [vmem:[%s3112 + $0x28] sm:$0xf]
    %v3124 = vld [vmem:[%s3112 + $0x2c] sm:$0xf]
    %v3125 = vld [vmem:[%s3112 + $0x30] sm:$0xf]
    %v3126 = vld [vmem:[%s3112 + $0x34] sm:$0xf]
    %v3127 = vld [vmem:[%s3112 + $0x38] sm:$0xf]
    %v3128 = vld [vmem:[%s3112 + $0x3c] sm:$0xf]
    %v3145 = vunpack.c.l.b16 %v3113
    %v3146 = vunpack.c.l.b16 %v3114
    %v3147 = vunpack.c.l.b16 %v3115
    %v3148 = vunpack.c.l.b16 %v3116
    %v3149 = vunpack.c.l.b16 %v3117
    %v3150 = vunpack.c.l.b16 %v3118
    %v3151 = vunpack.c.l.b16 %v3119
    %v3152 = vunpack.c.l.b16 %v3120
    %v3153 = vunpack.c.l.b16 %v3121
    %v3154 = vunpack.c.l.b16 %v3122
    %v3155 = vunpack.c.l.b16 %v3123
    %v3156 = vunpack.c.l.b16 %v3124
    %v3157 = vunpack.c.l.b16 %v3125
    %v3158 = vunpack.c.l.b16 %v3126
    %v3159 = vunpack.c.l.b16 %v3127
    %v3160 = vunpack.c.l.b16 %v3128
    %v3161 = vpack.c.b16 %v3146, %v3145
    %v3162 = vpack.c.b16 %v3148, %v3147
    %v3163 = vpack.c.b16 %v3150, %v3149
    %v3164 = vpack.c.b16 %v3152, %v3151
    %v3165 = vpack.c.b16 %v3154, %v3153
    %v3166 = vpack.c.b16 %v3156, %v3155
    %v3167 = vpack.c.b16 %v3158, %v3157
    %v3168 = vpack.c.b16 %v3160, %v3159
    %3177 = vmatprep.subr.bf16.mxu0 0
    %3178 = vmatpush1.bf16.msra.mxu0 %v3161
    %3179 = vmatprep.subr.bf16.mxu0 0
    %3180 = vmatpush1.bf16.msra.mxu0 %v3162
    %3181 = vmatprep.subr.bf16.mxu0 0
    %3182 = vmatpush1.bf16.msra.mxu0 %v3163
    %3183 = vmatprep.subr.bf16.mxu0 0
    %3184 = vmatpush1.bf16.msra.mxu0 %v3164
    %3185 = vmatprep.subr.bf16.mxu0 0
    %3186 = vmatpush1.bf16.msra.mxu0 %v3165
    %3187 = vmatprep.subr.bf16.mxu0 0
    %3188 = vmatpush1.bf16.msra.mxu0 %v3166
    %3189 = vmatprep.subr.bf16.mxu0 0
    %3190 = vmatpush1.bf16.msra.mxu0 %v3167
    %3191 = vmatprep.subr.bf16.mxu0 0
    %3192 = vmatpush1.bf16.msra.mxu0 %v3168
    %3193 = vmatprep.subr.bf16.mxu0 0
    %3194 = vmatpush1.bf16.msra.mxu0 0
    %3195 = vmatprep.subr.bf16.mxu0 0
    %3196 = vmatpush1.bf16.msra.mxu0 0
    %3197 = vmatprep.subr.bf16.mxu0 0
    %3198 = vmatpush1.bf16.msra.mxu0 0
    %3199 = vmatprep.subr.bf16.mxu0 0
    %3200 = vmatpush1.bf16.msra.mxu0 0
    %3201 = vmatprep.subr.bf16.mxu0 0
    %3202 = vmatpush1.bf16.msra.mxu0 0
    %3203 = vmatprep.subr.bf16.mxu0 0
    %3204 = vmatpush1.bf16.msra.mxu0 0
    %3205 = vmatprep.subr.bf16.mxu0 0
    %3206 = vmatpush1.bf16.msra.mxu0 0
    %3207 = vmatprep.subr.bf16.mxu0 0
    %3208 = vmatpush1.bf16.msra.mxu0 0
    %3209 = vmatprep.mubr.bf16.mxu0 0
    %3210 = vmatmul.mubr.bf16.gmra.mrb[0].mxu0 %v3111
    %v3211 = vpop.f32.mrb[0].mxu0
    %v3212 = vadd.f32 0.0, %v3211
    %v3213 = vpop.f32.mrb[0].mxu0
    %v3214 = vpop.f32.mrb[0].mxu0
    %v3215 = vpop.f32.mrb[0].mxu0
    %3216 = vdwg.mxu0
    %v3217 = vadd.f32 %v3065, %v3212
    %s3218 = scalar_lea.vmem %s8, 28
    %v3219 = vld [vmem:[%s3218] sm:$0xf]
    %v3221 = vsel %vm2158, %v3219, 0
    %3223 = vmatprep.subr.bf16.mxu0 0
    %3224 = vmatpush1.bf16.msra.mxu0 %v2155
    %3225 = vmatprep.subr.bf16.mxu0 0
    %3226 = vmatpush1.bf16.msra.mxu0 %v2156
    %3227 = vmatprep.subr.bf16.mxu0 0
    %3228 = vmatpush1.bf16.msra.mxu0 0
    %3229 = vmatprep.subr.bf16.mxu0 0
    %3230 = vmatpush1.bf16.msra.mxu0 0
    %3231 = vmatprep.subr.bf16.mxu0 0
    %3232 = vmatpush1.bf16.msra.mxu0 0
    %3233 = vmatprep.subr.bf16.mxu0 0
    %3234 = vmatpush1.bf16.msra.mxu0 0
    %3235 = vmatprep.subr.bf16.mxu0 0
    %3236 = vmatpush1.bf16.msra.mxu0 0
    %3237 = vmatprep.subr.bf16.mxu0 0
    %3238 = vmatpush1.bf16.msra.mxu0 0
    %3239 = vmatprep.subr.bf16.mxu0 0
    %3240 = vmatpush1.bf16.msra.mxu0 0
    %3241 = vmatprep.subr.bf16.mxu0 0
    %3242 = vmatpush1.bf16.msra.mxu0 0
    %3243 = vmatprep.subr.bf16.mxu0 0
    %3244 = vmatpush1.bf16.msra.mxu0 0
    %3245 = vmatprep.subr.bf16.mxu0 0
    %3246 = vmatpush1.bf16.msra.mxu0 0
    %3247 = vmatprep.subr.bf16.mxu0 0
    %3248 = vmatpush1.bf16.msra.mxu0 0
    %3249 = vmatprep.subr.bf16.mxu0 0
    %3250 = vmatpush1.bf16.msra.mxu0 0
    %3251 = vmatprep.subr.bf16.mxu0 0
    %3252 = vmatpush1.bf16.msra.mxu0 0
    %3253 = vmatprep.subr.bf16.mxu0 0
    %3254 = vmatpush1.bf16.msra.mxu0 0
    %3255 = vmatprep.mubr.bf16.mxu0 0
    %3256 = vmatmul.mubr.bf16.gmra.mrb[0].mxu0 %v3221
    %v3257 = vpop.f32.mrb[0].mxu0
    %v3258 = vadd.f32 0.0, %v3257
    %v3259 = vpop.f32.mrb[0].mxu0
    %v3260 = vpop.f32.mrb[0].mxu0
    %v3261 = vpop.f32.mrb[0].mxu0
    %3262 = vdwg.mxu0
    %v3263 = vpack.c.bf16 %v3258, %v3258
    %s3264 = scalar_lea.vmem %s9, 448
    %v3265 = vld [vmem:[%s3264] sm:$0xf]
    %v3266 = vld [vmem:[%s3264 + $0x4] sm:$0xf]
    %v3267 = vld [vmem:[%s3264 + $0x8] sm:$0xf]
    %v3268 = vld [vmem:[%s3264 + $0xc] sm:$0xf]
    %v3269 = vld [vmem:[%s3264 + $0x10] sm:$0xf]
    %v3270 = vld [vmem:[%s3264 + $0x14] sm:$0xf]
    %v3271 = vld [vmem:[%s3264 + $0x18] sm:$0xf]
    %v3272 = vld [vmem:[%s3264 + $0x1c] sm:$0xf]
    %v3273 = vld [vmem:[%s3264 + $0x20] sm:$0xf]
    %v3274 = vld [vmem:[%s3264 + $0x24] sm:$0xf]
    %v3275 = vld [vmem:[%s3264 + $0x28] sm:$0xf]
    %v3276 = vld [vmem:[%s3264 + $0x2c] sm:$0xf]
    %v3277 = vld [vmem:[%s3264 + $0x30] sm:$0xf]
    %v3278 = vld [vmem:[%s3264 + $0x34] sm:$0xf]
    %v3279 = vld [vmem:[%s3264 + $0x38] sm:$0xf]
    %v3280 = vld [vmem:[%s3264 + $0x3c] sm:$0xf]
    %v3297 = vunpack.c.l.b16 %v3265
    %v3298 = vunpack.c.l.b16 %v3266
    %v3299 = vunpack.c.l.b16 %v3267
    %v3300 = vunpack.c.l.b16 %v3268
    %v3301 = vunpack.c.l.b16 %v3269
    %v3302 = vunpack.c.l.b16 %v3270
    %v3303 = vunpack.c.l.b16 %v3271
    %v3304 = vunpack.c.l.b16 %v3272
    %v3305 = vunpack.c.l.b16 %v3273
    %v3306 = vunpack.c.l.b16 %v3274
    %v3307 = vunpack.c.l.b16 %v3275
    %v3308 = vunpack.c.l.b16 %v3276
    %v3309 = vunpack.c.l.b16 %v3277
    %v3310 = vunpack.c.l.b16 %v3278
    %v3311 = vunpack.c.l.b16 %v3279
    %v3312 = vunpack.c.l.b16 %v3280
    %v3313 = vpack.c.b16 %v3298, %v3297
    %v3314 = vpack.c.b16 %v3300, %v3299
    %v3315 = vpack.c.b16 %v3302, %v3301
    %v3316 = vpack.c.b16 %v3304, %v3303
    %v3317 = vpack.c.b16 %v3306, %v3305
    %v3318 = vpack.c.b16 %v3308, %v3307
    %v3319 = vpack.c.b16 %v3310, %v3309
    %v3320 = vpack.c.b16 %v3312, %v3311
    %3329 = vmatprep.subr.bf16.mxu0 0
    %3330 = vmatpush1.bf16.msra.mxu0 %v3313
    %3331 = vmatprep.subr.bf16.mxu0 0
    %3332 = vmatpush1.bf16.msra.mxu0 %v3314
    %3333 = vmatprep.subr.bf16.mxu0 0
    %3334 = vmatpush1.bf16.msra.mxu0 %v3315
    %3335 = vmatprep.subr.bf16.mxu0 0
    %3336 = vmatpush1.bf16.msra.mxu0 %v3316
    %3337 = vmatprep.subr.bf16.mxu0 0
    %3338 = vmatpush1.bf16.msra.mxu0 %v3317
    %3339 = vmatprep.subr.bf16.mxu0 0
    %3340 = vmatpush1.bf16.msra.mxu0 %v3318
    %3341 = vmatprep.subr.bf16.mxu0 0
    %3342 = vmatpush1.bf16.msra.mxu0 %v3319
    %3343 = vmatprep.subr.bf16.mxu0 0
    %3344 = vmatpush1.bf16.msra.mxu0 %v3320
    %3345 = vmatprep.subr.bf16.mxu0 0
    %3346 = vmatpush1.bf16.msra.mxu0 0
    %3347 = vmatprep.subr.bf16.mxu0 0
    %3348 = vmatpush1.bf16.msra.mxu0 0
    %3349 = vmatprep.subr.bf16.mxu0 0
    %3350 = vmatpush1.bf16.msra.mxu0 0
    %3351 = vmatprep.subr.bf16.mxu0 0
    %3352 = vmatpush1.bf16.msra.mxu0 0
    %3353 = vmatprep.subr.bf16.mxu0 0
    %3354 = vmatpush1.bf16.msra.mxu0 0
    %3355 = vmatprep.subr.bf16.mxu0 0
    %3356 = vmatpush1.bf16.msra.mxu0 0
    %3357 = vmatprep.subr.bf16.mxu0 0
    %3358 = vmatpush1.bf16.msra.mxu0 0
    %3359 = vmatprep.subr.bf16.mxu0 0
    %3360 = vmatpush1.bf16.msra.mxu0 0
    %3361 = vmatprep.mubr.bf16.mxu0 0
    %3362 = vmatmul.mubr.bf16.gmra.mrb[0].mxu0 %v3263
    %v3363 = vpop.f32.mrb[0].mxu0
    %v3364 = vadd.f32 0.0, %v3363
    %v3365 = vpop.f32.mrb[0].mxu0
    %v3366 = vpop.f32.mrb[0].mxu0
    %v3367 = vpop.f32.mrb[0].mxu0
    %3368 = vdwg.mxu0
    %v3369 = vadd.f32 %v3217, %v3364
    %s3370 = scalar_lea.vmem %s8, 32
    %v3371 = vld [vmem:[%s3370] sm:$0xf]
    %v3373 = vsel %vm2158, %v3371, 0
    %3375 = vmatprep.subr.bf16.mxu0 0
    %3376 = vmatpush1.bf16.msra.mxu0 %v2155
    %3377 = vmatprep.subr.bf16.mxu0 0
    %3378 = vmatpush1.bf16.msra.mxu0 %v2156
    %3379 = vmatprep.subr.bf16.mxu0 0
    %3380 = vmatpush1.bf16.msra.mxu0 0
    %3381 = vmatprep.subr.bf16.mxu0 0
    %3382 = vmatpush1.bf16.msra.mxu0 0
    %3383 = vmatprep.subr.bf16.mxu0 0
    %3384 = vmatpush1.bf16.msra.mxu0 0
    %3385 = vmatprep.subr.bf16.mxu0 0
    %3386 = vmatpush1.bf16.msra.mxu0 0
    %3387 = vmatprep.subr.bf16.mxu0 0
    %3388 = vmatpush1.bf16.msra.mxu0 0
    %3389 = vmatprep.subr.bf16.mxu0 0
    %3390 = vmatpush1.bf16.msra.mxu0 0
    %3391 = vmatprep.subr.bf16.mxu0 0
    %3392 = vmatpush1.bf16.msra.mxu0 0
    %3393 = vmatprep.subr.bf16.mxu0 0
    %3394 = vmatpush1.bf16.msra.mxu0 0
    %3395 = vmatprep.subr.bf16.mxu0 0
    %3396 = vmatpush1.bf16.msra.mxu0 0
    %3397 = vmatprep.subr.bf16.mxu0 0
    %3398 = vmatpush1.bf16.msra.mxu0 0
    %3399 = vmatprep.subr.bf16.mxu0 0
    %3400 = vmatpush1.bf16.msra.mxu0 0
    %3401 = vmatprep.subr.bf16.mxu0 0
    %3402 = vmatpush1.bf16.msra.mxu0 0
    %3403 = vmatprep.subr.bf16.mxu0 0
    %3404 = vmatpush1.bf16.msra.mxu0 0
    %3405 = vmatprep.subr.bf16.mxu0 0
    %3406 = vmatpush1.bf16.msra.mxu0 0
    %3407 = vmatprep.mubr.bf16.mxu0 0
    %3408 = vmatmul.mubr.bf16.gmra.mrb[0].mxu0 %v3373
    %v3409 = vpop.f32.mrb[0].mxu0
    %v3410 = vadd.f32 0.0, %v3409
    %v3411 = vpop.f32.mrb[0].mxu0
    %v3412 = vpop.f32.mrb[0].mxu0
    %v3413 = vpop.f32.mrb[0].mxu0
    %3414 = vdwg.mxu0
    %v3415 = vpack.c.bf16 %v3410, %v3410
    %s3416 = scalar_lea.vmem %s9, 512
    %v3417 = vld [vmem:[%s3416] sm:$0xf]
    %v3418 = vld [vmem:[%s3416 + $0x4] sm:$0xf]
    %v3419 = vld [vmem:[%s3416 + $0x8] sm:$0xf]
    %v3420 = vld [vmem:[%s3416 + $0xc] sm:$0xf]
    %v3421 = vld [vmem:[%s3416 + $0x10] sm:$0xf]
    %v3422 = vld [vmem:[%s3416 + $0x14] sm:$0xf]
    %v3423 = vld [vmem:[%s3416 + $0x18] sm:$0xf]
    %v3424 = vld [vmem:[%s3416 + $0x1c] sm:$0xf]
    %v3425 = vld [vmem:[%s3416 + $0x20] sm:$0xf]
    %v3426 = vld [vmem:[%s3416 + $0x24] sm:$0xf]
    %v3427 = vld [vmem:[%s3416 + $0x28] sm:$0xf]
    %v3428 = vld [vmem:[%s3416 + $0x2c] sm:$0xf]
    %v3429 = vld [vmem:[%s3416 + $0x30] sm:$0xf]
    %v3430 = vld [vmem:[%s3416 + $0x34] sm:$0xf]
    %v3431 = vld [vmem:[%s3416 + $0x38] sm:$0xf]
    %v3432 = vld [vmem:[%s3416 + $0x3c] sm:$0xf]
    %v3449 = vunpack.c.l.b16 %v3417
    %v3450 = vunpack.c.l.b16 %v3418
    %v3451 = vunpack.c.l.b16 %v3419
    %v3452 = vunpack.c.l.b16 %v3420
    %v3453 = vunpack.c.l.b16 %v3421
    %v3454 = vunpack.c.l.b16 %v3422
    %v3455 = vunpack.c.l.b16 %v3423
    %v3456 = vunpack.c.l.b16 %v3424
    %v3457 = vunpack.c.l.b16 %v3425
    %v3458 = vunpack.c.l.b16 %v3426
    %v3459 = vunpack.c.l.b16 %v3427
    %v3460 = vunpack.c.l.b16 %v3428
    %v3461 = vunpack.c.l.b16 %v3429
    %v3462 = vunpack.c.l.b16 %v3430
    %v3463 = vunpack.c.l.b16 %v3431
    %v3464 = vunpack.c.l.b16 %v3432
    %v3465 = vpack.c.b16 %v3450, %v3449
    %v3466 = vpack.c.b16 %v3452, %v3451
    %v3467 = vpack.c.b16 %v3454, %v3453
    %v3468 = vpack.c.b16 %v3456, %v3455
    %v3469 = vpack.c.b16 %v3458, %v3457
    %v3470 = vpack.c.b16 %v3460, %v3459
    %v3471 = vpack.c.b16 %v3462, %v3461
    %v3472 = vpack.c.b16 %v3464, %v3463
    %3481 = vmatprep.subr.bf16.mxu0 0
    %3482 = vmatpush1.bf16.msra.mxu0 %v3465
    %3483 = vmatprep.subr.bf16.mxu0 0
    %3484 = vmatpush1.bf16.msra.mxu0 %v3466
    %3485 = vmatprep.subr.bf16.mxu0 0
    %3486 = vmatpush1.bf16.msra.mxu0 %v3467
    %3487 = vmatprep.subr.bf16.mxu0 0
    %3488 = vmatpush1.bf16.msra.mxu0 %v3468
    %3489 = vmatprep.subr.bf16.mxu0 0
    %3490 = vmatpush1.bf16.msra.mxu0 %v3469
    %3491 = vmatprep.subr.bf16.mxu0 0
    %3492 = vmatpush1.bf16.msra.mxu0 %v3470
    %3493 = vmatprep.subr.bf16.mxu0 0
    %3494 = vmatpush1.bf16.msra.mxu0 %v3471
    %3495 = vmatprep.subr.bf16.mxu0 0
    %3496 = vmatpush1.bf16.msra.mxu0 %v3472
    %3497 = vmatprep.subr.bf16.mxu0 0
    %3498 = vmatpush1.bf16.msra.mxu0 0
    %3499 = vmatprep.subr.bf16.mxu0 0
    %3500 = vmatpush1.bf16.msra.mxu0 0
    %3501 = vmatprep.subr.bf16.mxu0 0
    %3502 = vmatpush1.bf16.msra.mxu0 0
    %3503 = vmatprep.subr.bf16.mxu0 0
    %3504 = vmatpush1.bf16.msra.mxu0 0
    %3505 = vmatprep.subr.bf16.mxu0 0
    %3506 = vmatpush1.bf16.msra.mxu0 0
    %3507 = vmatprep.subr.bf16.mxu0 0
    %3508 = vmatpush1.bf16.msra.mxu0 0
    %3509 = vmatprep.subr.bf16.mxu0 0
    %3510 = vmatpush1.bf16.msra.mxu0 0
    %3511 = vmatprep.subr.bf16.mxu0 0
    %3512 = vmatpush1.bf16.msra.mxu0 0
    %3513 = vmatprep.mubr.bf16.mxu0 0
    %3514 = vmatmul.mubr.bf16.gmra.mrb[0].mxu0 %v3415
    %v3515 = vpop.f32.mrb[0].mxu0
    %v3516 = vadd.f32 0.0, %v3515
    %v3517 = vpop.f32.mrb[0].mxu0
    %v3518 = vpop.f32.mrb[0].mxu0
    %v3519 = vpop.f32.mrb[0].mxu0
    %3520 = vdwg.mxu0
    %v3521 = vadd.f32 %v3369, %v3516
    %v3522 = vld [vmem:[%s10] sm:$0x1]
    %v3524 = vlaneseq
    %v3525 = vshrl.u32 %v3524, 7
    %v3526 = vsub.s32 0, %v3525
    %v3527 = vrot.slane %v3522, %v3526
    %v3529 = vadd.f32 %v3521, %v3527
    %3530 = vst [vmem:[#allocation2] sm:$0xff] %v3529
    // Predicated region
    $region46: #{encoder_forward.1} parent=1 // pred_check
      _
    $region47: #{encoder_forward.1} parent=1 // pred_check_branch
      %3532 = sbr.rel (0) target = $region49
    $region48: #{encoder_forward.1} parent=1 // pred_region
      %s3534 = ssub.s32 128, 128
      %3535 = vsyncadd [#allocation3], %s3534
      %s3537 = sshll.u32 [#allocation2], 4
      %s3538 = int_to_ptr.vmem [resolvable:$true] %s3537
      %3540 = dma.vmem_to_hbm [thread:$0]  %s3538, 128, %s11, [#allocation3]
    $region49: #{encoder_forward.1} parent=1 // pred_fallthru
      _
    // Predicated region
    $region50: #{encoder_forward.1} parent=1 // pred_check
      _
    $region51: #{encoder_forward.1} parent=1 // pred_check_branch
      %3542 = sbr.rel (0) target = $region53
    $region52: #{encoder_forward.1} parent=1 // pred_region
      %3543 = dma.done [#allocation3], 128
    $region53: #{encoder_forward.1} parent=1 // pred_fallthru
      _
    %3544 = vsyncpa [#allocation3], 1

</llo_original>
